<compile_context>
chip_gen: v5e
topology: v5e:2x2
jax: 0.10.0
libtpu: 0.0.40
codegen_flags: <defaults>
</compile_context>

<pallas_src>
import jax
import jax.numpy as jnp
from jax.experimental import pallas as pl
from jax.experimental.pallas import tpu as pltpu  # noqa: F401  (kept for CompilerParams if needed)

# Problem sizes (from the PyTorch module / input tensor)
N, C_IN, H, W = 1, 192, 12, 12
C_OUT = 192
KH, KW = 7, 1
PAD_H = 3

WP = 16                   # W padded to 16 -> sublane-aligned tap shifts (bf16 tile = (16,128))
HP = H + 2 * PAD_H        # padded height = 18
M_OUT = H * WP            # 192 flattened output rows (junk W cols stripped in wrapper)


def conv7x1_kernel(x_ref, w_ref, o_ref):
    # x_ref: [HP*WP, C_IN]   bf16 zero-padded (H and W) activation slab, fully VMEM resident
    # w_ref: [KH*C_IN, C_OUT] bf16 tap-major flattened weight
    # o_ref: [M_OUT, C_OUT]  f32 output
    #
    # KW = 1 and the slab is W-padded, so tap kh is just a row shift of kh*WP
    # (a multiple of the 16-row bf16 sublane tile => free view, no retile copy).
    acc = jnp.dot(
        x_ref[pl.ds(0, M_OUT), :],
        w_ref[pl.ds(0, C_IN), :],
        preferred_element_type=jnp.float32,
    )
    for kh in range(1, KH):
        acc += jnp.dot(
            x_ref[pl.ds(kh * WP, M_OUT), :],
            w_ref[pl.ds(kh * C_IN, C_IN), :],
            preferred_element_type=jnp.float32,
        )
    o_ref[...] = acc


def conv2d_7x1(x_nchw, weight_oihw):
    """x_nchw: [1, C_IN, H, W] f32; weight_oihw: [C_OUT, C_IN, KH, 1] f32."""
    # Layout glue (would be hoisted/fused across layers in a real pipeline).
    x_hwc = jnp.transpose(x_nchw[0], (1, 2, 0))                       # [H, W, C_IN]
    x_slab = jnp.pad(x_hwc, ((PAD_H, PAD_H), (0, WP - W), (0, 0)))    # [HP, WP, C_IN]
    x2d = x_slab.reshape(HP * WP, C_IN).astype(jnp.bfloat16)

    w2d = (jnp.transpose(weight_oihw[:, :, :, 0], (2, 1, 0))          # [KH, C_IN, C_OUT]
           .reshape(KH * C_IN, C_OUT)
           .astype(jnp.bfloat16))

    out2d = pl.pallas_call(
        conv7x1_kernel,
        out_shape=jax.ShapeDtypeStruct((M_OUT, C_OUT), jnp.float32),
        grid=(1,),
        in_specs=[
            pl.BlockSpec((HP * WP, C_IN), lambda i: (0, 0)),
            pl.BlockSpec((KH * C_IN, C_OUT), lambda i: (0, 0)),
        ],
        out_specs=pl.BlockSpec((M_OUT, C_OUT), lambda i: (0, 0)),
    )(x2d, w2d)

    # Strip the W-padding junk columns and go back to NCHW (module semantics).
    out_hwc = out2d.reshape(H, WP, C_OUT)[:, :W, :]                   # [H, W, C_OUT]
    return jnp.transpose(out_hwc, (2, 0, 1))[None]                    # [1, C_OUT, H, W]


if __name__ == "__main__":
    key = jax.random.PRNGKey(0)
    kx, kw = jax.random.split(key)
    x = jax.random.normal(kx, (N, C_IN, H, W), dtype=jnp.float32)
    # Deterministic synthetic weights (same shape as the PyTorch Conv2d weight).
    weight = jax.random.normal(kw, (C_OUT, C_IN, KH, KW), dtype=jnp.float32) * 0.02

    conv = jax.jit(conv2d_7x1)
    out = conv(x, weight)
    out = jax.block_until_ready(out)
    assert out.shape == (N, C_OUT, H, W), out.shape

    # Reference with the same bf16 operand quantization and f32 accumulation
    # (same NCHW/OIHW convention as PyTorch; conv = cross-correlation).
    ref = jax.lax.conv_general_dilated(
        x.astype(jnp.bfloat16), weight.astype(jnp.bfloat16),
        window_strides=(1, 1), padding=((PAD_H, PAD_H), (0, 0)),
        dimension_numbers=("NCHW", "OIHW", "NCHW"),
        preferred_element_type=jnp.float32)
    assert jnp.allclose(out, ref, atol=1e-2, rtol=1e-2), \
        float(jnp.max(jnp.abs(out - ref)))

    print("KERNEL_OK")
</pallas_src>

<mosaic_0001>
module attributes {stable_mosaic.version = 11 : i64} {
  func.func @conv7x1_kernel(%arg0: i32, %arg1: memref<288x192xbf16, #tpu.memory_space<vmem>>, %arg2: memref<1344x192xbf16, #tpu.memory_space<vmem>>, %arg3: memref<192x192xf32, #tpu.memory_space<vmem>>) attributes {dimension_semantics = [#tpu.dimension_semantics<arbitrary>], iteration_bounds = array<i64: 1>, scalar_prefetch = 0 : i64, scratch_operands = 0 : i64, tpu.core_type = #tpu.core_type<tc>, window_params = [{pipeline_mode = #tpu.pipeline_mode<synchronous>, transform_indices = @transform_0, window_bounds = array<i64: 288, 192>}, {pipeline_mode = #tpu.pipeline_mode<synchronous>, transform_indices = @transform_1, window_bounds = array<i64: 1344, 192>}, {pipeline_mode = #tpu.pipeline_mode<synchronous>, transform_indices = @transform_2, window_bounds = array<i64: 192, 192>}]} {
    %c0 = arith.constant 0 : index
    %c0_0 = arith.constant 0 : index
    %0 = vector.load %arg1[%c0, %c0_0] : memref<288x192xbf16, #tpu.memory_space<vmem>>, vector<192x192xbf16>
    %c0_1 = arith.constant 0 : index
    %c0_2 = arith.constant 0 : index
    %1 = vector.load %arg2[%c0_1, %c0_2] : memref<1344x192xbf16, #tpu.memory_space<vmem>>, vector<192x192xbf16>
    %cst = arith.constant dense<0.000000e+00> : vector<192x192xf32>
    %2 = tpu.matmul %0, %1, %cst {dimension_numbers = #tpu.dot_dimension_numbers<[1], [0], [0], [1], [0, 0, 1, 1], [], []>} : vector<192x192xbf16>, vector<192x192xbf16>, vector<192x192xf32> -> vector<192x192xf32>
    %c16 = arith.constant 16 : index
    %c0_3 = arith.constant 0 : index
    %3 = vector.load %arg1[%c16, %c0_3] : memref<288x192xbf16, #tpu.memory_space<vmem>>, vector<192x192xbf16>
    %c192 = arith.constant 192 : index
    %c0_4 = arith.constant 0 : index
    %4 = vector.load %arg2[%c192, %c0_4] : memref<1344x192xbf16, #tpu.memory_space<vmem>>, vector<192x192xbf16>
    %cst_5 = arith.constant dense<0.000000e+00> : vector<192x192xf32>
    %5 = tpu.matmul %3, %4, %cst_5 {dimension_numbers = #tpu.dot_dimension_numbers<[1], [0], [0], [1], [0, 0, 1, 1], [], []>} : vector<192x192xbf16>, vector<192x192xbf16>, vector<192x192xf32> -> vector<192x192xf32>
    %6 = arith.addf %2, %5 : vector<192x192xf32>
    %c32 = arith.constant 32 : index
    %c0_6 = arith.constant 0 : index
    %7 = vector.load %arg1[%c32, %c0_6] : memref<288x192xbf16, #tpu.memory_space<vmem>>, vector<192x192xbf16>
    %c384 = arith.constant 384 : index
    %c0_7 = arith.constant 0 : index
    %8 = vector.load %arg2[%c384, %c0_7] : memref<1344x192xbf16, #tpu.memory_space<vmem>>, vector<192x192xbf16>
    %cst_8 = arith.constant dense<0.000000e+00> : vector<192x192xf32>
    %9 = tpu.matmul %7, %8, %cst_8 {dimension_numbers = #tpu.dot_dimension_numbers<[1], [0], [0], [1], [0, 0, 1, 1], [], []>} : vector<192x192xbf16>, vector<192x192xbf16>, vector<192x192xf32> -> vector<192x192xf32>
    %10 = arith.addf %6, %9 : vector<192x192xf32>
    %c48 = arith.constant 48 : index
    %c0_9 = arith.constant 0 : index
    %11 = vector.load %arg1[%c48, %c0_9] : memref<288x192xbf16, #tpu.memory_space<vmem>>, vector<192x192xbf16>
    %c576 = arith.constant 576 : index
    %c0_10 = arith.constant 0 : index
    %12 = vector.load %arg2[%c576, %c0_10] : memref<1344x192xbf16, #tpu.memory_space<vmem>>, vector<192x192xbf16>
    %cst_11 = arith.constant dense<0.000000e+00> : vector<192x192xf32>
    %13 = tpu.matmul %11, %12, %cst_11 {dimension_numbers = #tpu.dot_dimension_numbers<[1], [0], [0], [1], [0, 0, 1, 1], [], []>} : vector<192x192xbf16>, vector<192x192xbf16>, vector<192x192xf32> -> vector<192x192xf32>
    %14 = arith.addf %10, %13 : vector<192x192xf32>
    %c64 = arith.constant 64 : index
    %c0_12 = arith.constant 0 : index
    %15 = vector.load %arg1[%c64, %c0_12] : memref<288x192xbf16, #tpu.memory_space<vmem>>, vector<192x192xbf16>
    %c768 = arith.constant 768 : index
    %c0_13 = arith.constant 0 : index
    %16 = vector.load %arg2[%c768, %c0_13] : memref<1344x192xbf16, #tpu.memory_space<vmem>>, vector<192x192xbf16>
    %cst_14 = arith.constant dense<0.000000e+00> : vector<192x192xf32>
    %17 = tpu.matmul %15, %16, %cst_14 {dimension_numbers = #tpu.dot_dimension_numbers<[1], [0], [0], [1], [0, 0, 1, 1], [], []>} : vector<192x192xbf16>, vector<192x192xbf16>, vector<192x192xf32> -> vector<192x192xf32>
    %18 = arith.addf %14, %17 : vector<192x192xf32>
    %c80 = arith.constant 80 : index
    %c0_15 = arith.constant 0 : index
    %19 = vector.load %arg1[%c80, %c0_15] : memref<288x192xbf16, #tpu.memory_space<vmem>>, vector<192x192xbf16>
    %c960 = arith.constant 960 : index
    %c0_16 = arith.constant 0 : index
    %20 = vector.load %arg2[%c960, %c0_16] : memref<1344x192xbf16, #tpu.memory_space<vmem>>, vector<192x192xbf16>
    %cst_17 = arith.constant dense<0.000000e+00> : vector<192x192xf32>
    %21 = tpu.matmul %19, %20, %cst_17 {dimension_numbers = #tpu.dot_dimension_numbers<[1], [0], [0], [1], [0, 0, 1, 1], [], []>} : vector<192x192xbf16>, vector<192x192xbf16>, vector<192x192xf32> -> vector<192x192xf32>
    %22 = arith.addf %18, %21 : vector<192x192xf32>
    %c96 = arith.constant 96 : index
    %c0_18 = arith.constant 0 : index
    %23 = vector.load %arg1[%c96, %c0_18] : memref<288x192xbf16, #tpu.memory_space<vmem>>, vector<192x192xbf16>
    %c1152 = arith.constant 1152 : index
    %c0_19 = arith.constant 0 : index
    %24 = vector.load %arg2[%c1152, %c0_19] : memref<1344x192xbf16, #tpu.memory_space<vmem>>, vector<192x192xbf16>
    %cst_20 = arith.constant dense<0.000000e+00> : vector<192x192xf32>
    %25 = tpu.matmul %23, %24, %cst_20 {dimension_numbers = #tpu.dot_dimension_numbers<[1], [0], [0], [1], [0, 0, 1, 1], [], []>} : vector<192x192xbf16>, vector<192x192xbf16>, vector<192x192xf32> -> vector<192x192xf32>
    %26 = arith.addf %22, %25 : vector<192x192xf32>
    %c0_21 = arith.constant 0 : index
    %c0_22 = arith.constant 0 : index
    %27 = vector.load %arg3[%c0_21, %c0_22] : memref<192x192xf32, #tpu.memory_space<vmem>>, vector<192x192xf32>
    tpu.vector_store %arg3[%c0_21, %c0_22], %26 {strides = array<i32>} : memref<192x192xf32, #tpu.memory_space<vmem>>, vector<192x192xf32>,
    return
  }
  func.func @transform_0(%arg0: i32) -> (i32, i32) {
    %c0_i32 = arith.constant 0 : i32
    %c0_i32_0 = arith.constant 0 : i32
    %c0_i32_1 = arith.constant 0 : i32
    return %c0_i32, %c0_i32_0 : i32, i32
  }
  func.func @transform_1(%arg0: i32) -> (i32, i32) {
    %c0_i32 = arith.constant 0 : i32
    %c0_i32_0 = arith.constant 0 : i32
    %c0_i32_1 = arith.constant 0 : i32
    return %c0_i32, %c0_i32_0 : i32, i32
  }
  func.func @transform_2(%arg0: i32) -> (i32, i32) {
    %c0_i32 = arith.constant 0 : i32
    %c0_i32_0 = arith.constant 0 : i32
    %c0_i32_1 = arith.constant 0 : i32
    return %c0_i32, %c0_i32_0 : i32, i32
  }
}

</mosaic_0001>

<llo_original>
// kernel: conv2d_7x1.1
$region0: #{conv2d_7x1.1}
  #allocation0 [shape = 'u32[]', space=smem, size = 0x4, offset = 0x4, fixed_abs, tag = 'smem constant byte address 0x4 - core index']
  #allocation1 [shape = 'u32[72,128]{1,0:T(1,128)}', space=vmem, size = 0x9000, scoped, tag = 'internal scratch']
  %s0 = inlined_call_operand.vmem [shape: bf16[288,192], index: 0, kind: input, shape index: {}]
  %s1 = inlined_call_operand.vmem [shape: bf16[1344,192], index: 1, kind: input, shape index: {}]
  %s2 = inlined_call_operand.vmem [shape: f32[192,192], index: 2, kind: output, shape index: {}]
  %s3 = sld [smem:[#allocation0]]
  $region18: #{conv2d_7x1.1} parent=0
    _
  %s5 = ssub.s32 1, %s3
  %s6 = scalar_select 0, %s5, %s3
  // Predicated region
  $region2: #{conv2d_7x1.1} parent=0 // pred_check
    _
  $region3: #{conv2d_7x1.1} parent=0 // pred_check_branch
    %8 = sbr.rel (0) target = $region5
  $region4: #{conv2d_7x1.1} parent=0 // pred_region
    _
  $region5: #{conv2d_7x1.1} parent=0 // pred_fallthru
    _
  // Predicated region
  $region6: #{conv2d_7x1.1} parent=0 // pred_check
    _
  $region7: #{conv2d_7x1.1} parent=0 // pred_check_branch
    %10 = sbr.rel (0) target = $region9
  $region8: #{conv2d_7x1.1} parent=0 // pred_region
    _
  $region9: #{conv2d_7x1.1} parent=0 // pred_fallthru
    _
  %v12 = vld [vmem:[%s0] sm:$0xff]
  %v13 = vld [vmem:[%s0 + $0x8] sm:$0xff]
  %v14 = vld [vmem:[%s0 + $0x10] sm:$0xff]
  %v15 = vld [vmem:[%s0 + $0x18] sm:$0xff]
  %v16 = vld [vmem:[%s0 + $0x20] sm:$0xff]
  %v17 = vld [vmem:[%s0 + $0x28] sm:$0xff]
  %v18 = vld [vmem:[%s0 + $0x30] sm:$0xff]
  %v19 = vld [vmem:[%s0 + $0x38] sm:$0xff]
  %v20 = vld [vmem:[%s0 + $0x40] sm:$0xff]
  %v21 = vld [vmem:[%s0 + $0x48] sm:$0xff]
  %v22 = vld [vmem:[%s0 + $0x50] sm:$0xff]
  %v23 = vld [vmem:[%s0 + $0x58] sm:$0xff]
  %v24 = vld [vmem:[%s0 + $0x60] sm:$0xff]
  %v25 = vld [vmem:[%s0 + $0x68] sm:$0xff]
  %v26 = vld [vmem:[%s0 + $0x70] sm:$0xff]
  %v27 = vld [vmem:[%s0 + $0x78] sm:$0xff]
  %v28 = vld [vmem:[%s0 + $0x80] sm:$0xff]
  %v29 = vld [vmem:[%s0 + $0x88] sm:$0xff]
  %v30 = vld [vmem:[%s0 + $0x90] sm:$0xff]
  %v31 = vld [vmem:[%s0 + $0x98] sm:$0xff]
  %v32 = vld [vmem:[%s0 + $0xa0] sm:$0xff]
  %v33 = vld [vmem:[%s0 + $0xa8] sm:$0xff]
  %v34 = vld [vmem:[%s0 + $0xb0] sm:$0xff]
  %v35 = vld [vmem:[%s0 + $0xb8] sm:$0xff]
  %v36 = vld [vmem:[%s1] sm:$0xff]
  %v37 = vld [vmem:[%s1 + $0x8] sm:$0xff]
  %v38 = vld [vmem:[%s1 + $0x10] sm:$0xff]
  %v39 = vld [vmem:[%s1 + $0x18] sm:$0xff]
  %v40 = vld [vmem:[%s1 + $0x20] sm:$0xff]
  %v41 = vld [vmem:[%s1 + $0x28] sm:$0xff]
  %v42 = vld [vmem:[%s1 + $0x30] sm:$0xff]
  %v43 = vld [vmem:[%s1 + $0x38] sm:$0xff]
  %v44 = vld [vmem:[%s1 + $0x40] sm:$0xff]
  %v45 = vld [vmem:[%s1 + $0x48] sm:$0xff]
  %v46 = vld [vmem:[%s1 + $0x50] sm:$0xff]
  %v47 = vld [vmem:[%s1 + $0x58] sm:$0xff]
  %v48 = vld [vmem:[%s1 + $0x60] sm:$0xff]
  %v49 = vld [vmem:[%s1 + $0x68] sm:$0xff]
  %v50 = vld [vmem:[%s1 + $0x70] sm:$0xff]
  %v51 = vld [vmem:[%s1 + $0x78] sm:$0xff]
  %v52 = vld [vmem:[%s1 + $0x80] sm:$0xff]
  %v53 = vld [vmem:[%s1 + $0x88] sm:$0xff]
  %v54 = vld [vmem:[%s1 + $0x90] sm:$0xff]
  %v55 = vld [vmem:[%s1 + $0x98] sm:$0xff]
  %v56 = vld [vmem:[%s1 + $0xa0] sm:$0xff]
  %v57 = vld [vmem:[%s1 + $0xa8] sm:$0xff]
  %v58 = vld [vmem:[%s1 + $0xb0] sm:$0xff]
  %v59 = vld [vmem:[%s1 + $0xb8] sm:$0xff]
  %v60 = vld [vmem:[%s0 + $0xc0] sm:$0xff]
  %v61 = vld [vmem:[%s0 + $0xc8] sm:$0xff]
  %v62 = vld [vmem:[%s1 + $0xc0] sm:$0xff]
  %v63 = vld [vmem:[%s1 + $0xc8] sm:$0xff]
  %v64 = vld [vmem:[%s1 + $0xd0] sm:$0xff]
  %v65 = vld [vmem:[%s1 + $0xd8] sm:$0xff]
  %v66 = vld [vmem:[%s1 + $0xe0] sm:$0xff]
  %v67 = vld [vmem:[%s1 + $0xe8] sm:$0xff]
  %v68 = vld [vmem:[%s1 + $0xf0] sm:$0xff]
  %v69 = vld [vmem:[%s1 + $0xf8] sm:$0xff]
  %v70 = vld [vmem:[%s1 + $0x100] sm:$0xff]
  %v71 = vld [vmem:[%s1 + $0x108] sm:$0xff]
  %v72 = vld [vmem:[%s1 + $0x110] sm:$0xff]
  %v73 = vld [vmem:[%s1 + $0x118] sm:$0xff]
  %v74 = vld [vmem:[%s1 + $0x120] sm:$0xff]
  %v75 = vld [vmem:[%s1 + $0x128] sm:$0xff]
  %v76 = vld [vmem:[%s1 + $0x130] sm:$0xff]
  %v77 = vld [vmem:[%s1 + $0x138] sm:$0xff]
  %v78 = vld [vmem:[%s1 + $0x140] sm:$0xff]
  %v79 = vld [vmem:[%s1 + $0x148] sm:$0xff]
  %v80 = vld [vmem:[%s1 + $0x150] sm:$0xff]
  %v81 = vld [vmem:[%s1 + $0x158] sm:$0xff]
  %v82 = vld [vmem:[%s1 + $0x160] sm:$0xff]
  %v83 = vld [vmem:[%s1 + $0x168] sm:$0xff]
  %v84 = vld [vmem:[%s1 + $0x170] sm:$0xff]
  %v85 = vld [vmem:[%s1 + $0x178] sm:$0xff]
  %v110 = vunpack.c.l.b16 %v14
  %v111 = vunpack.c.h.b16 %v14
  %v112 = vunpack.c.l.b16 %v15
  %v113 = vunpack.c.h.b16 %v15
  %v114 = vunpack.c.l.b16 %v16
  %v115 = vunpack.c.h.b16 %v16
  %v116 = vunpack.c.l.b16 %v17
  %v117 = vunpack.c.h.b16 %v17
  %v118 = vunpack.c.l.b16 %v18
  %v119 = vunpack.c.h.b16 %v18
  %v120 = vunpack.c.l.b16 %v19
  %v121 = vunpack.c.h.b16 %v19
  %v122 = vunpack.c.l.b16 %v20
  %v123 = vunpack.c.h.b16 %v20
  %v124 = vunpack.c.l.b16 %v21
  %v125 = vunpack.c.h.b16 %v21
  %v126 = vunpack.c.l.b16 %v22
  %v127 = vunpack.c.h.b16 %v22
  %v128 = vunpack.c.l.b16 %v23
  %v129 = vunpack.c.h.b16 %v23
  %v130 = vunpack.c.l.b16 %v24
  %v131 = vunpack.c.h.b16 %v24
  %v132 = vunpack.c.l.b16 %v25
  %v133 = vunpack.c.h.b16 %v25
  %v134 = vunpack.c.l.b16 %v26
  %v135 = vunpack.c.h.b16 %v26
  %v136 = vunpack.c.l.b16 %v27
  %v137 = vunpack.c.h.b16 %v27
  %v138 = vunpack.c.l.b16 %v28
  %v139 = vunpack.c.h.b16 %v28
  %v140 = vunpack.c.l.b16 %v29
  %v141 = vunpack.c.h.b16 %v29
  %v142 = vunpack.c.l.b16 %v30
  %v143 = vunpack.c.h.b16 %v30
  %v144 = vunpack.c.l.b16 %v31
  %v145 = vunpack.c.h.b16 %v31
  %v146 = vunpack.c.l.b16 %v32
  %v147 = vunpack.c.h.b16 %v32
  %v148 = vunpack.c.l.b16 %v33
  %v149 = vunpack.c.h.b16 %v33
  %v150 = vunpack.c.l.b16 %v34
  %v151 = vunpack.c.h.b16 %v34
  %v152 = vunpack.c.l.b16 %v35
  %v153 = vunpack.c.h.b16 %v35
  %v154 = vunpack.c.l.b16 %v60
  %v155 = vunpack.c.h.b16 %v60
  %v156 = vunpack.c.l.b16 %v61
  %v157 = vunpack.c.h.b16 %v61
  %v158 = vpack.c.b16 %v112, %v110
  %v159 = vpack.c.b16 %v113, %v111
  %v160 = vpack.c.b16 %v116, %v114
  %v161 = vpack.c.b16 %v117, %v115
  %v162 = vpack.c.b16 %v120, %v118
  %v163 = vpack.c.b16 %v121, %v119
  %v164 = vpack.c.b16 %v124, %v122
  %v165 = vpack.c.b16 %v125, %v123
  %v166 = vpack.c.b16 %v128, %v126
  %v167 = vpack.c.b16 %v129, %v127
  %v168 = vpack.c.b16 %v132, %v130
  %v169 = vpack.c.b16 %v133, %v131
  %v170 = vpack.c.b16 %v136, %v134
  %v171 = vpack.c.b16 %v137, %v135
  %v172 = vpack.c.b16 %v140, %v138
  %v173 = vpack.c.b16 %v141, %v139
  %v174 = vpack.c.b16 %v144, %v142
  %v175 = vpack.c.b16 %v145, %v143
  %v176 = vpack.c.b16 %v148, %v146
  %v177 = vpack.c.b16 %v149, %v147
  %v178 = vpack.c.b16 %v152, %v150
  %v179 = vpack.c.b16 %v153, %v151
  %v180 = vpack.c.b16 %v156, %v154
  %v181 = vpack.c.b16 %v157, %v155
  %v218 = vunpack.c.l.b16 %v62
  %v219 = vunpack.c.h.b16 %v62
  %v220 = vunpack.c.l.b16 %v63
  %v221 = vunpack.c.h.b16 %v63
  %v222 = vunpack.c.l.b16 %v64
  %v223 = vunpack.c.h.b16 %v64
  %v224 = vunpack.c.l.b16 %v65
  %v225 = vunpack.c.h.b16 %v65
  %v226 = vunpack.c.l.b16 %v66
  %v227 = vunpack.c.h.b16 %v66
  %v228 = vunpack.c.l.b16 %v67
  %v229 = vunpack.c.h.b16 %v67
  %v230 = vunpack.c.l.b16 %v68
  %v231 = vunpack.c.h.b16 %v68
  %v232 = vunpack.c.l.b16 %v69
  %v233 = vunpack.c.h.b16 %v69
  %v234 = vunpack.c.l.b16 %v70
  %v235 = vunpack.c.h.b16 %v70
  %v236 = vunpack.c.l.b16 %v71
  %v237 = vunpack.c.h.b16 %v71
  %v238 = vunpack.c.l.b16 %v72
  %v239 = vunpack.c.h.b16 %v72
  %v240 = vunpack.c.l.b16 %v73
  %v241 = vunpack.c.h.b16 %v73
  %v242 = vunpack.c.l.b16 %v74
  %v243 = vunpack.c.h.b16 %v74
  %v244 = vunpack.c.l.b16 %v75
  %v245 = vunpack.c.h.b16 %v75
  %v246 = vunpack.c.l.b16 %v76
  %v247 = vunpack.c.h.b16 %v76
  %v248 = vunpack.c.l.b16 %v77
  %v249 = vunpack.c.h.b16 %v77
  %v250 = vunpack.c.l.b16 %v78
  %v251 = vunpack.c.h.b16 %v78
  %v252 = vunpack.c.l.b16 %v79
  %v253 = vunpack.c.h.b16 %v79
  %v254 = vunpack.c.l.b16 %v80
  %v255 = vunpack.c.h.b16 %v80
  %v256 = vunpack.c.l.b16 %v81
  %v257 = vunpack.c.h.b16 %v81
  %v258 = vunpack.c.l.b16 %v82
  %v259 = vunpack.c.h.b16 %v82
  %v260 = vunpack.c.l.b16 %v83
  %v261 = vunpack.c.h.b16 %v83
  %v262 = vunpack.c.l.b16 %v84
  %v263 = vunpack.c.h.b16 %v84
  %v264 = vunpack.c.l.b16 %v85
  %v265 = vunpack.c.h.b16 %v85
  %v266 = vpack.c.b16 %v220, %v218
  %v267 = vpack.c.b16 %v221, %v219
  %v268 = vpack.c.b16 %v224, %v222
  %v269 = vpack.c.b16 %v225, %v223
  %v270 = vpack.c.b16 %v228, %v226
  %v271 = vpack.c.b16 %v229, %v227
  %v272 = vpack.c.b16 %v232, %v230
  %v273 = vpack.c.b16 %v233, %v231
  %v274 = vpack.c.b16 %v236, %v234
  %v275 = vpack.c.b16 %v237, %v235
  %v276 = vpack.c.b16 %v240, %v238
  %v277 = vpack.c.b16 %v241, %v239
  %v278 = vpack.c.b16 %v244, %v242
  %v279 = vpack.c.b16 %v245, %v243
  %v280 = vpack.c.b16 %v248, %v246
  %v281 = vpack.c.b16 %v249, %v247
  %v282 = vpack.c.b16 %v252, %v250
  %v283 = vpack.c.b16 %v253, %v251
  %v284 = vpack.c.b16 %v256, %v254
  %v285 = vpack.c.b16 %v257, %v255
  %v286 = vpack.c.b16 %v260, %v258
  %v287 = vpack.c.b16 %v261, %v259
  %v288 = vpack.c.b16 %v264, %v262
  %v289 = vpack.c.b16 %v265, %v263
  %vm314 = vcmask 523264
  %v316 = vsel %vm314, %v159, 0
  %v319 = vsel %vm314, %v161, 0
  %v322 = vsel %vm314, %v163, 0
  %v325 = vsel %vm314, %v165, 0
  %v328 = vsel %vm314, %v167, 0
  %v331 = vsel %vm314, %v169, 0
  %v334 = vsel %vm314, %v171, 0
  %v337 = vsel %vm314, %v173, 0
  %v340 = vsel %vm314, %v175, 0
  %v343 = vsel %vm314, %v177, 0
  %v346 = vsel %vm314, %v179, 0
  %v349 = vsel %vm314, %v181, 0
  %351 = vmatpush.bf16.msra.mxu0 %v280
  %352 = vmatpush.bf16.msra.mxu0 %v278
  %353 = vmatpush.bf16.msra.mxu0 %v276
  %354 = vmatpush.bf16.msra.mxu0 %v274
  %355 = vmatpush.bf16.msra.mxu0 %v272
  %356 = vmatpush.bf16.msra.mxu0 %v270
  %357 = vmatpush.bf16.msra.mxu0 %v268
  %358 = vmatpush.bf16.msra.mxu0 %v266
  %359 = vmatmul.bf16.gmra.mxu0 %v158
  %v360 = vpop.f32.mrf.mxu0
  %v361 = vadd.f32 0.0, %v360
  %v362 = vpop.f32.mrf.mxu0
  %v363 = vadd.f32 0.0, %v362
  %364 = vmatmul.bf16.gmra.mxu0 %v160
  %v365 = vpop.f32.mrf.mxu0
  %v366 = vadd.f32 0.0, %v365
  %v367 = vpop.f32.mrf.mxu0
  %v368 = vadd.f32 0.0, %v367
  %369 = vmatmul.bf16.gmra.mxu0 %v162
  %v370 = vpop.f32.mrf.mxu0
  %v371 = vadd.f32 0.0, %v370
  %v372 = vpop.f32.mrf.mxu0
  %v373 = vadd.f32 0.0, %v372
  %374 = vmatmul.bf16.gmra.mxu0 %v164
  %v375 = vpop.f32.mrf.mxu0
  %v376 = vadd.f32 0.0, %v375
  %v377 = vpop.f32.mrf.mxu0
  %v378 = vadd.f32 0.0, %v377
  %379 = vmatmul.bf16.gmra.mxu0 %v166
  %v380 = vpop.f32.mrf.mxu0
  %v381 = vadd.f32 0.0, %v380
  %v382 = vpop.f32.mrf.mxu0
  %v383 = vadd.f32 0.0, %v382
  %384 = vmatmul.bf16.gmra.mxu0 %v168
  %v385 = vpop.f32.mrf.mxu0
  %v386 = vadd.f32 0.0, %v385
  %v387 = vpop.f32.mrf.mxu0
  %v388 = vadd.f32 0.0, %v387
  %389 = vmatmul.bf16.gmra.mxu0 %v170
  %v390 = vpop.f32.mrf.mxu0
  %v391 = vadd.f32 0.0, %v390
  %v392 = vpop.f32.mrf.mxu0
  %v393 = vadd.f32 0.0, %v392
  %394 = vmatmul.bf16.gmra.mxu0 %v172
  %v395 = vpop.f32.mrf.mxu0
  %v396 = vadd.f32 0.0, %v395
  %v397 = vpop.f32.mrf.mxu0
  %v398 = vadd.f32 0.0, %v397
  %399 = vmatmul.bf16.gmra.mxu0 %v174
  %v400 = vpop.f32.mrf.mxu0
  %v401 = vadd.f32 0.0, %v400
  %v402 = vpop.f32.mrf.mxu0
  %v403 = vadd.f32 0.0, %v402
  %404 = vmatmul.bf16.gmra.mxu0 %v176
  %v405 = vpop.f32.mrf.mxu0
  %v406 = vadd.f32 0.0, %v405
  %v407 = vpop.f32.mrf.mxu0
  %v408 = vadd.f32 0.0, %v407
  %409 = vmatmul.bf16.gmra.mxu0 %v178
  %v410 = vpop.f32.mrf.mxu0
  %v411 = vadd.f32 0.0, %v410
  %v412 = vpop.f32.mrf.mxu0
  %v413 = vadd.f32 0.0, %v412
  %414 = vmatmul.bf16.gmra.mxu0 %v180
  %v415 = vpop.f32.mrf.mxu0
  %v416 = vadd.f32 0.0, %v415
  %v417 = vpop.f32.mrf.mxu0
  %v418 = vadd.f32 0.0, %v417
  %419 = vdwg.mxu0
  %420 = vmatpush.bf16.msra.mxu0 0
  %421 = vmatpush.bf16.msra.mxu0 0
  %422 = vmatpush.bf16.msra.mxu0 0
  %423 = vmatpush.bf16.msra.mxu0 0
  %424 = vmatpush.bf16.msra.mxu0 %v288
  %425 = vmatpush.bf16.msra.mxu0 %v286
  %426 = vmatpush.bf16.msra.mxu0 %v284
  %427 = vmatpush.bf16.msra.mxu0 %v282
  %428 = vmatmul.bf16.gmra.mxu0 %v316
  %v429 = vpop.f32.mrf.mxu0
  %v430 = vadd.f32 %v361, %v429
  %v431 = vpop.f32.mrf.mxu0
  %v432 = vadd.f32 %v363, %v431
  %433 = vmatmul.bf16.gmra.mxu0 %v319
  %v434 = vpop.f32.mrf.mxu0
  %v435 = vadd.f32 %v366, %v434
  %v436 = vpop.f32.mrf.mxu0
  %v437 = vadd.f32 %v368, %v436
  %438 = vmatmul.bf16.gmra.mxu0 %v322
  %v439 = vpop.f32.mrf.mxu0
  %v440 = vadd.f32 %v371, %v439
  %v441 = vpop.f32.mrf.mxu0
  %v442 = vadd.f32 %v373, %v441
  %443 = vmatmul.bf16.gmra.mxu0 %v325
  %v444 = vpop.f32.mrf.mxu0
  %v445 = vadd.f32 %v376, %v444
  %v446 = vpop.f32.mrf.mxu0
  %v447 = vadd.f32 %v378, %v446
  %448 = vmatmul.bf16.gmra.mxu0 %v328
  %v449 = vpop.f32.mrf.mxu0
  %v450 = vadd.f32 %v381, %v449
  %v451 = vpop.f32.mrf.mxu0
  %v452 = vadd.f32 %v383, %v451
  %453 = vmatmul.bf16.gmra.mxu0 %v331
  %v454 = vpop.f32.mrf.mxu0
  %v455 = vadd.f32 %v386, %v454
  %v456 = vpop.f32.mrf.mxu0
  %v457 = vadd.f32 %v388, %v456
  %458 = vmatmul.bf16.gmra.mxu0 %v334
  %v459 = vpop.f32.mrf.mxu0
  %v460 = vadd.f32 %v391, %v459
  %v461 = vpop.f32.mrf.mxu0
  %v462 = vadd.f32 %v393, %v461
  %463 = vmatmul.bf16.gmra.mxu0 %v337
  %v464 = vpop.f32.mrf.mxu0
  %v465 = vadd.f32 %v396, %v464
  %v466 = vpop.f32.mrf.mxu0
  %v467 = vadd.f32 %v398, %v466
  %468 = vmatmul.bf16.gmra.mxu0 %v340
  %v469 = vpop.f32.mrf.mxu0
  %v470 = vadd.f32 %v401, %v469
  %v471 = vpop.f32.mrf.mxu0
  %v472 = vadd.f32 %v403, %v471
  %473 = vmatmul.bf16.gmra.mxu0 %v343
  %v474 = vpop.f32.mrf.mxu0
  %v475 = vadd.f32 %v406, %v474
  %v476 = vpop.f32.mrf.mxu0
  %v477 = vadd.f32 %v408, %v476
  %478 = vmatmul.bf16.gmra.mxu0 %v346
  %v479 = vpop.f32.mrf.mxu0
  %v480 = vadd.f32 %v411, %v479
  %v481 = vpop.f32.mrf.mxu0
  %v482 = vadd.f32 %v413, %v481
  %483 = vmatmul.bf16.gmra.mxu0 %v349
  %v484 = vpop.f32.mrf.mxu0
  %v485 = vadd.f32 %v416, %v484
  %v486 = vpop.f32.mrf.mxu0
  %v487 = vadd.f32 %v418, %v486
  %488 = vdwg.mxu0
  %489 = vmatpush.bf16.msra.mxu0 %v281
  %490 = vmatpush.bf16.msra.mxu0 %v279
  %491 = vmatpush.bf16.msra.mxu0 %v277
  %492 = vmatpush.bf16.msra.mxu0 %v275
  %493 = vmatpush.bf16.msra.mxu0 %v273
  %494 = vmatpush.bf16.msra.mxu0 %v271
  %495 = vmatpush.bf16.msra.mxu0 %v269
  %496 = vmatpush.bf16.msra.mxu0 %v267
  %497 = vmatmul.bf16.gmra.mxu0 %v158
  %v498 = vpop.f32.mrf.mxu0
  %v499 = vadd.f32 0.0, %v498
  %v500 = vpop.f32.mrf.mxu0
  %v501 = vadd.f32 0.0, %v500
  %502 = vmatmul.bf16.gmra.mxu0 %v160
  %v503 = vpop.f32.mrf.mxu0
  %v504 = vadd.f32 0.0, %v503
  %v505 = vpop.f32.mrf.mxu0
  %v506 = vadd.f32 0.0, %v505
  %507 = vmatmul.bf16.gmra.mxu0 %v162
  %v508 = vpop.f32.mrf.mxu0
  %v509 = vadd.f32 0.0, %v508
  %v510 = vpop.f32.mrf.mxu0
  %v511 = vadd.f32 0.0, %v510
  %512 = vmatmul.bf16.gmra.mxu0 %v164
  %v513 = vpop.f32.mrf.mxu0
  %v514 = vadd.f32 0.0, %v513
  %v515 = vpop.f32.mrf.mxu0
  %v516 = vadd.f32 0.0, %v515
  %517 = vmatmul.bf16.gmra.mxu0 %v166
  %v518 = vpop.f32.mrf.mxu0
  %v519 = vadd.f32 0.0, %v518
  %v520 = vpop.f32.mrf.mxu0
  %v521 = vadd.f32 0.0, %v520
  %522 = vmatmul.bf16.gmra.mxu0 %v168
  %v523 = vpop.f32.mrf.mxu0
  %v524 = vadd.f32 0.0, %v523
  %v525 = vpop.f32.mrf.mxu0
  %v526 = vadd.f32 0.0, %v525
  %527 = vmatmul.bf16.gmra.mxu0 %v170
  %v528 = vpop.f32.mrf.mxu0
  %v529 = vadd.f32 0.0, %v528
  %v530 = vpop.f32.mrf.mxu0
  %v531 = vadd.f32 0.0, %v530
  %532 = vmatmul.bf16.gmra.mxu0 %v172
  %v533 = vpop.f32.mrf.mxu0
  %v534 = vadd.f32 0.0, %v533
  %v535 = vpop.f32.mrf.mxu0
  %v536 = vadd.f32 0.0, %v535
  %537 = vmatmul.bf16.gmra.mxu0 %v174
  %v538 = vpop.f32.mrf.mxu0
  %v539 = vadd.f32 0.0, %v538
  %v540 = vpop.f32.mrf.mxu0
  %v541 = vadd.f32 0.0, %v540
  %542 = vmatmul.bf16.gmra.mxu0 %v176
  %v543 = vpop.f32.mrf.mxu0
  %v544 = vadd.f32 0.0, %v543
  %v545 = vpop.f32.mrf.mxu0
  %v546 = vadd.f32 0.0, %v545
  %547 = vmatmul.bf16.gmra.mxu0 %v178
  %v548 = vpop.f32.mrf.mxu0
  %v549 = vadd.f32 0.0, %v548
  %v550 = vpop.f32.mrf.mxu0
  %v551 = vadd.f32 0.0, %v550
  %552 = vmatmul.bf16.gmra.mxu0 %v180
  %v553 = vpop.f32.mrf.mxu0
  %v554 = vadd.f32 0.0, %v553
  %v555 = vpop.f32.mrf.mxu0
  %v556 = vadd.f32 0.0, %v555
  %557 = vdwg.mxu0
  %558 = vmatpush.bf16.msra.mxu0 0
  %559 = vmatpush.bf16.msra.mxu0 0
  %560 = vmatpush.bf16.msra.mxu0 0
  %561 = vmatpush.bf16.msra.mxu0 0
  %562 = vmatpush.bf16.msra.mxu0 %v289
  %563 = vmatpush.bf16.msra.mxu0 %v287
  %564 = vmatpush.bf16.msra.mxu0 %v285
  %565 = vmatpush.bf16.msra.mxu0 %v283
  %566 = vmatmul.bf16.gmra.mxu0 %v316
  %v567 = vpop.f32.mrf.mxu0
  %v568 = vadd.f32 %v499, %v567
  %v569 = vpop.f32.mrf.mxu0
  %v570 = vadd.f32 %v501, %v569
  %571 = vmatmul.bf16.gmra.mxu0 %v319
  %v572 = vpop.f32.mrf.mxu0
  %v573 = vadd.f32 %v504, %v572
  %v574 = vpop.f32.mrf.mxu0
  %v575 = vadd.f32 %v506, %v574
  %576 = vmatmul.bf16.gmra.mxu0 %v322
  %v577 = vpop.f32.mrf.mxu0
  %v578 = vadd.f32 %v509, %v577
  %v579 = vpop.f32.mrf.mxu0
  %v580 = vadd.f32 %v511, %v579
  %581 = vmatmul.bf16.gmra.mxu0 %v325
  %v582 = vpop.f32.mrf.mxu0
  %v583 = vadd.f32 %v514, %v582
  %v584 = vpop.f32.mrf.mxu0
  %v585 = vadd.f32 %v516, %v584
  %586 = vmatmul.bf16.gmra.mxu0 %v328
  %v587 = vpop.f32.mrf.mxu0
  %v588 = vadd.f32 %v519, %v587
  %v589 = vpop.f32.mrf.mxu0
  %v590 = vadd.f32 %v521, %v589
  %591 = vmatmul.bf16.gmra.mxu0 %v331
  %v592 = vpop.f32.mrf.mxu0
  %v593 = vadd.f32 %v524, %v592
  %v594 = vpop.f32.mrf.mxu0
  %v595 = vadd.f32 %v526, %v594
  %596 = vmatmul.bf16.gmra.mxu0 %v334
  %v597 = vpop.f32.mrf.mxu0
  %v598 = vadd.f32 %v529, %v597
  %v599 = vpop.f32.mrf.mxu0
  %v600 = vadd.f32 %v531, %v599
  %601 = vmatmul.bf16.gmra.mxu0 %v337
  %v602 = vpop.f32.mrf.mxu0
  %v603 = vadd.f32 %v534, %v602
  %v604 = vpop.f32.mrf.mxu0
  %v605 = vadd.f32 %v536, %v604
  %606 = vmatmul.bf16.gmra.mxu0 %v340
  %v607 = vpop.f32.mrf.mxu0
  %v608 = vadd.f32 %v539, %v607
  %v609 = vpop.f32.mrf.mxu0
  %v610 = vadd.f32 %v541, %v609
  %611 = vmatmul.bf16.gmra.mxu0 %v343
  %v612 = vpop.f32.mrf.mxu0
  %v613 = vadd.f32 %v544, %v612
  %v614 = vpop.f32.mrf.mxu0
  %v615 = vadd.f32 %v546, %v614
  %616 = vmatmul.bf16.gmra.mxu0 %v346
  %v617 = vpop.f32.mrf.mxu0
  %v618 = vadd.f32 %v549, %v617
  %v619 = vpop.f32.mrf.mxu0
  %v620 = vadd.f32 %v551, %v619
  %621 = vmatmul.bf16.gmra.mxu0 %v349
  %v622 = vpop.f32.mrf.mxu0
  %v623 = vadd.f32 %v554, %v622
  %v624 = vpop.f32.mrf.mxu0
  %v625 = vadd.f32 %v556, %v624
  %626 = vdwg.mxu0
  %v629 = vunpack.c.l.b16 %v12
  %v630 = vunpack.c.h.b16 %v12
  %v631 = vunpack.c.l.b16 %v13
  %v632 = vunpack.c.h.b16 %v13
  %v633 = vpack.c.b16 %v631, %v629
  %v634 = vpack.c.b16 %v632, %v630
  %v660 = vunpack.c.l.b16 %v36
  %v661 = vunpack.c.h.b16 %v36
  %v662 = vunpack.c.l.b16 %v37
  %v663 = vunpack.c.h.b16 %v37
  %v664 = vunpack.c.l.b16 %v38
  %v665 = vunpack.c.h.b16 %v38
  %v666 = vunpack.c.l.b16 %v39
  %v667 = vunpack.c.h.b16 %v39
  %v668 = vunpack.c.l.b16 %v40
  %v669 = vunpack.c.h.b16 %v40
  %v670 = vunpack.c.l.b16 %v41
  %v671 = vunpack.c.h.b16 %v41
  %v672 = vunpack.c.l.b16 %v42
  %v673 = vunpack.c.h.b16 %v42
  %v674 = vunpack.c.l.b16 %v43
  %v675 = vunpack.c.h.b16 %v43
  %v676 = vunpack.c.l.b16 %v44
  %v677 = vunpack.c.h.b16 %v44
  %v678 = vunpack.c.l.b16 %v45
  %v679 = vunpack.c.h.b16 %v45
  %v680 = vunpack.c.l.b16 %v46
  %v681 = vunpack.c.h.b16 %v46
  %v682 = vunpack.c.l.b16 %v47
  %v683 = vunpack.c.h.b16 %v47
  %v684 = vunpack.c.l.b16 %v48
  %v685 = vunpack.c.h.b16 %v48
  %v686 = vunpack.c.l.b16 %v49
  %v687 = vunpack.c.h.b16 %v49
  %v688 = vunpack.c.l.b16 %v50
  %v689 = vunpack.c.h.b16 %v50
  %v690 = vunpack.c.l.b16 %v51
  %v691 = vunpack.c.h.b16 %v51
  %v692 = vunpack.c.l.b16 %v52
  %v693 = vunpack.c.h.b16 %v52
  %v694 = vunpack.c.l.b16 %v53
  %v695 = vunpack.c.h.b16 %v53
  %v696 = vunpack.c.l.b16 %v54
  %v697 = vunpack.c.h.b16 %v54
  %v698 = vunpack.c.l.b16 %v55
  %v699 = vunpack.c.h.b16 %v55
  %v700 = vunpack.c.l.b16 %v56
  %v701 = vunpack.c.h.b16 %v56
  %v702 = vunpack.c.l.b16 %v57
  %v703 = vunpack.c.h.b16 %v57
  %v704 = vunpack.c.l.b16 %v58
  %v705 = vunpack.c.h.b16 %v58
  %v706 = vunpack.c.l.b16 %v59
  %v707 = vunpack.c.h.b16 %v59
  %v708 = vpack.c.b16 %v662, %v660
  %v709 = vpack.c.b16 %v663, %v661
  %v710 = vpack.c.b16 %v666, %v664
  %v711 = vpack.c.b16 %v667, %v665
  %v712 = vpack.c.b16 %v670, %v668
  %v713 = vpack.c.b16 %v671, %v669
  %v714 = vpack.c.b16 %v674, %v672
  %v715 = vpack.c.b16 %v675, %v673
  %v716 = vpack.c.b16 %v678, %v676
  %v717 = vpack.c.b16 %v679, %v677
  %v718 = vpack.c.b16 %v682, %v680
  %v719 = vpack.c.b16 %v683, %v681
  %v720 = vpack.c.b16 %v686, %v684
  %v721 = vpack.c.b16 %v687, %v685
  %v722 = vpack.c.b16 %v690, %v688
  %v723 = vpack.c.b16 %v691, %v689
  %v724 = vpack.c.b16 %v694, %v692
  %v725 = vpack.c.b16 %v695, %v693
  %v726 = vpack.c.b16 %v698, %v696
  %v727 = vpack.c.b16 %v699, %v697
  %v728 = vpack.c.b16 %v702, %v700
  %v729 = vpack.c.b16 %v703, %v701
  %v730 = vpack.c.b16 %v706, %v704
  %v731 = vpack.c.b16 %v707, %v705
  %v757 = vsel %vm314, %v634, 0
  %759 = vmatpush.bf16.msra.mxu0 %v722
  %760 = vmatpush.bf16.msra.mxu0 %v720
  %761 = vmatpush.bf16.msra.mxu0 %v718
  %762 = vmatpush.bf16.msra.mxu0 %v716
  %763 = vmatpush.bf16.msra.mxu0 %v714
  %764 = vmatpush.bf16.msra.mxu0 %v712
  %765 = vmatpush.bf16.msra.mxu0 %v710
  %766 = vmatpush.bf16.msra.mxu0 %v708
  %767 = vmatmul.bf16.gmra.mxu0 %v633
  %v768 = vpop.f32.mrf.mxu0
  %v769 = vadd.f32 %v430, %v768
  %v770 = vpop.f32.mrf.mxu0
  %v771 = vadd.f32 %v432, %v770
  %772 = vmatmul.bf16.gmra.mxu0 %v158
  %v773 = vpop.f32.mrf.mxu0
  %v774 = vadd.f32 %v435, %v773
  %v775 = vpop.f32.mrf.mxu0
  %v776 = vadd.f32 %v437, %v775
  %777 = vmatmul.bf16.gmra.mxu0 %v160
  %v778 = vpop.f32.mrf.mxu0
  %v779 = vadd.f32 %v440, %v778
  %v780 = vpop.f32.mrf.mxu0
  %v781 = vadd.f32 %v442, %v780
  %782 = vmatmul.bf16.gmra.mxu0 %v162
  %v783 = vpop.f32.mrf.mxu0
  %v784 = vadd.f32 %v445, %v783
  %v785 = vpop.f32.mrf.mxu0
  %v786 = vadd.f32 %v447, %v785
  %787 = vmatmul.bf16.gmra.mxu0 %v164
  %v788 = vpop.f32.mrf.mxu0
  %v789 = vadd.f32 %v450, %v788
  %v790 = vpop.f32.mrf.mxu0
  %v791 = vadd.f32 %v452, %v790
  %792 = vmatmul.bf16.gmra.mxu0 %v166
  %v793 = vpop.f32.mrf.mxu0
  %v794 = vadd.f32 %v455, %v793
  %v795 = vpop.f32.mrf.mxu0
  %v796 = vadd.f32 %v457, %v795
  %797 = vmatmul.bf16.gmra.mxu0 %v168
  %v798 = vpop.f32.mrf.mxu0
  %v799 = vadd.f32 %v460, %v798
  %v800 = vpop.f32.mrf.mxu0
  %v801 = vadd.f32 %v462, %v800
  %802 = vmatmul.bf16.gmra.mxu0 %v170
  %v803 = vpop.f32.mrf.mxu0
  %v804 = vadd.f32 %v465, %v803
  %v805 = vpop.f32.mrf.mxu0
  %v806 = vadd.f32 %v467, %v805
  %807 = vmatmul.bf16.gmra.mxu0 %v172
  %v808 = vpop.f32.mrf.mxu0
  %v809 = vadd.f32 %v470, %v808
  %v810 = vpop.f32.mrf.mxu0
  %v811 = vadd.f32 %v472, %v810
  %812 = vmatmul.bf16.gmra.mxu0 %v174
  %v813 = vpop.f32.mrf.mxu0
  %v814 = vadd.f32 %v475, %v813
  %v815 = vpop.f32.mrf.mxu0
  %v816 = vadd.f32 %v477, %v815
  %817 = vmatmul.bf16.gmra.mxu0 %v176
  %v818 = vpop.f32.mrf.mxu0
  %v819 = vadd.f32 %v480, %v818
  %v820 = vpop.f32.mrf.mxu0
  %v821 = vadd.f32 %v482, %v820
  %822 = vmatmul.bf16.gmra.mxu0 %v178
  %v823 = vpop.f32.mrf.mxu0
  %v824 = vadd.f32 %v485, %v823
  %v825 = vpop.f32.mrf.mxu0
  %v826 = vadd.f32 %v487, %v825
  %827 = vdwg.mxu0
  %828 = vmatpush.bf16.msra.mxu0 0
  %829 = vmatpush.bf16.msra.mxu0 0
  %830 = vmatpush.bf16.msra.mxu0 0
  %831 = vmatpush.bf16.msra.mxu0 0
  %832 = vmatpush.bf16.msra.mxu0 %v730
  %833 = vmatpush.bf16.msra.mxu0 %v728
  %834 = vmatpush.bf16.msra.mxu0 %v726
  %835 = vmatpush.bf16.msra.mxu0 %v724
  %836 = vmatmul.bf16.gmra.mxu0 %v757
  %v837 = vpop.f32.mrf.mxu0
  %v838 = vadd.f32 %v769, %v837
  %v839 = vpop.f32.mrf.mxu0
  %v840 = vadd.f32 %v771, %v839
  %841 = vmatmul.bf16.gmra.mxu0 %v316
  %v842 = vpop.f32.mrf.mxu0
  %v843 = vadd.f32 %v774, %v842
  %v844 = vpop.f32.mrf.mxu0
  %v845 = vadd.f32 %v776, %v844
  %846 = vmatmul.bf16.gmra.mxu0 %v319
  %v847 = vpop.f32.mrf.mxu0
  %v848 = vadd.f32 %v779, %v847
  %v849 = vpop.f32.mrf.mxu0
  %v850 = vadd.f32 %v781, %v849
  %851 = vmatmul.bf16.gmra.mxu0 %v322
  %v852 = vpop.f32.mrf.mxu0
  %v853 = vadd.f32 %v784, %v852
  %v854 = vpop.f32.mrf.mxu0
  %v855 = vadd.f32 %v786, %v854
  %856 = vmatmul.bf16.gmra.mxu0 %v325
  %v857 = vpop.f32.mrf.mxu0
  %v858 = vadd.f32 %v789, %v857
  %v859 = vpop.f32.mrf.mxu0
  %v860 = vadd.f32 %v791, %v859
  %861 = vmatmul.bf16.gmra.mxu0 %v328
  %v862 = vpop.f32.mrf.mxu0
  %v863 = vadd.f32 %v794, %v862
  %v864 = vpop.f32.mrf.mxu0
  %v865 = vadd.f32 %v796, %v864
  %866 = vmatmul.bf16.gmra.mxu0 %v331
  %v867 = vpop.f32.mrf.mxu0
  %v868 = vadd.f32 %v799, %v867
  %v869 = vpop.f32.mrf.mxu0
  %v870 = vadd.f32 %v801, %v869
  %871 = vmatmul.bf16.gmra.mxu0 %v334
  %v872 = vpop.f32.mrf.mxu0
  %v873 = vadd.f32 %v804, %v872
  %v874 = vpop.f32.mrf.mxu0
  %v875 = vadd.f32 %v806, %v874
  %876 = vmatmul.bf16.gmra.mxu0 %v337
  %v877 = vpop.f32.mrf.mxu0
  %v878 = vadd.f32 %v809, %v877
  %v879 = vpop.f32.mrf.mxu0
  %v880 = vadd.f32 %v811, %v879
  %881 = vmatmul.bf16.gmra.mxu0 %v340
  %v882 = vpop.f32.mrf.mxu0
  %v883 = vadd.f32 %v814, %v882
  %v884 = vpop.f32.mrf.mxu0
  %v885 = vadd.f32 %v816, %v884
  %886 = vmatmul.bf16.gmra.mxu0 %v343
  %v887 = vpop.f32.mrf.mxu0
  %v888 = vadd.f32 %v819, %v887
  %v889 = vpop.f32.mrf.mxu0
  %v890 = vadd.f32 %v821, %v889
  %891 = vmatmul.bf16.gmra.mxu0 %v346
  %v892 = vpop.f32.mrf.mxu0
  %v893 = vadd.f32 %v824, %v892
  %v894 = vpop.f32.mrf.mxu0
  %v895 = vadd.f32 %v826, %v894
  %896 = vdwg.mxu0
  %897 = vmatpush.bf16.msra.mxu0 %v723
  %898 = vmatpush.bf16.msra.mxu0 %v721
  %899 = vmatpush.bf16.msra.mxu0 %v719
  %900 = vmatpush.bf16.msra.mxu0 %v717
  %901 = vmatpush.bf16.msra.mxu0 %v715
  %902 = vmatpush.bf16.msra.mxu0 %v713
  %903 = vmatpush.bf16.msra.mxu0 %v711
  %904 = vmatpush.bf16.msra.mxu0 %v709
  %905 = vmatmul.bf16.gmra.mxu0 %v633
  %v906 = vpop.f32.mrf.mxu0
  %v907 = vadd.f32 %v568, %v906
  %v908 = vpop.f32.mrf.mxu0
  %v909 = vadd.f32 %v570, %v908
  %910 = vmatmul.bf16.gmra.mxu0 %v158
  %v911 = vpop.f32.mrf.mxu0
  %v912 = vadd.f32 %v573, %v911
  %v913 = vpop.f32.mrf.mxu0
  %v914 = vadd.f32 %v575, %v913
  %915 = vmatmul.bf16.gmra.mxu0 %v160
  %v916 = vpop.f32.mrf.mxu0
  %v917 = vadd.f32 %v578, %v916
  %v918 = vpop.f32.mrf.mxu0
  %v919 = vadd.f32 %v580, %v918
  %920 = vmatmul.bf16.gmra.mxu0 %v162
  %v921 = vpop.f32.mrf.mxu0
  %v922 = vadd.f32 %v583, %v921
  %v923 = vpop.f32.mrf.mxu0
  %v924 = vadd.f32 %v585, %v923
  %925 = vmatmul.bf16.gmra.mxu0 %v164
  %v926 = vpop.f32.mrf.mxu0
  %v927 = vadd.f32 %v588, %v926
  %v928 = vpop.f32.mrf.mxu0
  %v929 = vadd.f32 %v590, %v928
  %930 = vmatmul.bf16.gmra.mxu0 %v166
  %v931 = vpop.f32.mrf.mxu0
  %v932 = vadd.f32 %v593, %v931
  %v933 = vpop.f32.mrf.mxu0
  %v934 = vadd.f32 %v595, %v933
  %935 = vmatmul.bf16.gmra.mxu0 %v168
  %v936 = vpop.f32.mrf.mxu0
  %v937 = vadd.f32 %v598, %v936
  %v938 = vpop.f32.mrf.mxu0
  %v939 = vadd.f32 %v600, %v938
  %940 = vmatmul.bf16.gmra.mxu0 %v170
  %v941 = vpop.f32.mrf.mxu0
  %v942 = vadd.f32 %v603, %v941
  %v943 = vpop.f32.mrf.mxu0
  %v944 = vadd.f32 %v605, %v943
  %945 = vmatmul.bf16.gmra.mxu0 %v172
  %v946 = vpop.f32.mrf.mxu0
  %v947 = vadd.f32 %v608, %v946
  %v948 = vpop.f32.mrf.mxu0
  %v949 = vadd.f32 %v610, %v948
  %950 = vmatmul.bf16.gmra.mxu0 %v174
  %v951 = vpop.f32.mrf.mxu0
  %v952 = vadd.f32 %v613, %v951
  %v953 = vpop.f32.mrf.mxu0
  %v954 = vadd.f32 %v615, %v953
  %955 = vmatmul.bf16.gmra.mxu0 %v176
  %v956 = vpop.f32.mrf.mxu0
  %v957 = vadd.f32 %v618, %v956
  %v958 = vpop.f32.mrf.mxu0
  %v959 = vadd.f32 %v620, %v958
  %960 = vmatmul.bf16.gmra.mxu0 %v178
  %v961 = vpop.f32.mrf.mxu0
  %v962 = vadd.f32 %v623, %v961
  %v963 = vpop.f32.mrf.mxu0
  %v964 = vadd.f32 %v625, %v963
  %965 = vdwg.mxu0
  %966 = vmatpush.bf16.msra.mxu0 0
  %967 = vmatpush.bf16.msra.mxu0 0
  %968 = vmatpush.bf16.msra.mxu0 0
  %969 = vmatpush.bf16.msra.mxu0 0
  %970 = vmatpush.bf16.msra.mxu0 %v731
  %971 = vmatpush.bf16.msra.mxu0 %v729
  %972 = vmatpush.bf16.msra.mxu0 %v727
  %973 = vmatpush.bf16.msra.mxu0 %v725
  %974 = vmatmul.bf16.gmra.mxu0 %v757
  %v975 = vpop.f32.mrf.mxu0
  %v976 = vadd.f32 %v907, %v975
  %v977 = vpop.f32.mrf.mxu0
  %v978 = vadd.f32 %v909, %v977
  %979 = vmatmul.bf16.gmra.mxu0 %v316
  %v980 = vpop.f32.mrf.mxu0
  %v981 = vadd.f32 %v912, %v980
  %v982 = vpop.f32.mrf.mxu0
  %v983 = vadd.f32 %v914, %v982
  %984 = vmatmul.bf16.gmra.mxu0 %v319
  %v985 = vpop.f32.mrf.mxu0
  %v986 = vadd.f32 %v917, %v985
  %v987 = vpop.f32.mrf.mxu0
  %v988 = vadd.f32 %v919, %v987
  %989 = vmatmul.bf16.gmra.mxu0 %v322
  %v990 = vpop.f32.mrf.mxu0
  %v991 = vadd.f32 %v922, %v990
  %v992 = vpop.f32.mrf.mxu0
  %v993 = vadd.f32 %v924, %v992
  %994 = vmatmul.bf16.gmra.mxu0 %v325
  %v995 = vpop.f32.mrf.mxu0
  %v996 = vadd.f32 %v927, %v995
  %v997 = vpop.f32.mrf.mxu0
  %v998 = vadd.f32 %v929, %v997
  %999 = vmatmul.bf16.gmra.mxu0 %v328
  %v1000 = vpop.f32.mrf.mxu0
  %v1001 = vadd.f32 %v932, %v1000
  %v1002 = vpop.f32.mrf.mxu0
  %v1003 = vadd.f32 %v934, %v1002
  %1004 = vmatmul.bf16.gmra.mxu0 %v331
  %v1005 = vpop.f32.mrf.mxu0
  %v1006 = vadd.f32 %v937, %v1005
  %v1007 = vpop.f32.mrf.mxu0
  %v1008 = vadd.f32 %v939, %v1007
  %1009 = vmatmul.bf16.gmra.mxu0 %v334
  %v1010 = vpop.f32.mrf.mxu0
  %v1011 = vadd.f32 %v942, %v1010
  %v1012 = vpop.f32.mrf.mxu0
  %v1013 = vadd.f32 %v944, %v1012
  %1014 = vmatmul.bf16.gmra.mxu0 %v337
  %v1015 = vpop.f32.mrf.mxu0
  %v1016 = vadd.f32 %v947, %v1015
  %v1017 = vpop.f32.mrf.mxu0
  %v1018 = vadd.f32 %v949, %v1017
  %1019 = vmatmul.bf16.gmra.mxu0 %v340
  %v1020 = vpop.f32.mrf.mxu0
  %v1021 = vadd.f32 %v952, %v1020
  %v1022 = vpop.f32.mrf.mxu0
  %v1023 = vadd.f32 %v954, %v1022
  %1024 = vmatmul.bf16.gmra.mxu0 %v343
  %v1025 = vpop.f32.mrf.mxu0
  %v1026 = vadd.f32 %v957, %v1025
  %v1027 = vpop.f32.mrf.mxu0
  %v1028 = vadd.f32 %v959, %v1027
  %1029 = vmatmul.bf16.gmra.mxu0 %v346
  %v1030 = vpop.f32.mrf.mxu0
  %v1031 = vadd.f32 %v962, %v1030
  %v1032 = vpop.f32.mrf.mxu0
  %v1033 = vadd.f32 %v964, %v1032
  %1034 = vdwg.mxu0
  %v1035 = vld [vmem:[%s0 + $0x20] sm:$0xff]
  %v1036 = vld [vmem:[%s0 + $0x28] sm:$0xff]
  %v1037 = vld [vmem:[%s0 + $0x30] sm:$0xff]
  %v1038 = vld [vmem:[%s0 + $0x38] sm:$0xff]
  %v1039 = vld [vmem:[%s0 + $0x40] sm:$0xff]
  %v1040 = vld [vmem:[%s0 + $0x48] sm:$0xff]
  %v1041 = vld [vmem:[%s0 + $0x50] sm:$0xff]
  %v1042 = vld [vmem:[%s0 + $0x58] sm:$0xff]
  %v1043 = vld [vmem:[%s0 + $0x60] sm:$0xff]
  %v1044 = vld [vmem:[%s0 + $0x68] sm:$0xff]
  %v1045 = vld [vmem:[%s0 + $0x70] sm:$0xff]
  %v1046 = vld [vmem:[%s0 + $0x78] sm:$0xff]
  %v1047 = vld [vmem:[%s0 + $0x80] sm:$0xff]
  %v1048 = vld [vmem:[%s0 + $0x88] sm:$0xff]
  %v1049 = vld [vmem:[%s0 + $0x90] sm:$0xff]
  %v1050 = vld [vmem:[%s0 + $0x98] sm:$0xff]
  %v1051 = vld [vmem:[%s0 + $0xa0] sm:$0xff]
  %v1052 = vld [vmem:[%s0 + $0xa8] sm:$0xff]
  %v1053 = vld [vmem:[%s0 + $0xb0] sm:$0xff]
  %v1054 = vld [vmem:[%s0 + $0xb8] sm:$0xff]
  %v1055 = vld [vmem:[%s0 + $0xc0] sm:$0xff]
  %v1056 = vld [vmem:[%s0 + $0xc8] sm:$0xff]
  %v1057 = vld [vmem:[%s0 + $0xd0] sm:$0xff]
  %v1058 = vld [vmem:[%s0 + $0xd8] sm:$0xff]
  %v1059 = vld [vmem:[%s1 + $0x180] sm:$0xff]
  %v1060 = vld [vmem:[%s1 + $0x188] sm:$0xff]
  %v1061 = vld [vmem:[%s1 + $0x190] sm:$0xff]
  %v1062 = vld [vmem:[%s1 + $0x198] sm:$0xff]
  %v1063 = vld [vmem:[%s1 + $0x1a0] sm:$0xff]
  %v1064 = vld [vmem:[%s1 + $0x1a8] sm:$0xff]
  %v1065 = vld [vmem:[%s1 + $0x1b0] sm:$0xff]
  %v1066 = vld [vmem:[%s1 + $0x1b8] sm:$0xff]
  %v1067 = vld [vmem:[%s1 + $0x1c0] sm:$0xff]
  %v1068 = vld [vmem:[%s1 + $0x1c8] sm:$0xff]
  %v1069 = vld [vmem:[%s1 + $0x1d0] sm:$0xff]
  %v1070 = vld [vmem:[%s1 + $0x1d8] sm:$0xff]
  %v1071 = vld [vmem:[%s1 + $0x1e0] sm:$0xff]
  %v1072 = vld [vmem:[%s1 + $0x1e8] sm:$0xff]
  %v1073 = vld [vmem:[%s1 + $0x1f0] sm:$0xff]
  %v1074 = vld [vmem:[%s1 + $0x1f8] sm:$0xff]
  %v1075 = vld [vmem:[%s1 + $0x200] sm:$0xff]
  %v1076 = vld [vmem:[%s1 + $0x208] sm:$0xff]
  %v1077 = vld [vmem:[%s1 + $0x210] sm:$0xff]
  %v1078 = vld [vmem:[%s1 + $0x218] sm:$0xff]
  %v1079 = vld [vmem:[%s1 + $0x220] sm:$0xff]
  %v1080 = vld [vmem:[%s1 + $0x228] sm:$0xff]
  %v1081 = vld [vmem:[%s1 + $0x230] sm:$0xff]
  %v1082 = vld [vmem:[%s1 + $0x238] sm:$0xff]
  %v1107 = vunpack.c.l.b16 %v1035
  %v1108 = vunpack.c.h.b16 %v1035
  %v1109 = vunpack.c.l.b16 %v1036
  %v1110 = vunpack.c.h.b16 %v1036
  %v1111 = vunpack.c.l.b16 %v1037
  %v1112 = vunpack.c.h.b16 %v1037
  %v1113 = vunpack.c.l.b16 %v1038
  %v1114 = vunpack.c.h.b16 %v1038
  %v1115 = vunpack.c.l.b16 %v1039
  %v1116 = vunpack.c.h.b16 %v1039
  %v1117 = vunpack.c.l.b16 %v1040
  %v1118 = vunpack.c.h.b16 %v1040
  %v1119 = vunpack.c.l.b16 %v1041
  %v1120 = vunpack.c.h.b16 %v1041
  %v1121 = vunpack.c.l.b16 %v1042
  %v1122 = vunpack.c.h.b16 %v1042
  %v1123 = vunpack.c.l.b16 %v1043
  %v1124 = vunpack.c.h.b16 %v1043
  %v1125 = vunpack.c.l.b16 %v1044
  %v1126 = vunpack.c.h.b16 %v1044
  %v1127 = vunpack.c.l.b16 %v1045
  %v1128 = vunpack.c.h.b16 %v1045
  %v1129 = vunpack.c.l.b16 %v1046
  %v1130 = vunpack.c.h.b16 %v1046
  %v1131 = vunpack.c.l.b16 %v1047
  %v1132 = vunpack.c.h.b16 %v1047
  %v1133 = vunpack.c.l.b16 %v1048
  %v1134 = vunpack.c.h.b16 %v1048
  %v1135 = vunpack.c.l.b16 %v1049
  %v1136 = vunpack.c.h.b16 %v1049
  %v1137 = vunpack.c.l.b16 %v1050
  %v1138 = vunpack.c.h.b16 %v1050
  %v1139 = vunpack.c.l.b16 %v1051
  %v1140 = vunpack.c.h.b16 %v1051
  %v1141 = vunpack.c.l.b16 %v1052
  %v1142 = vunpack.c.h.b16 %v1052
  %v1143 = vunpack.c.l.b16 %v1053
  %v1144 = vunpack.c.h.b16 %v1053
  %v1145 = vunpack.c.l.b16 %v1054
  %v1146 = vunpack.c.h.b16 %v1054
  %v1147 = vunpack.c.l.b16 %v1055
  %v1148 = vunpack.c.h.b16 %v1055
  %v1149 = vunpack.c.l.b16 %v1056
  %v1150 = vunpack.c.h.b16 %v1056
  %v1151 = vunpack.c.l.b16 %v1057
  %v1152 = vunpack.c.h.b16 %v1057
  %v1153 = vunpack.c.l.b16 %v1058
  %v1154 = vunpack.c.h.b16 %v1058
  %v1155 = vpack.c.b16 %v1109, %v1107
  %v1156 = vpack.c.b16 %v1110, %v1108
  %v1157 = vpack.c.b16 %v1113, %v1111
  %v1158 = vpack.c.b16 %v1114, %v1112
  %v1159 = vpack.c.b16 %v1117, %v1115
  %v1160 = vpack.c.b16 %v1118, %v1116
  %v1161 = vpack.c.b16 %v1121, %v1119
  %v1162 = vpack.c.b16 %v1122, %v1120
  %v1163 = vpack.c.b16 %v1125, %v1123
  %v1164 = vpack.c.b16 %v1126, %v1124
  %v1165 = vpack.c.b16 %v1129, %v1127
  %v1166 = vpack.c.b16 %v1130, %v1128
  %v1167 = vpack.c.b16 %v1133, %v1131
  %v1168 = vpack.c.b16 %v1134, %v1132
  %v1169 = vpack.c.b16 %v1137, %v1135
  %v1170 = vpack.c.b16 %v1138, %v1136
  %v1171 = vpack.c.b16 %v1141, %v1139
  %v1172 = vpack.c.b16 %v1142, %v1140
  %v1173 = vpack.c.b16 %v1145, %v1143
  %v1174 = vpack.c.b16 %v1146, %v1144
  %v1175 = vpack.c.b16 %v1149, %v1147
  %v1176 = vpack.c.b16 %v1150, %v1148
  %v1177 = vpack.c.b16 %v1153, %v1151
  %v1178 = vpack.c.b16 %v1154, %v1152
  %v1215 = vunpack.c.l.b16 %v1059
  %v1216 = vunpack.c.h.b16 %v1059
  %v1217 = vunpack.c.l.b16 %v1060
  %v1218 = vunpack.c.h.b16 %v1060
  %v1219 = vunpack.c.l.b16 %v1061
  %v1220 = vunpack.c.h.b16 %v1061
  %v1221 = vunpack.c.l.b16 %v1062
  %v1222 = vunpack.c.h.b16 %v1062
  %v1223 = vunpack.c.l.b16 %v1063
  %v1224 = vunpack.c.h.b16 %v1063
  %v1225 = vunpack.c.l.b16 %v1064
  %v1226 = vunpack.c.h.b16 %v1064
  %v1227 = vunpack.c.l.b16 %v1065
  %v1228 = vunpack.c.h.b16 %v1065
  %v1229 = vunpack.c.l.b16 %v1066
  %v1230 = vunpack.c.h.b16 %v1066
  %v1231 = vunpack.c.l.b16 %v1067
  %v1232 = vunpack.c.h.b16 %v1067
  %v1233 = vunpack.c.l.b16 %v1068
  %v1234 = vunpack.c.h.b16 %v1068
  %v1235 = vunpack.c.l.b16 %v1069
  %v1236 = vunpack.c.h.b16 %v1069
  %v1237 = vunpack.c.l.b16 %v1070
  %v1238 = vunpack.c.h.b16 %v1070
  %v1239 = vunpack.c.l.b16 %v1071
  %v1240 = vunpack.c.h.b16 %v1071
  %v1241 = vunpack.c.l.b16 %v1072
  %v1242 = vunpack.c.h.b16 %v1072
  %v1243 = vunpack.c.l.b16 %v1073
  %v1244 = vunpack.c.h.b16 %v1073
  %v1245 = vunpack.c.l.b16 %v1074
  %v1246 = vunpack.c.h.b16 %v1074
  %v1247 = vunpack.c.l.b16 %v1075
  %v1248 = vunpack.c.h.b16 %v1075
  %v1249 = vunpack.c.l.b16 %v1076
  %v1250 = vunpack.c.h.b16 %v1076
  %v1251 = vunpack.c.l.b16 %v1077
  %v1252 = vunpack.c.h.b16 %v1077
  %v1253 = vunpack.c.l.b16 %v1078
  %v1254 = vunpack.c.h.b16 %v1078
  %v1255 = vunpack.c.l.b16 %v1079
  %v1256 = vunpack.c.h.b16 %v1079
  %v1257 = vunpack.c.l.b16 %v1080
  %v1258 = vunpack.c.h.b16 %v1080
  %v1259 = vunpack.c.l.b16 %v1081
  %v1260 = vunpack.c.h.b16 %v1081
  %v1261 = vunpack.c.l.b16 %v1082
  %v1262 = vunpack.c.h.b16 %v1082
  %v1263 = vpack.c.b16 %v1217, %v1215
  %v1264 = vpack.c.b16 %v1218, %v1216
  %v1265 = vpack.c.b16 %v1221, %v1219
  %v1266 = vpack.c.b16 %v1222, %v1220
  %v1267 = vpack.c.b16 %v1225, %v1223
  %v1268 = vpack.c.b16 %v1226, %v1224
  %v1269 = vpack.c.b16 %v1229, %v1227
  %v1270 = vpack.c.b16 %v1230, %v1228
  %v1271 = vpack.c.b16 %v1233, %v1231
  %v1272 = vpack.c.b16 %v1234, %v1232
  %v1273 = vpack.c.b16 %v1237, %v1235
  %v1274 = vpack.c.b16 %v1238, %v1236
  %v1275 = vpack.c.b16 %v1241, %v1239
  %v1276 = vpack.c.b16 %v1242, %v1240
  %v1277 = vpack.c.b16 %v1245, %v1243
  %v1278 = vpack.c.b16 %v1246, %v1244
  %v1279 = vpack.c.b16 %v1249, %v1247
  %v1280 = vpack.c.b16 %v1250, %v1248
  %v1281 = vpack.c.b16 %v1253, %v1251
  %v1282 = vpack.c.b16 %v1254, %v1252
  %v1283 = vpack.c.b16 %v1257, %v1255
  %v1284 = vpack.c.b16 %v1258, %v1256
  %v1285 = vpack.c.b16 %v1261, %v1259
  %v1286 = vpack.c.b16 %v1262, %v1260
  %v1312 = vsel %vm314, %v1156, 0
  %v1315 = vsel %vm314, %v1158, 0
  %v1318 = vsel %vm314, %v1160, 0
  %v1321 = vsel %vm314, %v1162, 0
  %v1324 = vsel %vm314, %v1164, 0
  %v1327 = vsel %vm314, %v1166, 0
  %v1330 = vsel %vm314, %v1168, 0
  %v1333 = vsel %vm314, %v1170, 0
  %v1336 = vsel %vm314, %v1172, 0
  %v1339 = vsel %vm314, %v1174, 0
  %v1342 = vsel %vm314, %v1176, 0
  %v1345 = vsel %vm314, %v1178, 0
  %1347 = vmatpush.bf16.msra.mxu0 %v1277
  %1348 = vmatpush.bf16.msra.mxu0 %v1275
  %1349 = vmatpush.bf16.msra.mxu0 %v1273
  %1350 = vmatpush.bf16.msra.mxu0 %v1271
  %1351 = vmatpush.bf16.msra.mxu0 %v1269
  %1352 = vmatpush.bf16.msra.mxu0 %v1267
  %1353 = vmatpush.bf16.msra.mxu0 %v1265
  %1354 = vmatpush.bf16.msra.mxu0 %v1263
  %1355 = vmatmul.bf16.gmra.mxu0 %v1155
  %v1356 = vpop.f32.mrf.mxu0
  %v1357 = vadd.f32 0.0, %v1356
  %v1358 = vpop.f32.mrf.mxu0
  %v1359 = vadd.f32 0.0, %v1358
  %1360 = vmatmul.bf16.gmra.mxu0 %v1157
  %v1361 = vpop.f32.mrf.mxu0
  %v1362 = vadd.f32 0.0, %v1361
  %v1363 = vpop.f32.mrf.mxu0
  %v1364 = vadd.f32 0.0, %v1363
  %1365 = vmatmul.bf16.gmra.mxu0 %v1159
  %v1366 = vpop.f32.mrf.mxu0
  %v1367 = vadd.f32 0.0, %v1366
  %v1368 = vpop.f32.mrf.mxu0
  %v1369 = vadd.f32 0.0, %v1368
  %1370 = vmatmul.bf16.gmra.mxu0 %v1161
  %v1371 = vpop.f32.mrf.mxu0
  %v1372 = vadd.f32 0.0, %v1371
  %v1373 = vpop.f32.mrf.mxu0
  %v1374 = vadd.f32 0.0, %v1373
  %1375 = vmatmul.bf16.gmra.mxu0 %v1163
  %v1376 = vpop.f32.mrf.mxu0
  %v1377 = vadd.f32 0.0, %v1376
  %v1378 = vpop.f32.mrf.mxu0
  %v1379 = vadd.f32 0.0, %v1378
  %1380 = vmatmul.bf16.gmra.mxu0 %v1165
  %v1381 = vpop.f32.mrf.mxu0
  %v1382 = vadd.f32 0.0, %v1381
  %v1383 = vpop.f32.mrf.mxu0
  %v1384 = vadd.f32 0.0, %v1383
  %1385 = vmatmul.bf16.gmra.mxu0 %v1167
  %v1386 = vpop.f32.mrf.mxu0
  %v1387 = vadd.f32 0.0, %v1386
  %v1388 = vpop.f32.mrf.mxu0
  %v1389 = vadd.f32 0.0, %v1388
  %1390 = vmatmul.bf16.gmra.mxu0 %v1169
  %v1391 = vpop.f32.mrf.mxu0
  %v1392 = vadd.f32 0.0, %v1391
  %v1393 = vpop.f32.mrf.mxu0
  %v1394 = vadd.f32 0.0, %v1393
  %1395 = vmatmul.bf16.gmra.mxu0 %v1171
  %v1396 = vpop.f32.mrf.mxu0
  %v1397 = vadd.f32 0.0, %v1396
  %v1398 = vpop.f32.mrf.mxu0
  %v1399 = vadd.f32 0.0, %v1398
  %1400 = vmatmul.bf16.gmra.mxu0 %v1173
  %v1401 = vpop.f32.mrf.mxu0
  %v1402 = vadd.f32 0.0, %v1401
  %v1403 = vpop.f32.mrf.mxu0
  %v1404 = vadd.f32 0.0, %v1403
  %1405 = vmatmul.bf16.gmra.mxu0 %v1175
  %v1406 = vpop.f32.mrf.mxu0
  %v1407 = vadd.f32 0.0, %v1406
  %v1408 = vpop.f32.mrf.mxu0
  %v1409 = vadd.f32 0.0, %v1408
  %1410 = vmatmul.bf16.gmra.mxu0 %v1177
  %v1411 = vpop.f32.mrf.mxu0
  %v1412 = vadd.f32 0.0, %v1411
  %v1413 = vpop.f32.mrf.mxu0
  %v1414 = vadd.f32 0.0, %v1413
  %1415 = vdwg.mxu0
  %1416 = vmatpush.bf16.msra.mxu0 0
  %1417 = vmatpush.bf16.msra.mxu0 0
  %1418 = vmatpush.bf16.msra.mxu0 0
  %1419 = vmatpush.bf16.msra.mxu0 0
  %1420 = vmatpush.bf16.msra.mxu0 %v1285
  %1421 = vmatpush.bf16.msra.mxu0 %v1283
  %1422 = vmatpush.bf16.msra.mxu0 %v1281
  %1423 = vmatpush.bf16.msra.mxu0 %v1279
  %1424 = vmatmul.bf16.gmra.mxu0 %v1312
  %v1425 = vpop.f32.mrf.mxu0
  %v1426 = vadd.f32 %v1357, %v1425
  %v1427 = vpop.f32.mrf.mxu0
  %v1428 = vadd.f32 %v1359, %v1427
  %1429 = vmatmul.bf16.gmra.mxu0 %v1315
  %v1430 = vpop.f32.mrf.mxu0
  %v1431 = vadd.f32 %v1362, %v1430
  %v1432 = vpop.f32.mrf.mxu0
  %v1433 = vadd.f32 %v1364, %v1432
  %1434 = vmatmul.bf16.gmra.mxu0 %v1318
  %v1435 = vpop.f32.mrf.mxu0
  %v1436 = vadd.f32 %v1367, %v1435
  %v1437 = vpop.f32.mrf.mxu0
  %v1438 = vadd.f32 %v1369, %v1437
  %1439 = vmatmul.bf16.gmra.mxu0 %v1321
  %v1440 = vpop.f32.mrf.mxu0
  %v1441 = vadd.f32 %v1372, %v1440
  %v1442 = vpop.f32.mrf.mxu0
  %v1443 = vadd.f32 %v1374, %v1442
  %1444 = vmatmul.bf16.gmra.mxu0 %v1324
  %v1445 = vpop.f32.mrf.mxu0
  %v1446 = vadd.f32 %v1377, %v1445
  %v1447 = vpop.f32.mrf.mxu0
  %v1448 = vadd.f32 %v1379, %v1447
  %1449 = vmatmul.bf16.gmra.mxu0 %v1327
  %v1450 = vpop.f32.mrf.mxu0
  %v1451 = vadd.f32 %v1382, %v1450
  %v1452 = vpop.f32.mrf.mxu0
  %v1453 = vadd.f32 %v1384, %v1452
  %1454 = vmatmul.bf16.gmra.mxu0 %v1330
  %v1455 = vpop.f32.mrf.mxu0
  %v1456 = vadd.f32 %v1387, %v1455
  %v1457 = vpop.f32.mrf.mxu0
  %v1458 = vadd.f32 %v1389, %v1457
  %1459 = vmatmul.bf16.gmra.mxu0 %v1333
  %v1460 = vpop.f32.mrf.mxu0
  %v1461 = vadd.f32 %v1392, %v1460
  %v1462 = vpop.f32.mrf.mxu0
  %v1463 = vadd.f32 %v1394, %v1462
  %1464 = vmatmul.bf16.gmra.mxu0 %v1336
  %v1465 = vpop.f32.mrf.mxu0
  %v1466 = vadd.f32 %v1397, %v1465
  %v1467 = vpop.f32.mrf.mxu0
  %v1468 = vadd.f32 %v1399, %v1467
  %1469 = vmatmul.bf16.gmra.mxu0 %v1339
  %v1470 = vpop.f32.mrf.mxu0
  %v1471 = vadd.f32 %v1402, %v1470
  %v1472 = vpop.f32.mrf.mxu0
  %v1473 = vadd.f32 %v1404, %v1472
  %1474 = vmatmul.bf16.gmra.mxu0 %v1342
  %v1475 = vpop.f32.mrf.mxu0
  %v1476 = vadd.f32 %v1407, %v1475
  %v1477 = vpop.f32.mrf.mxu0
  %v1478 = vadd.f32 %v1409, %v1477
  %1479 = vmatmul.bf16.gmra.mxu0 %v1345
  %v1480 = vpop.f32.mrf.mxu0
  %v1481 = vadd.f32 %v1412, %v1480
  %v1482 = vpop.f32.mrf.mxu0
  %v1483 = vadd.f32 %v1414, %v1482
  %1484 = vdwg.mxu0
  %1485 = vmatpush.bf16.msra.mxu0 %v1278
  %1486 = vmatpush.bf16.msra.mxu0 %v1276
  %1487 = vmatpush.bf16.msra.mxu0 %v1274
  %1488 = vmatpush.bf16.msra.mxu0 %v1272
  %1489 = vmatpush.bf16.msra.mxu0 %v1270
  %1490 = vmatpush.bf16.msra.mxu0 %v1268
  %1491 = vmatpush.bf16.msra.mxu0 %v1266
  %1492 = vmatpush.bf16.msra.mxu0 %v1264
  %1493 = vmatmul.bf16.gmra.mxu0 %v1155
  %v1494 = vpop.f32.mrf.mxu0
  %v1495 = vadd.f32 0.0, %v1494
  %v1496 = vpop.f32.mrf.mxu0
  %v1497 = vadd.f32 0.0, %v1496
  %1498 = vmatmul.bf16.gmra.mxu0 %v1157
  %v1499 = vpop.f32.mrf.mxu0
  %v1500 = vadd.f32 0.0, %v1499
  %v1501 = vpop.f32.mrf.mxu0
  %v1502 = vadd.f32 0.0, %v1501
  %1503 = vmatmul.bf16.gmra.mxu0 %v1159
  %v1504 = vpop.f32.mrf.mxu0
  %v1505 = vadd.f32 0.0, %v1504
  %v1506 = vpop.f32.mrf.mxu0
  %v1507 = vadd.f32 0.0, %v1506
  %1508 = vmatmul.bf16.gmra.mxu0 %v1161
  %v1509 = vpop.f32.mrf.mxu0
  %v1510 = vadd.f32 0.0, %v1509
  %v1511 = vpop.f32.mrf.mxu0
  %v1512 = vadd.f32 0.0, %v1511
  %1513 = vmatmul.bf16.gmra.mxu0 %v1163
  %v1514 = vpop.f32.mrf.mxu0
  %v1515 = vadd.f32 0.0, %v1514
  %v1516 = vpop.f32.mrf.mxu0
  %v1517 = vadd.f32 0.0, %v1516
  %1518 = vmatmul.bf16.gmra.mxu0 %v1165
  %v1519 = vpop.f32.mrf.mxu0
  %v1520 = vadd.f32 0.0, %v1519
  %v1521 = vpop.f32.mrf.mxu0
  %v1522 = vadd.f32 0.0, %v1521
  %1523 = vmatmul.bf16.gmra.mxu0 %v1167
  %v1524 = vpop.f32.mrf.mxu0
  %v1525 = vadd.f32 0.0, %v1524
  %v1526 = vpop.f32.mrf.mxu0
  %v1527 = vadd.f32 0.0, %v1526
  %1528 = vmatmul.bf16.gmra.mxu0 %v1169
  %v1529 = vpop.f32.mrf.mxu0
  %v1530 = vadd.f32 0.0, %v1529
  %v1531 = vpop.f32.mrf.mxu0
  %v1532 = vadd.f32 0.0, %v1531
  %1533 = vmatmul.bf16.gmra.mxu0 %v1171
  %v1534 = vpop.f32.mrf.mxu0
  %v1535 = vadd.f32 0.0, %v1534
  %v1536 = vpop.f32.mrf.mxu0
  %v1537 = vadd.f32 0.0, %v1536
  %1538 = vmatmul.bf16.gmra.mxu0 %v1173
  %v1539 = vpop.f32.mrf.mxu0
  %v1540 = vadd.f32 0.0, %v1539
  %v1541 = vpop.f32.mrf.mxu0
  %v1542 = vadd.f32 0.0, %v1541
  %1543 = vmatmul.bf16.gmra.mxu0 %v1175
  %v1544 = vpop.f32.mrf.mxu0
  %v1545 = vadd.f32 0.0, %v1544
  %v1546 = vpop.f32.mrf.mxu0
  %v1547 = vadd.f32 0.0, %v1546
  %1548 = vmatmul.bf16.gmra.mxu0 %v1177
  %v1549 = vpop.f32.mrf.mxu0
  %v1550 = vadd.f32 0.0, %v1549
  %v1551 = vpop.f32.mrf.mxu0
  %v1552 = vadd.f32 0.0, %v1551
  %1553 = vdwg.mxu0
  %1554 = vmatpush.bf16.msra.mxu0 0
  %1555 = vmatpush.bf16.msra.mxu0 0
  %1556 = vmatpush.bf16.msra.mxu0 0
  %1557 = vmatpush.bf16.msra.mxu0 0
  %1558 = vmatpush.bf16.msra.mxu0 %v1286
  %1559 = vmatpush.bf16.msra.mxu0 %v1284
  %1560 = vmatpush.bf16.msra.mxu0 %v1282
  %1561 = vmatpush.bf16.msra.mxu0 %v1280
  %1562 = vmatmul.bf16.gmra.mxu0 %v1312
  %v1563 = vpop.f32.mrf.mxu0
  %v1564 = vadd.f32 %v1495, %v1563
  %v1565 = vpop.f32.mrf.mxu0
  %v1566 = vadd.f32 %v1497, %v1565
  %1567 = vmatmul.bf16.gmra.mxu0 %v1315
  %v1568 = vpop.f32.mrf.mxu0
  %v1569 = vadd.f32 %v1500, %v1568
  %v1570 = vpop.f32.mrf.mxu0
  %v1571 = vadd.f32 %v1502, %v1570
  %1572 = vmatmul.bf16.gmra.mxu0 %v1318
  %v1573 = vpop.f32.mrf.mxu0
  %v1574 = vadd.f32 %v1505, %v1573
  %v1575 = vpop.f32.mrf.mxu0
  %v1576 = vadd.f32 %v1507, %v1575
  %1577 = vmatmul.bf16.gmra.mxu0 %v1321
  %v1578 = vpop.f32.mrf.mxu0
  %v1579 = vadd.f32 %v1510, %v1578
  %v1580 = vpop.f32.mrf.mxu0
  %v1581 = vadd.f32 %v1512, %v1580
  %1582 = vmatmul.bf16.gmra.mxu0 %v1324
  %v1583 = vpop.f32.mrf.mxu0
  %v1584 = vadd.f32 %v1515, %v1583
  %v1585 = vpop.f32.mrf.mxu0
  %v1586 = vadd.f32 %v1517, %v1585
  %1587 = vmatmul.bf16.gmra.mxu0 %v1327
  %v1588 = vpop.f32.mrf.mxu0
  %v1589 = vadd.f32 %v1520, %v1588
  %v1590 = vpop.f32.mrf.mxu0
  %v1591 = vadd.f32 %v1522, %v1590
  %1592 = vmatmul.bf16.gmra.mxu0 %v1330
  %v1593 = vpop.f32.mrf.mxu0
  %v1594 = vadd.f32 %v1525, %v1593
  %v1595 = vpop.f32.mrf.mxu0
  %v1596 = vadd.f32 %v1527, %v1595
  %1597 = vmatmul.bf16.gmra.mxu0 %v1333
  %v1598 = vpop.f32.mrf.mxu0
  %v1599 = vadd.f32 %v1530, %v1598
  %v1600 = vpop.f32.mrf.mxu0
  %v1601 = vadd.f32 %v1532, %v1600
  %1602 = vmatmul.bf16.gmra.mxu0 %v1336
  %v1603 = vpop.f32.mrf.mxu0
  %v1604 = vadd.f32 %v1535, %v1603
  %v1605 = vpop.f32.mrf.mxu0
  %v1606 = vadd.f32 %v1537, %v1605
  %1607 = vmatmul.bf16.gmra.mxu0 %v1339
  %v1608 = vpop.f32.mrf.mxu0
  %v1609 = vadd.f32 %v1540, %v1608
  %v1610 = vpop.f32.mrf.mxu0
  %v1611 = vadd.f32 %v1542, %v1610
  %1612 = vmatmul.bf16.gmra.mxu0 %v1342
  %v1613 = vpop.f32.mrf.mxu0
  %v1614 = vadd.f32 %v1545, %v1613
  %v1615 = vpop.f32.mrf.mxu0
  %v1616 = vadd.f32 %v1547, %v1615
  %1617 = vmatmul.bf16.gmra.mxu0 %v1345
  %v1618 = vpop.f32.mrf.mxu0
  %v1619 = vadd.f32 %v1550, %v1618
  %v1620 = vpop.f32.mrf.mxu0
  %v1621 = vadd.f32 %v1552, %v1620
  %1622 = vdwg.mxu0
  %v1623 = vadd.f32 %v838, %v1426
  %v1624 = vadd.f32 %v976, %v1564
  %v1625 = vadd.f32 %v840, %v1428
  %v1626 = vadd.f32 %v978, %v1566
  %v1627 = vadd.f32 %v843, %v1431
  %v1628 = vadd.f32 %v981, %v1569
  %v1629 = vadd.f32 %v845, %v1433
  %v1630 = vadd.f32 %v983, %v1571
  %v1631 = vadd.f32 %v848, %v1436
  %v1632 = vadd.f32 %v986, %v1574
  %v1633 = vadd.f32 %v850, %v1438
  %v1634 = vadd.f32 %v988, %v1576
  %v1635 = vadd.f32 %v853, %v1441
  %v1636 = vadd.f32 %v991, %v1579
  %v1637 = vadd.f32 %v855, %v1443
  %v1638 = vadd.f32 %v993, %v1581
  %v1639 = vadd.f32 %v858, %v1446
  %v1640 = vadd.f32 %v996, %v1584
  %v1641 = vadd.f32 %v860, %v1448
  %v1642 = vadd.f32 %v998, %v1586
  %v1643 = vadd.f32 %v863, %v1451
  %v1644 = vadd.f32 %v1001, %v1589
  %v1645 = vadd.f32 %v865, %v1453
  %v1646 = vadd.f32 %v1003, %v1591
  %v1647 = vadd.f32 %v868, %v1456
  %v1648 = vadd.f32 %v1006, %v1594
  %v1649 = vadd.f32 %v870, %v1458
  %v1650 = vadd.f32 %v1008, %v1596
  %v1651 = vadd.f32 %v873, %v1461
  %v1652 = vadd.f32 %v1011, %v1599
  %v1653 = vadd.f32 %v875, %v1463
  %v1654 = vadd.f32 %v1013, %v1601
  %v1655 = vadd.f32 %v878, %v1466
  %v1656 = vadd.f32 %v1016, %v1604
  %v1657 = vadd.f32 %v880, %v1468
  %v1658 = vadd.f32 %v1018, %v1606
  %v1659 = vadd.f32 %v883, %v1471
  %v1660 = vadd.f32 %v1021, %v1609
  %v1661 = vadd.f32 %v885, %v1473
  %v1662 = vadd.f32 %v1023, %v1611
  %v1663 = vadd.f32 %v888, %v1476
  %v1664 = vadd.f32 %v1026, %v1614
  %v1665 = vadd.f32 %v890, %v1478
  %v1666 = vadd.f32 %v1028, %v1616
  %v1667 = vadd.f32 %v893, %v1481
  %v1668 = vadd.f32 %v1031, %v1619
  %v1669 = vadd.f32 %v895, %v1483
  %v1670 = vadd.f32 %v1033, %v1621
  %v1671 = vld [vmem:[%s0 + $0x30] sm:$0xff]
  %v1672 = vld [vmem:[%s0 + $0x38] sm:$0xff]
  %v1673 = vld [vmem:[%s0 + $0x40] sm:$0xff]
  %v1674 = vld [vmem:[%s0 + $0x48] sm:$0xff]
  %v1675 = vld [vmem:[%s0 + $0x50] sm:$0xff]
  %v1676 = vld [vmem:[%s0 + $0x58] sm:$0xff]
  %v1677 = vld [vmem:[%s0 + $0x60] sm:$0xff]
  %v1678 = vld [vmem:[%s0 + $0x68] sm:$0xff]
  %v1679 = vld [vmem:[%s0 + $0x70] sm:$0xff]
  %v1680 = vld [vmem:[%s0 + $0x78] sm:$0xff]
  %v1681 = vld [vmem:[%s0 + $0x80] sm:$0xff]
  %v1682 = vld [vmem:[%s0 + $0x88] sm:$0xff]
  %v1683 = vld [vmem:[%s0 + $0x90] sm:$0xff]
  %v1684 = vld [vmem:[%s0 + $0x98] sm:$0xff]
  %v1685 = vld [vmem:[%s0 + $0xa0] sm:$0xff]
  %v1686 = vld [vmem:[%s0 + $0xa8] sm:$0xff]
  %v1687 = vld [vmem:[%s0 + $0xb0] sm:$0xff]
  %v1688 = vld [vmem:[%s0 + $0xb8] sm:$0xff]
  %v1689 = vld [vmem:[%s0 + $0xc0] sm:$0xff]
  %v1690 = vld [vmem:[%s0 + $0xc8] sm:$0xff]
  %v1691 = vld [vmem:[%s0 + $0xd0] sm:$0xff]
  %v1692 = vld [vmem:[%s0 + $0xd8] sm:$0xff]
  %v1693 = vld [vmem:[%s0 + $0xe0] sm:$0xff]
  %v1694 = vld [vmem:[%s0 + $0xe8] sm:$0xff]
  %v1695 = vld [vmem:[%s1 + $0x240] sm:$0xff]
  %v1696 = vld [vmem:[%s1 + $0x248] sm:$0xff]
  %v1697 = vld [vmem:[%s1 + $0x250] sm:$0xff]
  %v1698 = vld [vmem:[%s1 + $0x258] sm:$0xff]
  %v1699 = vld [vmem:[%s1 + $0x260] sm:$0xff]
  %v1700 = vld [vmem:[%s1 + $0x268] sm:$0xff]
  %v1701 = vld [vmem:[%s1 + $0x270] sm:$0xff]
  %v1702 = vld [vmem:[%s1 + $0x278] sm:$0xff]
  %v1703 = vld [vmem:[%s1 + $0x280] sm:$0xff]
  %v1704 = vld [vmem:[%s1 + $0x288] sm:$0xff]
  %v1705 = vld [vmem:[%s1 + $0x290] sm:$0xff]
  %v1706 = vld [vmem:[%s1 + $0x298] sm:$0xff]
  %v1707 = vld [vmem:[%s1 + $0x2a0] sm:$0xff]
  %v1708 = vld [vmem:[%s1 + $0x2a8] sm:$0xff]
  %v1709 = vld [vmem:[%s1 + $0x2b0] sm:$0xff]
  %v1710 = vld [vmem:[%s1 + $0x2b8] sm:$0xff]
  %v1711 = vld [vmem:[%s1 + $0x2c0] sm:$0xff]
  %v1712 = vld [vmem:[%s1 + $0x2c8] sm:$0xff]
  %v1713 = vld [vmem:[%s1 + $0x2d0] sm:$0xff]
  %v1714 = vld [vmem:[%s1 + $0x2d8] sm:$0xff]
  %v1715 = vld [vmem:[%s1 + $0x2e0] sm:$0xff]
  %v1716 = vld [vmem:[%s1 + $0x2e8] sm:$0xff]
  %v1717 = vld [vmem:[%s1 + $0x2f0] sm:$0xff]
  %v1718 = vld [vmem:[%s1 + $0x2f8] sm:$0xff]
  %v1743 = vunpack.c.l.b16 %v1671
  %v1744 = vunpack.c.h.b16 %v1671
  %v1745 = vunpack.c.l.b16 %v1672
  %v1746 = vunpack.c.h.b16 %v1672
  %v1747 = vunpack.c.l.b16 %v1673
  %v1748 = vunpack.c.h.b16 %v1673
  %v1749 = vunpack.c.l.b16 %v1674
  %v1750 = vunpack.c.h.b16 %v1674
  %v1751 = vunpack.c.l.b16 %v1675
  %v1752 = vunpack.c.h.b16 %v1675
  %v1753 = vunpack.c.l.b16 %v1676
  %v1754 = vunpack.c.h.b16 %v1676
  %v1755 = vunpack.c.l.b16 %v1677
  %v1756 = vunpack.c.h.b16 %v1677
  %v1757 = vunpack.c.l.b16 %v1678
  %v1758 = vunpack.c.h.b16 %v1678
  %v1759 = vunpack.c.l.b16 %v1679
  %v1760 = vunpack.c.h.b16 %v1679
  %v1761 = vunpack.c.l.b16 %v1680
  %v1762 = vunpack.c.h.b16 %v1680
  %v1763 = vunpack.c.l.b16 %v1681
  %v1764 = vunpack.c.h.b16 %v1681
  %v1765 = vunpack.c.l.b16 %v1682
  %v1766 = vunpack.c.h.b16 %v1682
  %v1767 = vunpack.c.l.b16 %v1683
  %v1768 = vunpack.c.h.b16 %v1683
  %v1769 = vunpack.c.l.b16 %v1684
  %v1770 = vunpack.c.h.b16 %v1684
  %v1771 = vunpack.c.l.b16 %v1685
  %v1772 = vunpack.c.h.b16 %v1685
  %v1773 = vunpack.c.l.b16 %v1686
  %v1774 = vunpack.c.h.b16 %v1686
  %v1775 = vunpack.c.l.b16 %v1687
  %v1776 = vunpack.c.h.b16 %v1687
  %v1777 = vunpack.c.l.b16 %v1688
  %v1778 = vunpack.c.h.b16 %v1688
  %v1779 = vunpack.c.l.b16 %v1689
  %v1780 = vunpack.c.h.b16 %v1689
  %v1781 = vunpack.c.l.b16 %v1690
  %v1782 = vunpack.c.h.b16 %v1690
  %v1783 = vunpack.c.l.b16 %v1691
  %v1784 = vunpack.c.h.b16 %v1691
  %v1785 = vunpack.c.l.b16 %v1692
  %v1786 = vunpack.c.h.b16 %v1692
  %v1787 = vunpack.c.l.b16 %v1693
  %v1788 = vunpack.c.h.b16 %v1693
  %v1789 = vunpack.c.l.b16 %v1694
  %v1790 = vunpack.c.h.b16 %v1694
  %v1791 = vpack.c.b16 %v1745, %v1743
  %v1792 = vpack.c.b16 %v1746, %v1744
  %v1793 = vpack.c.b16 %v1749, %v1747
  %v1794 = vpack.c.b16 %v1750, %v1748
  %v1795 = vpack.c.b16 %v1753, %v1751
  %v1796 = vpack.c.b16 %v1754, %v1752
  %v1797 = vpack.c.b16 %v1757, %v1755
  %v1798 = vpack.c.b16 %v1758, %v1756
  %v1799 = vpack.c.b16 %v1761, %v1759
  %v1800 = vpack.c.b16 %v1762, %v1760
  %v1801 = vpack.c.b16 %v1765, %v1763
  %v1802 = vpack.c.b16 %v1766, %v1764
  %v1803 = vpack.c.b16 %v1769, %v1767
  %v1804 = vpack.c.b16 %v1770, %v1768
  %v1805 = vpack.c.b16 %v1773, %v1771
  %v1806 = vpack.c.b16 %v1774, %v1772
  %v1807 = vpack.c.b16 %v1777, %v1775
  %v1808 = vpack.c.b16 %v1778, %v1776
  %v1809 = vpack.c.b16 %v1781, %v1779
  %v1810 = vpack.c.b16 %v1782, %v1780
  %v1811 = vpack.c.b16 %v1785, %v1783
  %v1812 = vpack.c.b16 %v1786, %v1784
  %v1813 = vpack.c.b16 %v1789, %v1787
  %v1814 = vpack.c.b16 %v1790, %v1788
  %v1851 = vunpack.c.l.b16 %v1695
  %v1852 = vunpack.c.h.b16 %v1695
  %v1853 = vunpack.c.l.b16 %v1696
  %v1854 = vunpack.c.h.b16 %v1696
  %v1855 = vunpack.c.l.b16 %v1697
  %v1856 = vunpack.c.h.b16 %v1697
  %v1857 = vunpack.c.l.b16 %v1698
  %v1858 = vunpack.c.h.b16 %v1698
  %v1859 = vunpack.c.l.b16 %v1699
  %v1860 = vunpack.c.h.b16 %v1699
  %v1861 = vunpack.c.l.b16 %v1700
  %v1862 = vunpack.c.h.b16 %v1700
  %v1863 = vunpack.c.l.b16 %v1701
  %v1864 = vunpack.c.h.b16 %v1701
  %v1865 = vunpack.c.l.b16 %v1702
  %v1866 = vunpack.c.h.b16 %v1702
  %v1867 = vunpack.c.l.b16 %v1703
  %v1868 = vunpack.c.h.b16 %v1703
  %v1869 = vunpack.c.l.b16 %v1704
  %v1870 = vunpack.c.h.b16 %v1704
  %v1871 = vunpack.c.l.b16 %v1705
  %v1872 = vunpack.c.h.b16 %v1705
  %v1873 = vunpack.c.l.b16 %v1706
  %v1874 = vunpack.c.h.b16 %v1706
  %v1875 = vunpack.c.l.b16 %v1707
  %v1876 = vunpack.c.h.b16 %v1707
  %v1877 = vunpack.c.l.b16 %v1708
  %v1878 = vunpack.c.h.b16 %v1708
  %v1879 = vunpack.c.l.b16 %v1709
  %v1880 = vunpack.c.h.b16 %v1709
  %v1881 = vunpack.c.l.b16 %v1710
  %v1882 = vunpack.c.h.b16 %v1710
  %v1883 = vunpack.c.l.b16 %v1711
  %v1884 = vunpack.c.h.b16 %v1711
  %v1885 = vunpack.c.l.b16 %v1712
  %v1886 = vunpack.c.h.b16 %v1712
  %v1887 = vunpack.c.l.b16 %v1713
  %v1888 = vunpack.c.h.b16 %v1713
  %v1889 = vunpack.c.l.b16 %v1714
  %v1890 = vunpack.c.h.b16 %v1714
  %v1891 = vunpack.c.l.b16 %v1715
  %v1892 = vunpack.c.h.b16 %v1715
  %v1893 = vunpack.c.l.b16 %v1716
  %v1894 = vunpack.c.h.b16 %v1716
  %v1895 = vunpack.c.l.b16 %v1717
  %v1896 = vunpack.c.h.b16 %v1717
  %v1897 = vunpack.c.l.b16 %v1718
  %v1898 = vunpack.c.h.b16 %v1718
  %v1899 = vpack.c.b16 %v1853, %v1851
  %v1900 = vpack.c.b16 %v1854, %v1852
  %v1901 = vpack.c.b16 %v1857, %v1855
  %v1902 = vpack.c.b16 %v1858, %v1856
  %v1903 = vpack.c.b16 %v1861, %v1859
  %v1904 = vpack.c.b16 %v1862, %v1860
  %v1905 = vpack.c.b16 %v1865, %v1863
  %v1906 = vpack.c.b16 %v1866, %v1864
  %v1907 = vpack.c.b16 %v1869, %v1867
  %v1908 = vpack.c.b16 %v1870, %v1868
  %v1909 = vpack.c.b16 %v1873, %v1871
  %v1910 = vpack.c.b16 %v1874, %v1872
  %v1911 = vpack.c.b16 %v1877, %v1875
  %v1912 = vpack.c.b16 %v1878, %v1876
  %v1913 = vpack.c.b16 %v1881, %v1879
  %v1914 = vpack.c.b16 %v1882, %v1880
  %v1915 = vpack.c.b16 %v1885, %v1883
  %v1916 = vpack.c.b16 %v1886, %v1884
  %v1917 = vpack.c.b16 %v1889, %v1887
  %v1918 = vpack.c.b16 %v1890, %v1888
  %v1919 = vpack.c.b16 %v1893, %v1891
  %v1920 = vpack.c.b16 %v1894, %v1892
  %v1921 = vpack.c.b16 %v1897, %v1895
  %v1922 = vpack.c.b16 %v1898, %v1896
  %v1948 = vsel %vm314, %v1792, 0
  %v1951 = vsel %vm314, %v1794, 0
  %v1954 = vsel %vm314, %v1796, 0
  %v1957 = vsel %vm314, %v1798, 0
  %v1960 = vsel %vm314, %v1800, 0
  %v1963 = vsel %vm314, %v1802, 0
  %v1966 = vsel %vm314, %v1804, 0
  %v1969 = vsel %vm314, %v1806, 0
  %v1972 = vsel %vm314, %v1808, 0
  %v1975 = vsel %vm314, %v1810, 0
  %v1978 = vsel %vm314, %v1812, 0
  %v1981 = vsel %vm314, %v1814, 0
  %1983 = vmatpush.bf16.msra.mxu0 %v1913
  %1984 = vmatpush.bf16.msra.mxu0 %v1911
  %1985 = vmatpush.bf16.msra.mxu0 %v1909
  %1986 = vmatpush.bf16.msra.mxu0 %v1907
  %1987 = vmatpush.bf16.msra.mxu0 %v1905
  %1988 = vmatpush.bf16.msra.mxu0 %v1903
  %1989 = vmatpush.bf16.msra.mxu0 %v1901
  %1990 = vmatpush.bf16.msra.mxu0 %v1899
  %1991 = vmatmul.bf16.gmra.mxu0 %v1791
  %v1992 = vpop.f32.mrf.mxu0
  %v1993 = vadd.f32 0.0, %v1992
  %v1994 = vpop.f32.mrf.mxu0
  %v1995 = vadd.f32 0.0, %v1994
  %1996 = vmatmul.bf16.gmra.mxu0 %v1793
  %v1997 = vpop.f32.mrf.mxu0
  %v1998 = vadd.f32 0.0, %v1997
  %v1999 = vpop.f32.mrf.mxu0
  %v2000 = vadd.f32 0.0, %v1999
  %2001 = vmatmul.bf16.gmra.mxu0 %v1795
  %v2002 = vpop.f32.mrf.mxu0
  %v2003 = vadd.f32 0.0, %v2002
  %v2004 = vpop.f32.mrf.mxu0
  %v2005 = vadd.f32 0.0, %v2004
  %2006 = vmatmul.bf16.gmra.mxu0 %v1797
  %v2007 = vpop.f32.mrf.mxu0
  %v2008 = vadd.f32 0.0, %v2007
  %v2009 = vpop.f32.mrf.mxu0
  %v2010 = vadd.f32 0.0, %v2009
  %2011 = vmatmul.bf16.gmra.mxu0 %v1799
  %v2012 = vpop.f32.mrf.mxu0
  %v2013 = vadd.f32 0.0, %v2012
  %v2014 = vpop.f32.mrf.mxu0
  %v2015 = vadd.f32 0.0, %v2014
  %2016 = vmatmul.bf16.gmra.mxu0 %v1801
  %v2017 = vpop.f32.mrf.mxu0
  %v2018 = vadd.f32 0.0, %v2017
  %v2019 = vpop.f32.mrf.mxu0
  %v2020 = vadd.f32 0.0, %v2019
  %2021 = vmatmul.bf16.gmra.mxu0 %v1803
  %v2022 = vpop.f32.mrf.mxu0
  %v2023 = vadd.f32 0.0, %v2022
  %v2024 = vpop.f32.mrf.mxu0
  %v2025 = vadd.f32 0.0, %v2024
  %2026 = vmatmul.bf16.gmra.mxu0 %v1805
  %v2027 = vpop.f32.mrf.mxu0
  %v2028 = vadd.f32 0.0, %v2027
  %v2029 = vpop.f32.mrf.mxu0
  %v2030 = vadd.f32 0.0, %v2029
  %2031 = vmatmul.bf16.gmra.mxu0 %v1807
  %v2032 = vpop.f32.mrf.mxu0
  %v2033 = vadd.f32 0.0, %v2032
  %v2034 = vpop.f32.mrf.mxu0
  %v2035 = vadd.f32 0.0, %v2034
  %2036 = vmatmul.bf16.gmra.mxu0 %v1809
  %v2037 = vpop.f32.mrf.mxu0
  %v2038 = vadd.f32 0.0, %v2037
  %v2039 = vpop.f32.mrf.mxu0
  %v2040 = vadd.f32 0.0, %v2039
  %2041 = vmatmul.bf16.gmra.mxu0 %v1811
  %v2042 = vpop.f32.mrf.mxu0
  %v2043 = vadd.f32 0.0, %v2042
  %v2044 = vpop.f32.mrf.mxu0
  %v2045 = vadd.f32 0.0, %v2044
  %2046 = vmatmul.bf16.gmra.mxu0 %v1813
  %v2047 = vpop.f32.mrf.mxu0
  %v2048 = vadd.f32 0.0, %v2047
  %v2049 = vpop.f32.mrf.mxu0
  %v2050 = vadd.f32 0.0, %v2049
  %2051 = vdwg.mxu0
  %2052 = vmatpush.bf16.msra.mxu0 0
  %2053 = vmatpush.bf16.msra.mxu0 0
  %2054 = vmatpush.bf16.msra.mxu0 0
  %2055 = vmatpush.bf16.msra.mxu0 0
  %2056 = vmatpush.bf16.msra.mxu0 %v1921
  %2057 = vmatpush.bf16.msra.mxu0 %v1919
  %2058 = vmatpush.bf16.msra.mxu0 %v1917
  %2059 = vmatpush.bf16.msra.mxu0 %v1915
  %2060 = vmatmul.bf16.gmra.mxu0 %v1948
  %v2061 = vpop.f32.mrf.mxu0
  %v2062 = vadd.f32 %v1993, %v2061
  %v2063 = vpop.f32.mrf.mxu0
  %v2064 = vadd.f32 %v1995, %v2063
  %2065 = vmatmul.bf16.gmra.mxu0 %v1951
  %v2066 = vpop.f32.mrf.mxu0
  %v2067 = vadd.f32 %v1998, %v2066
  %v2068 = vpop.f32.mrf.mxu0
  %v2069 = vadd.f32 %v2000, %v2068
  %2070 = vmatmul.bf16.gmra.mxu0 %v1954
  %v2071 = vpop.f32.mrf.mxu0
  %v2072 = vadd.f32 %v2003, %v2071
  %v2073 = vpop.f32.mrf.mxu0
  %v2074 = vadd.f32 %v2005, %v2073
  %2075 = vmatmul.bf16.gmra.mxu0 %v1957
  %v2076 = vpop.f32.mrf.mxu0
  %v2077 = vadd.f32 %v2008, %v2076
  %v2078 = vpop.f32.mrf.mxu0
  %v2079 = vadd.f32 %v2010, %v2078
  %2080 = vmatmul.bf16.gmra.mxu0 %v1960
  %v2081 = vpop.f32.mrf.mxu0
  %v2082 = vadd.f32 %v2013, %v2081
  %v2083 = vpop.f32.mrf.mxu0
  %v2084 = vadd.f32 %v2015, %v2083
  %2085 = vmatmul.bf16.gmra.mxu0 %v1963
  %v2086 = vpop.f32.mrf.mxu0
  %v2087 = vadd.f32 %v2018, %v2086
  %v2088 = vpop.f32.mrf.mxu0
  %v2089 = vadd.f32 %v2020, %v2088
  %2090 = vmatmul.bf16.gmra.mxu0 %v1966
  %v2091 = vpop.f32.mrf.mxu0
  %v2092 = vadd.f32 %v2023, %v2091
  %v2093 = vpop.f32.mrf.mxu0
  %v2094 = vadd.f32 %v2025, %v2093
  %2095 = vmatmul.bf16.gmra.mxu0 %v1969
  %v2096 = vpop.f32.mrf.mxu0
  %v2097 = vadd.f32 %v2028, %v2096
  %v2098 = vpop.f32.mrf.mxu0
  %v2099 = vadd.f32 %v2030, %v2098
  %2100 = vmatmul.bf16.gmra.mxu0 %v1972
  %v2101 = vpop.f32.mrf.mxu0
  %v2102 = vadd.f32 %v2033, %v2101
  %v2103 = vpop.f32.mrf.mxu0
  %v2104 = vadd.f32 %v2035, %v2103
  %2105 = vmatmul.bf16.gmra.mxu0 %v1975
  %v2106 = vpop.f32.mrf.mxu0
  %v2107 = vadd.f32 %v2038, %v2106
  %v2108 = vpop.f32.mrf.mxu0
  %v2109 = vadd.f32 %v2040, %v2108
  %2110 = vmatmul.bf16.gmra.mxu0 %v1978
  %v2111 = vpop.f32.mrf.mxu0
  %v2112 = vadd.f32 %v2043, %v2111
  %v2113 = vpop.f32.mrf.mxu0
  %v2114 = vadd.f32 %v2045, %v2113
  %2115 = vmatmul.bf16.gmra.mxu0 %v1981
  %v2116 = vpop.f32.mrf.mxu0
  %v2117 = vadd.f32 %v2048, %v2116
  %v2118 = vpop.f32.mrf.mxu0
  %v2119 = vadd.f32 %v2050, %v2118
  %2120 = vdwg.mxu0
  %2121 = vmatpush.bf16.msra.mxu0 %v1914
  %2122 = vmatpush.bf16.msra.mxu0 %v1912
  %2123 = vmatpush.bf16.msra.mxu0 %v1910
  %2124 = vmatpush.bf16.msra.mxu0 %v1908
  %2125 = vmatpush.bf16.msra.mxu0 %v1906
  %2126 = vmatpush.bf16.msra.mxu0 %v1904
  %2127 = vmatpush.bf16.msra.mxu0 %v1902
  %2128 = vmatpush.bf16.msra.mxu0 %v1900
  %2129 = vmatmul.bf16.gmra.mxu0 %v1791
  %v2130 = vpop.f32.mrf.mxu0
  %v2131 = vadd.f32 0.0, %v2130
  %v2132 = vpop.f32.mrf.mxu0
  %v2133 = vadd.f32 0.0, %v2132
  %2134 = vmatmul.bf16.gmra.mxu0 %v1793
  %v2135 = vpop.f32.mrf.mxu0
  %v2136 = vadd.f32 0.0, %v2135
  %v2137 = vpop.f32.mrf.mxu0
  %v2138 = vadd.f32 0.0, %v2137
  %2139 = vmatmul.bf16.gmra.mxu0 %v1795
  %v2140 = vpop.f32.mrf.mxu0
  %v2141 = vadd.f32 0.0, %v2140
  %v2142 = vpop.f32.mrf.mxu0
  %v2143 = vadd.f32 0.0, %v2142
  %2144 = vmatmul.bf16.gmra.mxu0 %v1797
  %v2145 = vpop.f32.mrf.mxu0
  %v2146 = vadd.f32 0.0, %v2145
  %v2147 = vpop.f32.mrf.mxu0
  %v2148 = vadd.f32 0.0, %v2147
  %2149 = vmatmul.bf16.gmra.mxu0 %v1799
  %v2150 = vpop.f32.mrf.mxu0
  %v2151 = vadd.f32 0.0, %v2150
  %v2152 = vpop.f32.mrf.mxu0
  %v2153 = vadd.f32 0.0, %v2152
  %2154 = vmatmul.bf16.gmra.mxu0 %v1801
  %v2155 = vpop.f32.mrf.mxu0
  %v2156 = vadd.f32 0.0, %v2155
  %v2157 = vpop.f32.mrf.mxu0
  %v2158 = vadd.f32 0.0, %v2157
  %2159 = vmatmul.bf16.gmra.mxu0 %v1803
  %v2160 = vpop.f32.mrf.mxu0
  %v2161 = vadd.f32 0.0, %v2160
  %v2162 = vpop.f32.mrf.mxu0
  %v2163 = vadd.f32 0.0, %v2162
  %2164 = vmatmul.bf16.gmra.mxu0 %v1805
  %v2165 = vpop.f32.mrf.mxu0
  %v2166 = vadd.f32 0.0, %v2165
  %v2167 = vpop.f32.mrf.mxu0
  %v2168 = vadd.f32 0.0, %v2167
  %2169 = vmatmul.bf16.gmra.mxu0 %v1807
  %v2170 = vpop.f32.mrf.mxu0
  %v2171 = vadd.f32 0.0, %v2170
  %v2172 = vpop.f32.mrf.mxu0
  %v2173 = vadd.f32 0.0, %v2172
  %2174 = vmatmul.bf16.gmra.mxu0 %v1809
  %v2175 = vpop.f32.mrf.mxu0
  %v2176 = vadd.f32 0.0, %v2175
  %v2177 = vpop.f32.mrf.mxu0
  %v2178 = vadd.f32 0.0, %v2177
  %2179 = vmatmul.bf16.gmra.mxu0 %v1811
  %v2180 = vpop.f32.mrf.mxu0
  %v2181 = vadd.f32 0.0, %v2180
  %v2182 = vpop.f32.mrf.mxu0
  %v2183 = vadd.f32 0.0, %v2182
  %2184 = vmatmul.bf16.gmra.mxu0 %v1813
  %v2185 = vpop.f32.mrf.mxu0
  %v2186 = vadd.f32 0.0, %v2185
  %v2187 = vpop.f32.mrf.mxu0
  %v2188 = vadd.f32 0.0, %v2187
  %2189 = vdwg.mxu0
  %2190 = vmatpush.bf16.msra.mxu0 0
  %2191 = vmatpush.bf16.msra.mxu0 0
  %2192 = vmatpush.bf16.msra.mxu0 0
  %2193 = vmatpush.bf16.msra.mxu0 0
  %2194 = vmatpush.bf16.msra.mxu0 %v1922
  %2195 = vmatpush.bf16.msra.mxu0 %v1920
  %2196 = vmatpush.bf16.msra.mxu0 %v1918
  %2197 = vmatpush.bf16.msra.mxu0 %v1916
  %2198 = vmatmul.bf16.gmra.mxu0 %v1948
  %v2199 = vpop.f32.mrf.mxu0
  %v2200 = vadd.f32 %v2131, %v2199
  %v2201 = vpop.f32.mrf.mxu0
  %v2202 = vadd.f32 %v2133, %v2201
  %2203 = vmatmul.bf16.gmra.mxu0 %v1951
  %v2204 = vpop.f32.mrf.mxu0
  %v2205 = vadd.f32 %v2136, %v2204
  %v2206 = vpop.f32.mrf.mxu0
  %v2207 = vadd.f32 %v2138, %v2206
  %2208 = vmatmul.bf16.gmra.mxu0 %v1954
  %v2209 = vpop.f32.mrf.mxu0
  %v2210 = vadd.f32 %v2141, %v2209
  %v2211 = vpop.f32.mrf.mxu0
  %v2212 = vadd.f32 %v2143, %v2211
  %2213 = vmatmul.bf16.gmra.mxu0 %v1957
  %v2214 = vpop.f32.mrf.mxu0
  %v2215 = vadd.f32 %v2146, %v2214
  %v2216 = vpop.f32.mrf.mxu0
  %v2217 = vadd.f32 %v2148, %v2216
  %2218 = vmatmul.bf16.gmra.mxu0 %v1960
  %v2219 = vpop.f32.mrf.mxu0
  %v2220 = vadd.f32 %v2151, %v2219
  %v2221 = vpop.f32.mrf.mxu0
  %v2222 = vadd.f32 %v2153, %v2221
  %2223 = vmatmul.bf16.gmra.mxu0 %v1963
  %v2224 = vpop.f32.mrf.mxu0
  %v2225 = vadd.f32 %v2156, %v2224
  %v2226 = vpop.f32.mrf.mxu0
  %v2227 = vadd.f32 %v2158, %v2226
  %2228 = vmatmul.bf16.gmra.mxu0 %v1966
  %v2229 = vpop.f32.mrf.mxu0
  %v2230 = vadd.f32 %v2161, %v2229
  %v2231 = vpop.f32.mrf.mxu0
  %v2232 = vadd.f32 %v2163, %v2231
  %2233 = vmatmul.bf16.gmra.mxu0 %v1969
  %v2234 = vpop.f32.mrf.mxu0
  %v2235 = vadd.f32 %v2166, %v2234
  %v2236 = vpop.f32.mrf.mxu0
  %v2237 = vadd.f32 %v2168, %v2236
  %2238 = vmatmul.bf16.gmra.mxu0 %v1972
  %v2239 = vpop.f32.mrf.mxu0
  %v2240 = vadd.f32 %v2171, %v2239
  %v2241 = vpop.f32.mrf.mxu0
  %v2242 = vadd.f32 %v2173, %v2241
  %2243 = vmatmul.bf16.gmra.mxu0 %v1975
  %v2244 = vpop.f32.mrf.mxu0
  %v2245 = vadd.f32 %v2176, %v2244
  %v2246 = vpop.f32.mrf.mxu0
  %v2247 = vadd.f32 %v2178, %v2246
  %2248 = vmatmul.bf16.gmra.mxu0 %v1978
  %v2249 = vpop.f32.mrf.mxu0
  %v2250 = vadd.f32 %v2181, %v2249
  %v2251 = vpop.f32.mrf.mxu0
  %v2252 = vadd.f32 %v2183, %v2251
  %2253 = vmatmul.bf16.gmra.mxu0 %v1981
  %v2254 = vpop.f32.mrf.mxu0
  %v2255 = vadd.f32 %v2186, %v2254
  %v2256 = vpop.f32.mrf.mxu0
  %v2257 = vadd.f32 %v2188, %v2256
  %2258 = vdwg.mxu0
  %v2259 = vadd.f32 %v1623, %v2062
  %v2260 = vadd.f32 %v1624, %v2200
  %v2261 = vadd.f32 %v1625, %v2064
  %v2262 = vadd.f32 %v1626, %v2202
  %v2263 = vadd.f32 %v1627, %v2067
  %v2264 = vadd.f32 %v1628, %v2205
  %v2265 = vadd.f32 %v1629, %v2069
  %v2266 = vadd.f32 %v1630, %v2207
  %v2267 = vadd.f32 %v1631, %v2072
  %v2268 = vadd.f32 %v1632, %v2210
  %v2269 = vadd.f32 %v1633, %v2074
  %v2270 = vadd.f32 %v1634, %v2212
  %v2271 = vadd.f32 %v1635, %v2077
  %v2272 = vadd.f32 %v1636, %v2215
  %v2273 = vadd.f32 %v1637, %v2079
  %v2274 = vadd.f32 %v1638, %v2217
  %v2275 = vadd.f32 %v1639, %v2082
  %v2276 = vadd.f32 %v1640, %v2220
  %v2277 = vadd.f32 %v1641, %v2084
  %v2278 = vadd.f32 %v1642, %v2222
  %v2279 = vadd.f32 %v1643, %v2087
  %v2280 = vadd.f32 %v1644, %v2225
  %v2281 = vadd.f32 %v1645, %v2089
  %v2282 = vadd.f32 %v1646, %v2227
  %v2283 = vadd.f32 %v1647, %v2092
  %v2284 = vadd.f32 %v1648, %v2230
  %v2285 = vadd.f32 %v1649, %v2094
  %v2286 = vadd.f32 %v1650, %v2232
  %v2287 = vadd.f32 %v1651, %v2097
  %v2288 = vadd.f32 %v1652, %v2235
  %v2289 = vadd.f32 %v1653, %v2099
  %v2290 = vadd.f32 %v1654, %v2237
  %v2291 = vadd.f32 %v1655, %v2102
  %v2292 = vadd.f32 %v1656, %v2240
  %v2293 = vadd.f32 %v1657, %v2104
  %v2294 = vadd.f32 %v1658, %v2242
  %v2295 = vadd.f32 %v1659, %v2107
  %v2296 = vadd.f32 %v1660, %v2245
  %v2297 = vadd.f32 %v1661, %v2109
  %v2298 = vadd.f32 %v1662, %v2247
  %v2299 = vadd.f32 %v1663, %v2112
  %v2300 = vadd.f32 %v1664, %v2250
  %v2301 = vadd.f32 %v1665, %v2114
  %v2302 = vadd.f32 %v1666, %v2252
  %v2303 = vadd.f32 %v1667, %v2117
  %v2304 = vadd.f32 %v1668, %v2255
  %v2305 = vadd.f32 %v1669, %v2119
  %v2306 = vadd.f32 %v1670, %v2257
  %v2307 = vld [vmem:[%s0 + $0x40] sm:$0xff]
  %v2308 = vld [vmem:[%s0 + $0x48] sm:$0xff]
  %v2309 = vld [vmem:[%s0 + $0x50] sm:$0xff]
  %v2310 = vld [vmem:[%s0 + $0x58] sm:$0xff]
  %v2311 = vld [vmem:[%s0 + $0x60] sm:$0xff]
  %v2312 = vld [vmem:[%s0 + $0x68] sm:$0xff]
  %v2313 = vld [vmem:[%s0 + $0x70] sm:$0xff]
  %v2314 = vld [vmem:[%s0 + $0x78] sm:$0xff]
  %v2315 = vld [vmem:[%s0 + $0x80] sm:$0xff]
  %v2316 = vld [vmem:[%s0 + $0x88] sm:$0xff]
  %v2317 = vld [vmem:[%s0 + $0x90] sm:$0xff]
  %v2318 = vld [vmem:[%s0 + $0x98] sm:$0xff]
  %v2319 = vld [vmem:[%s0 + $0xa0] sm:$0xff]
  %v2320 = vld [vmem:[%s0 + $0xa8] sm:$0xff]
  %v2321 = vld [vmem:[%s0 + $0xb0] sm:$0xff]
  %v2322 = vld [vmem:[%s0 + $0xb8] sm:$0xff]
  %v2323 = vld [vmem:[%s0 + $0xc0] sm:$0xff]
  %v2324 = vld [vmem:[%s0 + $0xc8] sm:$0xff]
  %v2325 = vld [vmem:[%s0 + $0xd0] sm:$0xff]
  %v2326 = vld [vmem:[%s0 + $0xd8] sm:$0xff]
  %v2327 = vld [vmem:[%s0 + $0xe0] sm:$0xff]
  %v2328 = vld [vmem:[%s0 + $0xe8] sm:$0xff]
  %v2329 = vld [vmem:[%s0 + $0xf0] sm:$0xff]
  %v2330 = vld [vmem:[%s0 + $0xf8] sm:$0xff]
  %v2331 = vld [vmem:[%s1 + $0x300] sm:$0xff]
  %v2332 = vld [vmem:[%s1 + $0x308] sm:$0xff]
  %v2333 = vld [vmem:[%s1 + $0x310] sm:$0xff]
  %v2334 = vld [vmem:[%s1 + $0x318] sm:$0xff]
  %v2335 = vld [vmem:[%s1 + $0x320] sm:$0xff]
  %v2336 = vld [vmem:[%s1 + $0x328] sm:$0xff]
  %v2337 = vld [vmem:[%s1 + $0x330] sm:$0xff]
  %v2338 = vld [vmem:[%s1 + $0x338] sm:$0xff]
  %v2339 = vld [vmem:[%s1 + $0x340] sm:$0xff]
  %v2340 = vld [vmem:[%s1 + $0x348] sm:$0xff]
  %v2341 = vld [vmem:[%s1 + $0x350] sm:$0xff]
  %v2342 = vld [vmem:[%s1 + $0x358] sm:$0xff]
  %v2343 = vld [vmem:[%s1 + $0x360] sm:$0xff]
  %v2344 = vld [vmem:[%s1 + $0x368] sm:$0xff]
  %v2345 = vld [vmem:[%s1 + $0x370] sm:$0xff]
  %v2346 = vld [vmem:[%s1 + $0x378] sm:$0xff]
  %v2347 = vld [vmem:[%s1 + $0x380] sm:$0xff]
  %v2348 = vld [vmem:[%s1 + $0x388] sm:$0xff]
  %v2349 = vld [vmem:[%s1 + $0x390] sm:$0xff]
  %v2350 = vld [vmem:[%s1 + $0x398] sm:$0xff]
  %v2351 = vld [vmem:[%s1 + $0x3a0] sm:$0xff]
  %v2352 = vld [vmem:[%s1 + $0x3a8] sm:$0xff]
  %v2353 = vld [vmem:[%s1 + $0x3b0] sm:$0xff]
  %v2354 = vld [vmem:[%s1 + $0x3b8] sm:$0xff]
  %v2379 = vunpack.c.l.b16 %v2307
  %v2380 = vunpack.c.h.b16 %v2307
  %v2381 = vunpack.c.l.b16 %v2308
  %v2382 = vunpack.c.h.b16 %v2308
  %v2383 = vunpack.c.l.b16 %v2309
  %v2384 = vunpack.c.h.b16 %v2309
  %v2385 = vunpack.c.l.b16 %v2310
  %v2386 = vunpack.c.h.b16 %v2310
  %v2387 = vunpack.c.l.b16 %v2311
  %v2388 = vunpack.c.h.b16 %v2311
  %v2389 = vunpack.c.l.b16 %v2312
  %v2390 = vunpack.c.h.b16 %v2312
  %v2391 = vunpack.c.l.b16 %v2313
  %v2392 = vunpack.c.h.b16 %v2313
  %v2393 = vunpack.c.l.b16 %v2314
  %v2394 = vunpack.c.h.b16 %v2314
  %v2395 = vunpack.c.l.b16 %v2315
  %v2396 = vunpack.c.h.b16 %v2315
  %v2397 = vunpack.c.l.b16 %v2316
  %v2398 = vunpack.c.h.b16 %v2316
  %v2399 = vunpack.c.l.b16 %v2317
  %v2400 = vunpack.c.h.b16 %v2317
  %v2401 = vunpack.c.l.b16 %v2318
  %v2402 = vunpack.c.h.b16 %v2318
  %v2403 = vunpack.c.l.b16 %v2319
  %v2404 = vunpack.c.h.b16 %v2319
  %v2405 = vunpack.c.l.b16 %v2320
  %v2406 = vunpack.c.h.b16 %v2320
  %v2407 = vunpack.c.l.b16 %v2321
  %v2408 = vunpack.c.h.b16 %v2321
  %v2409 = vunpack.c.l.b16 %v2322
  %v2410 = vunpack.c.h.b16 %v2322
  %v2411 = vunpack.c.l.b16 %v2323
  %v2412 = vunpack.c.h.b16 %v2323
  %v2413 = vunpack.c.l.b16 %v2324
  %v2414 = vunpack.c.h.b16 %v2324
  %v2415 = vunpack.c.l.b16 %v2325
  %v2416 = vunpack.c.h.b16 %v2325
  %v2417 = vunpack.c.l.b16 %v2326
  %v2418 = vunpack.c.h.b16 %v2326
  %v2419 = vunpack.c.l.b16 %v2327
  %v2420 = vunpack.c.h.b16 %v2327
  %v2421 = vunpack.c.l.b16 %v2328
  %v2422 = vunpack.c.h.b16 %v2328
  %v2423 = vunpack.c.l.b16 %v2329
  %v2424 = vunpack.c.h.b16 %v2329
  %v2425 = vunpack.c.l.b16 %v2330
  %v2426 = vunpack.c.h.b16 %v2330
  %v2427 = vpack.c.b16 %v2381, %v2379
  %v2428 = vpack.c.b16 %v2382, %v2380
  %v2429 = vpack.c.b16 %v2385, %v2383
  %v2430 = vpack.c.b16 %v2386, %v2384
  %v2431 = vpack.c.b16 %v2389, %v2387
  %v2432 = vpack.c.b16 %v2390, %v2388
  %v2433 = vpack.c.b16 %v2393, %v2391
  %v2434 = vpack.c.b16 %v2394, %v2392
  %v2435 = vpack.c.b16 %v2397, %v2395
  %v2436 = vpack.c.b16 %v2398, %v2396
  %v2437 = vpack.c.b16 %v2401, %v2399
  %v2438 = vpack.c.b16 %v2402, %v2400
  %v2439 = vpack.c.b16 %v2405, %v2403
  %v2440 = vpack.c.b16 %v2406, %v2404
  %v2441 = vpack.c.b16 %v2409, %v2407
  %v2442 = vpack.c.b16 %v2410, %v2408
  %v2443 = vpack.c.b16 %v2413, %v2411
  %v2444 = vpack.c.b16 %v2414, %v2412
  %v2445 = vpack.c.b16 %v2417, %v2415
  %v2446 = vpack.c.b16 %v2418, %v2416
  %v2447 = vpack.c.b16 %v2421, %v2419
  %v2448 = vpack.c.b16 %v2422, %v2420
  %v2449 = vpack.c.b16 %v2425, %v2423
  %v2450 = vpack.c.b16 %v2426, %v2424
  %v2487 = vunpack.c.l.b16 %v2331
  %v2488 = vunpack.c.h.b16 %v2331
  %v2489 = vunpack.c.l.b16 %v2332
  %v2490 = vunpack.c.h.b16 %v2332
  %v2491 = vunpack.c.l.b16 %v2333
  %v2492 = vunpack.c.h.b16 %v2333
  %v2493 = vunpack.c.l.b16 %v2334
  %v2494 = vunpack.c.h.b16 %v2334
  %v2495 = vunpack.c.l.b16 %v2335
  %v2496 = vunpack.c.h.b16 %v2335
  %v2497 = vunpack.c.l.b16 %v2336
  %v2498 = vunpack.c.h.b16 %v2336
  %v2499 = vunpack.c.l.b16 %v2337
  %v2500 = vunpack.c.h.b16 %v2337
  %v2501 = vunpack.c.l.b16 %v2338
  %v2502 = vunpack.c.h.b16 %v2338
  %v2503 = vunpack.c.l.b16 %v2339
  %v2504 = vunpack.c.h.b16 %v2339
  %v2505 = vunpack.c.l.b16 %v2340
  %v2506 = vunpack.c.h.b16 %v2340
  %v2507 = vunpack.c.l.b16 %v2341
  %v2508 = vunpack.c.h.b16 %v2341
  %v2509 = vunpack.c.l.b16 %v2342
  %v2510 = vunpack.c.h.b16 %v2342
  %v2511 = vunpack.c.l.b16 %v2343
  %v2512 = vunpack.c.h.b16 %v2343
  %v2513 = vunpack.c.l.b16 %v2344
  %v2514 = vunpack.c.h.b16 %v2344
  %v2515 = vunpack.c.l.b16 %v2345
  %v2516 = vunpack.c.h.b16 %v2345
  %v2517 = vunpack.c.l.b16 %v2346
  %v2518 = vunpack.c.h.b16 %v2346
  %v2519 = vunpack.c.l.b16 %v2347
  %v2520 = vunpack.c.h.b16 %v2347
  %v2521 = vunpack.c.l.b16 %v2348
  %v2522 = vunpack.c.h.b16 %v2348
  %v2523 = vunpack.c.l.b16 %v2349
  %v2524 = vunpack.c.h.b16 %v2349
  %v2525 = vunpack.c.l.b16 %v2350
  %v2526 = vunpack.c.h.b16 %v2350
  %v2527 = vunpack.c.l.b16 %v2351
  %v2528 = vunpack.c.h.b16 %v2351
  %v2529 = vunpack.c.l.b16 %v2352
  %v2530 = vunpack.c.h.b16 %v2352
  %v2531 = vunpack.c.l.b16 %v2353
  %v2532 = vunpack.c.h.b16 %v2353
  %v2533 = vunpack.c.l.b16 %v2354
  %v2534 = vunpack.c.h.b16 %v2354
  %v2535 = vpack.c.b16 %v2489, %v2487
  %v2536 = vpack.c.b16 %v2490, %v2488
  %v2537 = vpack.c.b16 %v2493, %v2491
  %v2538 = vpack.c.b16 %v2494, %v2492
  %v2539 = vpack.c.b16 %v2497, %v2495
  %v2540 = vpack.c.b16 %v2498, %v2496
  %v2541 = vpack.c.b16 %v2501, %v2499
  %v2542 = vpack.c.b16 %v2502, %v2500
  %v2543 = vpack.c.b16 %v2505, %v2503
  %v2544 = vpack.c.b16 %v2506, %v2504
  %v2545 = vpack.c.b16 %v2509, %v2507
  %v2546 = vpack.c.b16 %v2510, %v2508
  %v2547 = vpack.c.b16 %v2513, %v2511
  %v2548 = vpack.c.b16 %v2514, %v2512
  %v2549 = vpack.c.b16 %v2517, %v2515
  %v2550 = vpack.c.b16 %v2518, %v2516
  %v2551 = vpack.c.b16 %v2521, %v2519
  %v2552 = vpack.c.b16 %v2522, %v2520
  %v2553 = vpack.c.b16 %v2525, %v2523
  %v2554 = vpack.c.b16 %v2526, %v2524
  %v2555 = vpack.c.b16 %v2529, %v2527
  %v2556 = vpack.c.b16 %v2530, %v2528
  %v2557 = vpack.c.b16 %v2533, %v2531
  %v2558 = vpack.c.b16 %v2534, %v2532
  %v2584 = vsel %vm314, %v2428, 0
  %v2587 = vsel %vm314, %v2430, 0
  %v2590 = vsel %vm314, %v2432, 0
  %v2593 = vsel %vm314, %v2434, 0
  %v2596 = vsel %vm314, %v2436, 0
  %v2599 = vsel %vm314, %v2438, 0
  %v2602 = vsel %vm314, %v2440, 0
  %v2605 = vsel %vm314, %v2442, 0
  %v2608 = vsel %vm314, %v2444, 0
  %v2611 = vsel %vm314, %v2446, 0
  %v2614 = vsel %vm314, %v2448, 0
  %v2617 = vsel %vm314, %v2450, 0
  %2619 = vmatpush.bf16.msra.mxu0 %v2549
  %2620 = vmatpush.bf16.msra.mxu0 %v2547
  %2621 = vmatpush.bf16.msra.mxu0 %v2545
  %2622 = vmatpush.bf16.msra.mxu0 %v2543
  %2623 = vmatpush.bf16.msra.mxu0 %v2541
  %2624 = vmatpush.bf16.msra.mxu0 %v2539
  %2625 = vmatpush.bf16.msra.mxu0 %v2537
  %2626 = vmatpush.bf16.msra.mxu0 %v2535
  %2627 = vmatmul.bf16.gmra.mxu0 %v2427
  %v2628 = vpop.f32.mrf.mxu0
  %v2629 = vadd.f32 0.0, %v2628
  %v2630 = vpop.f32.mrf.mxu0
  %v2631 = vadd.f32 0.0, %v2630
  %2632 = vmatmul.bf16.gmra.mxu0 %v2429
  %v2633 = vpop.f32.mrf.mxu0
  %v2634 = vadd.f32 0.0, %v2633
  %v2635 = vpop.f32.mrf.mxu0
  %v2636 = vadd.f32 0.0, %v2635
  %2637 = vmatmul.bf16.gmra.mxu0 %v2431
  %v2638 = vpop.f32.mrf.mxu0
  %v2639 = vadd.f32 0.0, %v2638
  %v2640 = vpop.f32.mrf.mxu0
  %v2641 = vadd.f32 0.0, %v2640
  %2642 = vmatmul.bf16.gmra.mxu0 %v2433
  %v2643 = vpop.f32.mrf.mxu0
  %v2644 = vadd.f32 0.0, %v2643
  %v2645 = vpop.f32.mrf.mxu0
  %v2646 = vadd.f32 0.0, %v2645
  %2647 = vmatmul.bf16.gmra.mxu0 %v2435
  %v2648 = vpop.f32.mrf.mxu0
  %v2649 = vadd.f32 0.0, %v2648
  %v2650 = vpop.f32.mrf.mxu0
  %v2651 = vadd.f32 0.0, %v2650
  %2652 = vmatmul.bf16.gmra.mxu0 %v2437
  %v2653 = vpop.f32.mrf.mxu0
  %v2654 = vadd.f32 0.0, %v2653
  %v2655 = vpop.f32.mrf.mxu0
  %v2656 = vadd.f32 0.0, %v2655
  %2657 = vmatmul.bf16.gmra.mxu0 %v2439
  %v2658 = vpop.f32.mrf.mxu0
  %v2659 = vadd.f32 0.0, %v2658
  %v2660 = vpop.f32.mrf.mxu0
  %v2661 = vadd.f32 0.0, %v2660
  %2662 = vmatmul.bf16.gmra.mxu0 %v2441
  %v2663 = vpop.f32.mrf.mxu0
  %v2664 = vadd.f32 0.0, %v2663
  %v2665 = vpop.f32.mrf.mxu0
  %v2666 = vadd.f32 0.0, %v2665
  %2667 = vmatmul.bf16.gmra.mxu0 %v2443
  %v2668 = vpop.f32.mrf.mxu0
  %v2669 = vadd.f32 0.0, %v2668
  %v2670 = vpop.f32.mrf.mxu0
  %v2671 = vadd.f32 0.0, %v2670
  %2672 = vmatmul.bf16.gmra.mxu0 %v2445
  %v2673 = vpop.f32.mrf.mxu0
  %v2674 = vadd.f32 0.0, %v2673
  %v2675 = vpop.f32.mrf.mxu0
  %v2676 = vadd.f32 0.0, %v2675
  %2677 = vmatmul.bf16.gmra.mxu0 %v2447
  %v2678 = vpop.f32.mrf.mxu0
  %v2679 = vadd.f32 0.0, %v2678
  %v2680 = vpop.f32.mrf.mxu0
  %v2681 = vadd.f32 0.0, %v2680
  %2682 = vmatmul.bf16.gmra.mxu0 %v2449
  %v2683 = vpop.f32.mrf.mxu0
  %v2684 = vadd.f32 0.0, %v2683
  %v2685 = vpop.f32.mrf.mxu0
  %v2686 = vadd.f32 0.0, %v2685
  %2687 = vdwg.mxu0
  %2688 = vmatpush.bf16.msra.mxu0 0
  %2689 = vmatpush.bf16.msra.mxu0 0
  %2690 = vmatpush.bf16.msra.mxu0 0
  %2691 = vmatpush.bf16.msra.mxu0 0
  %2692 = vmatpush.bf16.msra.mxu0 %v2557
  %2693 = vmatpush.bf16.msra.mxu0 %v2555
  %2694 = vmatpush.bf16.msra.mxu0 %v2553
  %2695 = vmatpush.bf16.msra.mxu0 %v2551
  %2696 = vmatmul.bf16.gmra.mxu0 %v2584
  %v2697 = vpop.f32.mrf.mxu0
  %v2698 = vadd.f32 %v2629, %v2697
  %v2699 = vpop.f32.mrf.mxu0
  %v2700 = vadd.f32 %v2631, %v2699
  %2701 = vmatmul.bf16.gmra.mxu0 %v2587
  %v2702 = vpop.f32.mrf.mxu0
  %v2703 = vadd.f32 %v2634, %v2702
  %v2704 = vpop.f32.mrf.mxu0
  %v2705 = vadd.f32 %v2636, %v2704
  %2706 = vmatmul.bf16.gmra.mxu0 %v2590
  %v2707 = vpop.f32.mrf.mxu0
  %v2708 = vadd.f32 %v2639, %v2707
  %v2709 = vpop.f32.mrf.mxu0
  %v2710 = vadd.f32 %v2641, %v2709
  %2711 = vmatmul.bf16.gmra.mxu0 %v2593
  %v2712 = vpop.f32.mrf.mxu0
  %v2713 = vadd.f32 %v2644, %v2712
  %v2714 = vpop.f32.mrf.mxu0
  %v2715 = vadd.f32 %v2646, %v2714
  %2716 = vmatmul.bf16.gmra.mxu0 %v2596
  %v2717 = vpop.f32.mrf.mxu0
  %v2718 = vadd.f32 %v2649, %v2717
  %v2719 = vpop.f32.mrf.mxu0
  %v2720 = vadd.f32 %v2651, %v2719
  %2721 = vmatmul.bf16.gmra.mxu0 %v2599
  %v2722 = vpop.f32.mrf.mxu0
  %v2723 = vadd.f32 %v2654, %v2722
  %v2724 = vpop.f32.mrf.mxu0
  %v2725 = vadd.f32 %v2656, %v2724
  %2726 = vmatmul.bf16.gmra.mxu0 %v2602
  %v2727 = vpop.f32.mrf.mxu0
  %v2728 = vadd.f32 %v2659, %v2727
  %v2729 = vpop.f32.mrf.mxu0
  %v2730 = vadd.f32 %v2661, %v2729
  %2731 = vmatmul.bf16.gmra.mxu0 %v2605
  %v2732 = vpop.f32.mrf.mxu0
  %v2733 = vadd.f32 %v2664, %v2732
  %v2734 = vpop.f32.mrf.mxu0
  %v2735 = vadd.f32 %v2666, %v2734
  %2736 = vmatmul.bf16.gmra.mxu0 %v2608
  %v2737 = vpop.f32.mrf.mxu0
  %v2738 = vadd.f32 %v2669, %v2737
  %v2739 = vpop.f32.mrf.mxu0
  %v2740 = vadd.f32 %v2671, %v2739
  %2741 = vmatmul.bf16.gmra.mxu0 %v2611
  %v2742 = vpop.f32.mrf.mxu0
  %v2743 = vadd.f32 %v2674, %v2742
  %v2744 = vpop.f32.mrf.mxu0
  %v2745 = vadd.f32 %v2676, %v2744
  %2746 = vmatmul.bf16.gmra.mxu0 %v2614
  %v2747 = vpop.f32.mrf.mxu0
  %v2748 = vadd.f32 %v2679, %v2747
  %v2749 = vpop.f32.mrf.mxu0
  %v2750 = vadd.f32 %v2681, %v2749
  %2751 = vmatmul.bf16.gmra.mxu0 %v2617
  %v2752 = vpop.f32.mrf.mxu0
  %v2753 = vadd.f32 %v2684, %v2752
  %v2754 = vpop.f32.mrf.mxu0
  %v2755 = vadd.f32 %v2686, %v2754
  %2756 = vdwg.mxu0
  %2757 = vmatpush.bf16.msra.mxu0 %v2550
  %2758 = vmatpush.bf16.msra.mxu0 %v2548
  %2759 = vmatpush.bf16.msra.mxu0 %v2546
  %2760 = vmatpush.bf16.msra.mxu0 %v2544
  %2761 = vmatpush.bf16.msra.mxu0 %v2542
  %2762 = vmatpush.bf16.msra.mxu0 %v2540
  %2763 = vmatpush.bf16.msra.mxu0 %v2538
  %2764 = vmatpush.bf16.msra.mxu0 %v2536
  %2765 = vmatmul.bf16.gmra.mxu0 %v2427
  %v2766 = vpop.f32.mrf.mxu0
  %v2767 = vadd.f32 0.0, %v2766
  %v2768 = vpop.f32.mrf.mxu0
  %v2769 = vadd.f32 0.0, %v2768
  %2770 = vmatmul.bf16.gmra.mxu0 %v2429
  %v2771 = vpop.f32.mrf.mxu0
  %v2772 = vadd.f32 0.0, %v2771
  %v2773 = vpop.f32.mrf.mxu0
  %v2774 = vadd.f32 0.0, %v2773
  %2775 = vmatmul.bf16.gmra.mxu0 %v2431
  %v2776 = vpop.f32.mrf.mxu0
  %v2777 = vadd.f32 0.0, %v2776
  %v2778 = vpop.f32.mrf.mxu0
  %v2779 = vadd.f32 0.0, %v2778
  %2780 = vmatmul.bf16.gmra.mxu0 %v2433
  %v2781 = vpop.f32.mrf.mxu0
  %v2782 = vadd.f32 0.0, %v2781
  %v2783 = vpop.f32.mrf.mxu0
  %v2784 = vadd.f32 0.0, %v2783
  %2785 = vmatmul.bf16.gmra.mxu0 %v2435
  %v2786 = vpop.f32.mrf.mxu0
  %v2787 = vadd.f32 0.0, %v2786
  %v2788 = vpop.f32.mrf.mxu0
  %v2789 = vadd.f32 0.0, %v2788
  %2790 = vmatmul.bf16.gmra.mxu0 %v2437
  %v2791 = vpop.f32.mrf.mxu0
  %v2792 = vadd.f32 0.0, %v2791
  %v2793 = vpop.f32.mrf.mxu0
  %v2794 = vadd.f32 0.0, %v2793
  %2795 = vmatmul.bf16.gmra.mxu0 %v2439
  %v2796 = vpop.f32.mrf.mxu0
  %v2797 = vadd.f32 0.0, %v2796
  %v2798 = vpop.f32.mrf.mxu0
  %v2799 = vadd.f32 0.0, %v2798
  %2800 = vmatmul.bf16.gmra.mxu0 %v2441
  %v2801 = vpop.f32.mrf.mxu0
  %v2802 = vadd.f32 0.0, %v2801
  %v2803 = vpop.f32.mrf.mxu0
  %v2804 = vadd.f32 0.0, %v2803
  %2805 = vmatmul.bf16.gmra.mxu0 %v2443
  %v2806 = vpop.f32.mrf.mxu0
  %v2807 = vadd.f32 0.0, %v2806
  %v2808 = vpop.f32.mrf.mxu0
  %v2809 = vadd.f32 0.0, %v2808
  %2810 = vmatmul.bf16.gmra.mxu0 %v2445
  %v2811 = vpop.f32.mrf.mxu0
  %v2812 = vadd.f32 0.0, %v2811
  %v2813 = vpop.f32.mrf.mxu0
  %v2814 = vadd.f32 0.0, %v2813
  %2815 = vmatmul.bf16.gmra.mxu0 %v2447
  %v2816 = vpop.f32.mrf.mxu0
  %v2817 = vadd.f32 0.0, %v2816
  %v2818 = vpop.f32.mrf.mxu0
  %v2819 = vadd.f32 0.0, %v2818
  %2820 = vmatmul.bf16.gmra.mxu0 %v2449
  %v2821 = vpop.f32.mrf.mxu0
  %v2822 = vadd.f32 0.0, %v2821
  %v2823 = vpop.f32.mrf.mxu0
  %v2824 = vadd.f32 0.0, %v2823
  %2825 = vdwg.mxu0
  %2826 = vmatpush.bf16.msra.mxu0 0
  %2827 = vmatpush.bf16.msra.mxu0 0
  %2828 = vmatpush.bf16.msra.mxu0 0
  %2829 = vmatpush.bf16.msra.mxu0 0
  %2830 = vmatpush.bf16.msra.mxu0 %v2558
  %2831 = vmatpush.bf16.msra.mxu0 %v2556
  %2832 = vmatpush.bf16.msra.mxu0 %v2554
  %2833 = vmatpush.bf16.msra.mxu0 %v2552
  %2834 = vmatmul.bf16.gmra.mxu0 %v2584
  %v2835 = vpop.f32.mrf.mxu0
  %v2836 = vadd.f32 %v2767, %v2835
  %v2837 = vpop.f32.mrf.mxu0
  %v2838 = vadd.f32 %v2769, %v2837
  %2839 = vmatmul.bf16.gmra.mxu0 %v2587
  %v2840 = vpop.f32.mrf.mxu0
  %v2841 = vadd.f32 %v2772, %v2840
  %v2842 = vpop.f32.mrf.mxu0
  %v2843 = vadd.f32 %v2774, %v2842
  %2844 = vmatmul.bf16.gmra.mxu0 %v2590
  %v2845 = vpop.f32.mrf.mxu0
  %v2846 = vadd.f32 %v2777, %v2845
  %v2847 = vpop.f32.mrf.mxu0
  %v2848 = vadd.f32 %v2779, %v2847
  %2849 = vmatmul.bf16.gmra.mxu0 %v2593
  %v2850 = vpop.f32.mrf.mxu0
  %v2851 = vadd.f32 %v2782, %v2850
  %v2852 = vpop.f32.mrf.mxu0
  %v2853 = vadd.f32 %v2784, %v2852
  %2854 = vmatmul.bf16.gmra.mxu0 %v2596
  %v2855 = vpop.f32.mrf.mxu0
  %v2856 = vadd.f32 %v2787, %v2855
  %v2857 = vpop.f32.mrf.mxu0
  %v2858 = vadd.f32 %v2789, %v2857
  %2859 = vmatmul.bf16.gmra.mxu0 %v2599
  %v2860 = vpop.f32.mrf.mxu0
  %v2861 = vadd.f32 %v2792, %v2860
  %v2862 = vpop.f32.mrf.mxu0
  %v2863 = vadd.f32 %v2794, %v2862
  %2864 = vmatmul.bf16.gmra.mxu0 %v2602
  %v2865 = vpop.f32.mrf.mxu0
  %v2866 = vadd.f32 %v2797, %v2865
  %v2867 = vpop.f32.mrf.mxu0
  %v2868 = vadd.f32 %v2799, %v2867
  %2869 = vmatmul.bf16.gmra.mxu0 %v2605
  %v2870 = vpop.f32.mrf.mxu0
  %v2871 = vadd.f32 %v2802, %v2870
  %v2872 = vpop.f32.mrf.mxu0
  %v2873 = vadd.f32 %v2804, %v2872
  %2874 = vmatmul.bf16.gmra.mxu0 %v2608
  %v2875 = vpop.f32.mrf.mxu0
  %v2876 = vadd.f32 %v2807, %v2875
  %v2877 = vpop.f32.mrf.mxu0
  %v2878 = vadd.f32 %v2809, %v2877
  %2879 = vmatmul.bf16.gmra.mxu0 %v2611
  %v2880 = vpop.f32.mrf.mxu0
  %v2881 = vadd.f32 %v2812, %v2880
  %v2882 = vpop.f32.mrf.mxu0
  %v2883 = vadd.f32 %v2814, %v2882
  %2884 = vmatmul.bf16.gmra.mxu0 %v2614
  %v2885 = vpop.f32.mrf.mxu0
  %v2886 = vadd.f32 %v2817, %v2885
  %v2887 = vpop.f32.mrf.mxu0
  %v2888 = vadd.f32 %v2819, %v2887
  %2889 = vmatmul.bf16.gmra.mxu0 %v2617
  %v2890 = vpop.f32.mrf.mxu0
  %v2891 = vadd.f32 %v2822, %v2890
  %v2892 = vpop.f32.mrf.mxu0
  %v2893 = vadd.f32 %v2824, %v2892
  %2894 = vdwg.mxu0
  %v2895 = vadd.f32 %v2259, %v2698
  %v2896 = vadd.f32 %v2260, %v2836
  %v2897 = vadd.f32 %v2261, %v2700
  %v2898 = vadd.f32 %v2262, %v2838
  %v2899 = vadd.f32 %v2263, %v2703
  %v2900 = vadd.f32 %v2264, %v2841
  %v2901 = vadd.f32 %v2265, %v2705
  %v2902 = vadd.f32 %v2266, %v2843
  %v2903 = vadd.f32 %v2267, %v2708
  %v2904 = vadd.f32 %v2268, %v2846
  %v2905 = vadd.f32 %v2269, %v2710
  %v2906 = vadd.f32 %v2270, %v2848
  %v2907 = vadd.f32 %v2271, %v2713
  %v2908 = vadd.f32 %v2272, %v2851
  %v2909 = vadd.f32 %v2273, %v2715
  %v2910 = vadd.f32 %v2274, %v2853
  %v2911 = vadd.f32 %v2275, %v2718
  %v2912 = vadd.f32 %v2276, %v2856
  %v2913 = vadd.f32 %v2277, %v2720
  %v2914 = vadd.f32 %v2278, %v2858
  %v2915 = vadd.f32 %v2279, %v2723
  %v2916 = vadd.f32 %v2280, %v2861
  %v2917 = vadd.f32 %v2281, %v2725
  %v2918 = vadd.f32 %v2282, %v2863
  %v2919 = vadd.f32 %v2283, %v2728
  %v2920 = vadd.f32 %v2284, %v2866
  %v2921 = vadd.f32 %v2285, %v2730
  %v2922 = vadd.f32 %v2286, %v2868
  %v2923 = vadd.f32 %v2287, %v2733
  %v2924 = vadd.f32 %v2288, %v2871
  %v2925 = vadd.f32 %v2289, %v2735
  %v2926 = vadd.f32 %v2290, %v2873
  %v2927 = vadd.f32 %v2291, %v2738
  %v2928 = vadd.f32 %v2292, %v2876
  %v2929 = vadd.f32 %v2293, %v2740
  %v2930 = vadd.f32 %v2294, %v2878
  %v2931 = vadd.f32 %v2295, %v2743
  %v2932 = vadd.f32 %v2296, %v2881
  %v2933 = vadd.f32 %v2297, %v2745
  %v2934 = vadd.f32 %v2298, %v2883
  %v2935 = vadd.f32 %v2299, %v2748
  %v2936 = vadd.f32 %v2300, %v2886
  %v2937 = vadd.f32 %v2301, %v2750
  %v2938 = vadd.f32 %v2302, %v2888
  %v2939 = vadd.f32 %v2303, %v2753
  %v2940 = vadd.f32 %v2304, %v2891
  %v2941 = vadd.f32 %v2305, %v2755
  %v2942 = vadd.f32 %v2306, %v2893
  %v2943 = vld [vmem:[%s0 + $0x50] sm:$0xff]
  %v2944 = vld [vmem:[%s0 + $0x58] sm:$0xff]
  %v2945 = vld [vmem:[%s0 + $0x60] sm:$0xff]
  %v2946 = vld [vmem:[%s0 + $0x68] sm:$0xff]
  %v2947 = vld [vmem:[%s0 + $0x70] sm:$0xff]
  %v2948 = vld [vmem:[%s0 + $0x78] sm:$0xff]
  %v2949 = vld [vmem:[%s0 + $0x80] sm:$0xff]
  %v2950 = vld [vmem:[%s0 + $0x88] sm:$0xff]
  %v2951 = vld [vmem:[%s0 + $0x90] sm:$0xff]
  %v2952 = vld [vmem:[%s0 + $0x98] sm:$0xff]
  %v2953 = vld [vmem:[%s0 + $0xa0] sm:$0xff]
  %v2954 = vld [vmem:[%s0 + $0xa8] sm:$0xff]
  %v2955 = vld [vmem:[%s0 + $0xb0] sm:$0xff]
  %v2956 = vld [vmem:[%s0 + $0xb8] sm:$0xff]
  %v2957 = vld [vmem:[%s0 + $0xc0] sm:$0xff]
  %v2958 = vld [vmem:[%s0 + $0xc8] sm:$0xff]
  %v2959 = vld [vmem:[%s0 + $0xd0] sm:$0xff]
  %v2960 = vld [vmem:[%s0 + $0xd8] sm:$0xff]
  %v2961 = vld [vmem:[%s0 + $0xe0] sm:$0xff]
  %v2962 = vld [vmem:[%s0 + $0xe8] sm:$0xff]
  %v2963 = vld [vmem:[%s0 + $0xf0] sm:$0xff]
  %v2964 = vld [vmem:[%s0 + $0xf8] sm:$0xff]
  %v2965 = vld [vmem:[%s0 + $0x100] sm:$0xff]
  %v2966 = vld [vmem:[%s0 + $0x108] sm:$0xff]
  %v2967 = vld [vmem:[%s1 + $0x3c0] sm:$0xff]
  %v2968 = vld [vmem:[%s1 + $0x3c8] sm:$0xff]
  %v2969 = vld [vmem:[%s1 + $0x3d0] sm:$0xff]
  %v2970 = vld [vmem:[%s1 + $0x3d8] sm:$0xff]
  %v2971 = vld [vmem:[%s1 + $0x3e0] sm:$0xff]
  %v2972 = vld [vmem:[%s1 + $0x3e8] sm:$0xff]
  %v2973 = vld [vmem:[%s1 + $0x3f0] sm:$0xff]
  %v2974 = vld [vmem:[%s1 + $0x3f8] sm:$0xff]
  %v2975 = vld [vmem:[%s1 + $0x400] sm:$0xff]
  %v2976 = vld [vmem:[%s1 + $0x408] sm:$0xff]
  %v2977 = vld [vmem:[%s1 + $0x410] sm:$0xff]
  %v2978 = vld [vmem:[%s1 + $0x418] sm:$0xff]
  %v2979 = vld [vmem:[%s1 + $0x420] sm:$0xff]
  %v2980 = vld [vmem:[%s1 + $0x428] sm:$0xff]
  %v2981 = vld [vmem:[%s1 + $0x430] sm:$0xff]
  %v2982 = vld [vmem:[%s1 + $0x438] sm:$0xff]
  %v2983 = vld [vmem:[%s1 + $0x440] sm:$0xff]
  %v2984 = vld [vmem:[%s1 + $0x448] sm:$0xff]
  %v2985 = vld [vmem:[%s1 + $0x450] sm:$0xff]
  %v2986 = vld [vmem:[%s1 + $0x458] sm:$0xff]
  %v2987 = vld [vmem:[%s1 + $0x460] sm:$0xff]
  %v2988 = vld [vmem:[%s1 + $0x468] sm:$0xff]
  %v2989 = vld [vmem:[%s1 + $0x470] sm:$0xff]
  %v2990 = vld [vmem:[%s1 + $0x478] sm:$0xff]
  %v3015 = vunpack.c.l.b16 %v2943
  %v3016 = vunpack.c.h.b16 %v2943
  %v3017 = vunpack.c.l.b16 %v2944
  %v3018 = vunpack.c.h.b16 %v2944
  %v3019 = vunpack.c.l.b16 %v2945
  %v3020 = vunpack.c.h.b16 %v2945
  %v3021 = vunpack.c.l.b16 %v2946
  %v3022 = vunpack.c.h.b16 %v2946
  %v3023 = vunpack.c.l.b16 %v2947
  %v3024 = vunpack.c.h.b16 %v2947
  %v3025 = vunpack.c.l.b16 %v2948
  %v3026 = vunpack.c.h.b16 %v2948
  %v3027 = vunpack.c.l.b16 %v2949
  %v3028 = vunpack.c.h.b16 %v2949
  %v3029 = vunpack.c.l.b16 %v2950
  %v3030 = vunpack.c.h.b16 %v2950
  %v3031 = vunpack.c.l.b16 %v2951
  %v3032 = vunpack.c.h.b16 %v2951
  %v3033 = vunpack.c.l.b16 %v2952
  %v3034 = vunpack.c.h.b16 %v2952
  %v3035 = vunpack.c.l.b16 %v2953
  %v3036 = vunpack.c.h.b16 %v2953
  %v3037 = vunpack.c.l.b16 %v2954
  %v3038 = vunpack.c.h.b16 %v2954
  %v3039 = vunpack.c.l.b16 %v2955
  %v3040 = vunpack.c.h.b16 %v2955
  %v3041 = vunpack.c.l.b16 %v2956
  %v3042 = vunpack.c.h.b16 %v2956
  %v3043 = vunpack.c.l.b16 %v2957
  %v3044 = vunpack.c.h.b16 %v2957
  %v3045 = vunpack.c.l.b16 %v2958
  %v3046 = vunpack.c.h.b16 %v2958
  %v3047 = vunpack.c.l.b16 %v2959
  %v3048 = vunpack.c.h.b16 %v2959
  %v3049 = vunpack.c.l.b16 %v2960
  %v3050 = vunpack.c.h.b16 %v2960
  %v3051 = vunpack.c.l.b16 %v2961
  %v3052 = vunpack.c.h.b16 %v2961
  %v3053 = vunpack.c.l.b16 %v2962
  %v3054 = vunpack.c.h.b16 %v2962
  %v3055 = vunpack.c.l.b16 %v2963
  %v3056 = vunpack.c.h.b16 %v2963
  %v3057 = vunpack.c.l.b16 %v2964
  %v3058 = vunpack.c.h.b16 %v2964
  %v3059 = vunpack.c.l.b16 %v2965
  %v3060 = vunpack.c.h.b16 %v2965
  %v3061 = vunpack.c.l.b16 %v2966
  %v3062 = vunpack.c.h.b16 %v2966
  %v3063 = vpack.c.b16 %v3017, %v3015
  %v3064 = vpack.c.b16 %v3018, %v3016
  %v3065 = vpack.c.b16 %v3021, %v3019
  %v3066 = vpack.c.b16 %v3022, %v3020
  %v3067 = vpack.c.b16 %v3025, %v3023
  %v3068 = vpack.c.b16 %v3026, %v3024
  %v3069 = vpack.c.b16 %v3029, %v3027
  %v3070 = vpack.c.b16 %v3030, %v3028
  %v3071 = vpack.c.b16 %v3033, %v3031
  %v3072 = vpack.c.b16 %v3034, %v3032
  %v3073 = vpack.c.b16 %v3037, %v3035
  %v3074 = vpack.c.b16 %v3038, %v3036
  %v3075 = vpack.c.b16 %v3041, %v3039
  %v3076 = vpack.c.b16 %v3042, %v3040
  %v3077 = vpack.c.b16 %v3045, %v3043
  %v3078 = vpack.c.b16 %v3046, %v3044
  %v3079 = vpack.c.b16 %v3049, %v3047
  %v3080 = vpack.c.b16 %v3050, %v3048
  %v3081 = vpack.c.b16 %v3053, %v3051
  %v3082 = vpack.c.b16 %v3054, %v3052
  %v3083 = vpack.c.b16 %v3057, %v3055
  %v3084 = vpack.c.b16 %v3058, %v3056
  %v3085 = vpack.c.b16 %v3061, %v3059
  %v3086 = vpack.c.b16 %v3062, %v3060
  %v3123 = vunpack.c.l.b16 %v2967
  %v3124 = vunpack.c.h.b16 %v2967
  %v3125 = vunpack.c.l.b16 %v2968
  %v3126 = vunpack.c.h.b16 %v2968
  %v3127 = vunpack.c.l.b16 %v2969
  %v3128 = vunpack.c.h.b16 %v2969
  %v3129 = vunpack.c.l.b16 %v2970
  %v3130 = vunpack.c.h.b16 %v2970
  %v3131 = vunpack.c.l.b16 %v2971
  %v3132 = vunpack.c.h.b16 %v2971
  %v3133 = vunpack.c.l.b16 %v2972
  %v3134 = vunpack.c.h.b16 %v2972
  %v3135 = vunpack.c.l.b16 %v2973
  %v3136 = vunpack.c.h.b16 %v2973
  %v3137 = vunpack.c.l.b16 %v2974
  %v3138 = vunpack.c.h.b16 %v2974
  %v3139 = vunpack.c.l.b16 %v2975
  %v3140 = vunpack.c.h.b16 %v2975
  %v3141 = vunpack.c.l.b16 %v2976
  %v3142 = vunpack.c.h.b16 %v2976
  %v3143 = vunpack.c.l.b16 %v2977
  %v3144 = vunpack.c.h.b16 %v2977
  %v3145 = vunpack.c.l.b16 %v2978
  %v3146 = vunpack.c.h.b16 %v2978
  %v3147 = vunpack.c.l.b16 %v2979
  %v3148 = vunpack.c.h.b16 %v2979
  %v3149 = vunpack.c.l.b16 %v2980
  %v3150 = vunpack.c.h.b16 %v2980
  %v3151 = vunpack.c.l.b16 %v2981
  %v3152 = vunpack.c.h.b16 %v2981
  %v3153 = vunpack.c.l.b16 %v2982
  %v3154 = vunpack.c.h.b16 %v2982
  %v3155 = vunpack.c.l.b16 %v2983
  %v3156 = vunpack.c.h.b16 %v2983
  %v3157 = vunpack.c.l.b16 %v2984
  %v3158 = vunpack.c.h.b16 %v2984
  %v3159 = vunpack.c.l.b16 %v2985
  %v3160 = vunpack.c.h.b16 %v2985
  %v3161 = vunpack.c.l.b16 %v2986
  %v3162 = vunpack.c.h.b16 %v2986
  %v3163 = vunpack.c.l.b16 %v2987
  %v3164 = vunpack.c.h.b16 %v2987
  %v3165 = vunpack.c.l.b16 %v2988
  %v3166 = vunpack.c.h.b16 %v2988
  %v3167 = vunpack.c.l.b16 %v2989
  %v3168 = vunpack.c.h.b16 %v2989
  %v3169 = vunpack.c.l.b16 %v2990
  %v3170 = vunpack.c.h.b16 %v2990
  %v3171 = vpack.c.b16 %v3125, %v3123
  %v3172 = vpack.c.b16 %v3126, %v3124
  %v3173 = vpack.c.b16 %v3129, %v3127
  %v3174 = vpack.c.b16 %v3130, %v3128
  %v3175 = vpack.c.b16 %v3133, %v3131
  %v3176 = vpack.c.b16 %v3134, %v3132
  %v3177 = vpack.c.b16 %v3137, %v3135
  %v3178 = vpack.c.b16 %v3138, %v3136
  %v3179 = vpack.c.b16 %v3141, %v3139
  %v3180 = vpack.c.b16 %v3142, %v3140
  %v3181 = vpack.c.b16 %v3145, %v3143
  %v3182 = vpack.c.b16 %v3146, %v3144
  %v3183 = vpack.c.b16 %v3149, %v3147
  %v3184 = vpack.c.b16 %v3150, %v3148
  %v3185 = vpack.c.b16 %v3153, %v3151
  %v3186 = vpack.c.b16 %v3154, %v3152
  %v3187 = vpack.c.b16 %v3157, %v3155
  %v3188 = vpack.c.b16 %v3158, %v3156
  %v3189 = vpack.c.b16 %v3161, %v3159
  %v3190 = vpack.c.b16 %v3162, %v3160
  %v3191 = vpack.c.b16 %v3165, %v3163
  %v3192 = vpack.c.b16 %v3166, %v3164
  %v3193 = vpack.c.b16 %v3169, %v3167
  %v3194 = vpack.c.b16 %v3170, %v3168
  %v3220 = vsel %vm314, %v3064, 0
  %v3223 = vsel %vm314, %v3066, 0
  %v3226 = vsel %vm314, %v3068, 0
  %v3229 = vsel %vm314, %v3070, 0
  %v3232 = vsel %vm314, %v3072, 0
  %v3235 = vsel %vm314, %v3074, 0
  %v3238 = vsel %vm314, %v3076, 0
  %v3241 = vsel %vm314, %v3078, 0
  %v3244 = vsel %vm314, %v3080, 0
  %v3247 = vsel %vm314, %v3082, 0
  %v3250 = vsel %vm314, %v3084, 0
  %v3253 = vsel %vm314, %v3086, 0
  %3255 = vmatpush.bf16.msra.mxu0 %v3185
  %3256 = vmatpush.bf16.msra.mxu0 %v3183
  %3257 = vmatpush.bf16.msra.mxu0 %v3181
  %3258 = vmatpush.bf16.msra.mxu0 %v3179
  %3259 = vmatpush.bf16.msra.mxu0 %v3177
  %3260 = vmatpush.bf16.msra.mxu0 %v3175
  %3261 = vmatpush.bf16.msra.mxu0 %v3173
  %3262 = vmatpush.bf16.msra.mxu0 %v3171
  %3263 = vmatmul.bf16.gmra.mxu0 %v3063
  %v3264 = vpop.f32.mrf.mxu0
  %v3265 = vadd.f32 0.0, %v3264
  %v3266 = vpop.f32.mrf.mxu0
  %v3267 = vadd.f32 0.0, %v3266
  %3268 = vmatmul.bf16.gmra.mxu0 %v3065
  %v3269 = vpop.f32.mrf.mxu0
  %v3270 = vadd.f32 0.0, %v3269
  %v3271 = vpop.f32.mrf.mxu0
  %v3272 = vadd.f32 0.0, %v3271
  %3273 = vmatmul.bf16.gmra.mxu0 %v3067
  %v3274 = vpop.f32.mrf.mxu0
  %v3275 = vadd.f32 0.0, %v3274
  %v3276 = vpop.f32.mrf.mxu0
  %v3277 = vadd.f32 0.0, %v3276
  %3278 = vmatmul.bf16.gmra.mxu0 %v3069
  %v3279 = vpop.f32.mrf.mxu0
  %v3280 = vadd.f32 0.0, %v3279
  %v3281 = vpop.f32.mrf.mxu0
  %v3282 = vadd.f32 0.0, %v3281
  %3283 = vmatmul.bf16.gmra.mxu0 %v3071
  %v3284 = vpop.f32.mrf.mxu0
  %v3285 = vadd.f32 0.0, %v3284
  %v3286 = vpop.f32.mrf.mxu0
  %v3287 = vadd.f32 0.0, %v3286
  %3288 = vmatmul.bf16.gmra.mxu0 %v3073
  %v3289 = vpop.f32.mrf.mxu0
  %v3290 = vadd.f32 0.0, %v3289
  %v3291 = vpop.f32.mrf.mxu0
  %v3292 = vadd.f32 0.0, %v3291
  %3293 = vmatmul.bf16.gmra.mxu0 %v3075
  %v3294 = vpop.f32.mrf.mxu0
  %v3295 = vadd.f32 0.0, %v3294
  %v3296 = vpop.f32.mrf.mxu0
  %v3297 = vadd.f32 0.0, %v3296
  %3298 = vmatmul.bf16.gmra.mxu0 %v3077
  %v3299 = vpop.f32.mrf.mxu0
  %v3300 = vadd.f32 0.0, %v3299
  %v3301 = vpop.f32.mrf.mxu0
  %v3302 = vadd.f32 0.0, %v3301
  %3303 = vmatmul.bf16.gmra.mxu0 %v3079
  %v3304 = vpop.f32.mrf.mxu0
  %v3305 = vadd.f32 0.0, %v3304
  %v3306 = vpop.f32.mrf.mxu0
  %v3307 = vadd.f32 0.0, %v3306
  %3308 = vmatmul.bf16.gmra.mxu0 %v3081
  %v3309 = vpop.f32.mrf.mxu0
  %v3310 = vadd.f32 0.0, %v3309
  %v3311 = vpop.f32.mrf.mxu0
  %v3312 = vadd.f32 0.0, %v3311
  %3313 = vmatmul.bf16.gmra.mxu0 %v3083
  %v3314 = vpop.f32.mrf.mxu0
  %v3315 = vadd.f32 0.0, %v3314
  %v3316 = vpop.f32.mrf.mxu0
  %v3317 = vadd.f32 0.0, %v3316
  %3318 = vmatmul.bf16.gmra.mxu0 %v3085
  %v3319 = vpop.f32.mrf.mxu0
  %v3320 = vadd.f32 0.0, %v3319
  %v3321 = vpop.f32.mrf.mxu0
  %v3322 = vadd.f32 0.0, %v3321
  %3323 = vdwg.mxu0
  %3324 = vmatpush.bf16.msra.mxu0 0
  %3325 = vmatpush.bf16.msra.mxu0 0
  %3326 = vmatpush.bf16.msra.mxu0 0
  %3327 = vmatpush.bf16.msra.mxu0 0
  %3328 = vmatpush.bf16.msra.mxu0 %v3193
  %3329 = vmatpush.bf16.msra.mxu0 %v3191
  %3330 = vmatpush.bf16.msra.mxu0 %v3189
  %3331 = vmatpush.bf16.msra.mxu0 %v3187
  %3332 = vmatmul.bf16.gmra.mxu0 %v3220
  %v3333 = vpop.f32.mrf.mxu0
  %v3334 = vadd.f32 %v3265, %v3333
  %v3335 = vpop.f32.mrf.mxu0
  %v3336 = vadd.f32 %v3267, %v3335
  %3337 = vmatmul.bf16.gmra.mxu0 %v3223
  %v3338 = vpop.f32.mrf.mxu0
  %v3339 = vadd.f32 %v3270, %v3338
  %v3340 = vpop.f32.mrf.mxu0
  %v3341 = vadd.f32 %v3272, %v3340
  %3342 = vmatmul.bf16.gmra.mxu0 %v3226
  %v3343 = vpop.f32.mrf.mxu0
  %v3344 = vadd.f32 %v3275, %v3343
  %v3345 = vpop.f32.mrf.mxu0
  %v3346 = vadd.f32 %v3277, %v3345
  %3347 = vmatmul.bf16.gmra.mxu0 %v3229
  %v3348 = vpop.f32.mrf.mxu0
  %v3349 = vadd.f32 %v3280, %v3348
  %v3350 = vpop.f32.mrf.mxu0
  %v3351 = vadd.f32 %v3282, %v3350
  %3352 = vmatmul.bf16.gmra.mxu0 %v3232
  %v3353 = vpop.f32.mrf.mxu0
  %v3354 = vadd.f32 %v3285, %v3353
  %v3355 = vpop.f32.mrf.mxu0
  %v3356 = vadd.f32 %v3287, %v3355
  %3357 = vmatmul.bf16.gmra.mxu0 %v3235
  %v3358 = vpop.f32.mrf.mxu0
  %v3359 = vadd.f32 %v3290, %v3358
  %v3360 = vpop.f32.mrf.mxu0
  %v3361 = vadd.f32 %v3292, %v3360
  %3362 = vmatmul.bf16.gmra.mxu0 %v3238
  %v3363 = vpop.f32.mrf.mxu0
  %v3364 = vadd.f32 %v3295, %v3363
  %v3365 = vpop.f32.mrf.mxu0
  %v3366 = vadd.f32 %v3297, %v3365
  %3367 = vmatmul.bf16.gmra.mxu0 %v3241
  %v3368 = vpop.f32.mrf.mxu0
  %v3369 = vadd.f32 %v3300, %v3368
  %v3370 = vpop.f32.mrf.mxu0
  %v3371 = vadd.f32 %v3302, %v3370
  %3372 = vmatmul.bf16.gmra.mxu0 %v3244
  %v3373 = vpop.f32.mrf.mxu0
  %v3374 = vadd.f32 %v3305, %v3373
  %v3375 = vpop.f32.mrf.mxu0
  %v3376 = vadd.f32 %v3307, %v3375
  %3377 = vmatmul.bf16.gmra.mxu0 %v3247
  %v3378 = vpop.f32.mrf.mxu0
  %v3379 = vadd.f32 %v3310, %v3378
  %v3380 = vpop.f32.mrf.mxu0
  %v3381 = vadd.f32 %v3312, %v3380
  %3382 = vmatmul.bf16.gmra.mxu0 %v3250
  %v3383 = vpop.f32.mrf.mxu0
  %v3384 = vadd.f32 %v3315, %v3383
  %v3385 = vpop.f32.mrf.mxu0
  %v3386 = vadd.f32 %v3317, %v3385
  %3387 = vmatmul.bf16.gmra.mxu0 %v3253
  %v3388 = vpop.f32.mrf.mxu0
  %v3389 = vadd.f32 %v3320, %v3388
  %v3390 = vpop.f32.mrf.mxu0
  %v3391 = vadd.f32 %v3322, %v3390
  %3392 = vdwg.mxu0
  %3393 = vmatpush.bf16.msra.mxu0 %v3186
  %3394 = vmatpush.bf16.msra.mxu0 %v3184
  %3395 = vmatpush.bf16.msra.mxu0 %v3182
  %3396 = vmatpush.bf16.msra.mxu0 %v3180
  %3397 = vmatpush.bf16.msra.mxu0 %v3178
  %3398 = vmatpush.bf16.msra.mxu0 %v3176
  %3399 = vmatpush.bf16.msra.mxu0 %v3174
  %3400 = vmatpush.bf16.msra.mxu0 %v3172
  %3401 = vmatmul.bf16.gmra.mxu0 %v3063
  %v3402 = vpop.f32.mrf.mxu0
  %v3403 = vadd.f32 0.0, %v3402
  %v3404 = vpop.f32.mrf.mxu0
  %v3405 = vadd.f32 0.0, %v3404
  %3406 = vmatmul.bf16.gmra.mxu0 %v3065
  %v3407 = vpop.f32.mrf.mxu0
  %v3408 = vadd.f32 0.0, %v3407
  %v3409 = vpop.f32.mrf.mxu0
  %v3410 = vadd.f32 0.0, %v3409
  %3411 = vmatmul.bf16.gmra.mxu0 %v3067
  %v3412 = vpop.f32.mrf.mxu0
  %v3413 = vadd.f32 0.0, %v3412
  %v3414 = vpop.f32.mrf.mxu0
  %v3415 = vadd.f32 0.0, %v3414
  %3416 = vmatmul.bf16.gmra.mxu0 %v3069
  %v3417 = vpop.f32.mrf.mxu0
  %v3418 = vadd.f32 0.0, %v3417
  %v3419 = vpop.f32.mrf.mxu0
  %v3420 = vadd.f32 0.0, %v3419
  %3421 = vmatmul.bf16.gmra.mxu0 %v3071
  %v3422 = vpop.f32.mrf.mxu0
  %v3423 = vadd.f32 0.0, %v3422
  %v3424 = vpop.f32.mrf.mxu0
  %v3425 = vadd.f32 0.0, %v3424
  %3426 = vmatmul.bf16.gmra.mxu0 %v3073
  %v3427 = vpop.f32.mrf.mxu0
  %v3428 = vadd.f32 0.0, %v3427
  %v3429 = vpop.f32.mrf.mxu0
  %v3430 = vadd.f32 0.0, %v3429
  %3431 = vmatmul.bf16.gmra.mxu0 %v3075
  %v3432 = vpop.f32.mrf.mxu0
  %v3433 = vadd.f32 0.0, %v3432
  %v3434 = vpop.f32.mrf.mxu0
  %v3435 = vadd.f32 0.0, %v3434
  %3436 = vmatmul.bf16.gmra.mxu0 %v3077
  %v3437 = vpop.f32.mrf.mxu0
  %v3438 = vadd.f32 0.0, %v3437
  %v3439 = vpop.f32.mrf.mxu0
  %v3440 = vadd.f32 0.0, %v3439
  %3441 = vmatmul.bf16.gmra.mxu0 %v3079
  %v3442 = vpop.f32.mrf.mxu0
  %v3443 = vadd.f32 0.0, %v3442
  %v3444 = vpop.f32.mrf.mxu0
  %v3445 = vadd.f32 0.0, %v3444
  %3446 = vmatmul.bf16.gmra.mxu0 %v3081
  %v3447 = vpop.f32.mrf.mxu0
  %v3448 = vadd.f32 0.0, %v3447
  %v3449 = vpop.f32.mrf.mxu0
  %v3450 = vadd.f32 0.0, %v3449
  %3451 = vmatmul.bf16.gmra.mxu0 %v3083
  %v3452 = vpop.f32.mrf.mxu0
  %v3453 = vadd.f32 0.0, %v3452
  %v3454 = vpop.f32.mrf.mxu0
  %v3455 = vadd.f32 0.0, %v3454
  %3456 = vmatmul.bf16.gmra.mxu0 %v3085
  %v3457 = vpop.f32.mrf.mxu0
  %v3458 = vadd.f32 0.0, %v3457
  %v3459 = vpop.f32.mrf.mxu0
  %v3460 = vadd.f32 0.0, %v3459
  %3461 = vdwg.mxu0
  %3462 = vmatpush.bf16.msra.mxu0 0
  %3463 = vmatpush.bf16.msra.mxu0 0
  %3464 = vmatpush.bf16.msra.mxu0 0
  %3465 = vmatpush.bf16.msra.mxu0 0
  %3466 = vmatpush.bf16.msra.mxu0 %v3194
  %3467 = vmatpush.bf16.msra.mxu0 %v3192
  %3468 = vmatpush.bf16.msra.mxu0 %v3190
  %3469 = vmatpush.bf16.msra.mxu0 %v3188
  %3470 = vmatmul.bf16.gmra.mxu0 %v3220
  %v3471 = vpop.f32.mrf.mxu0
  %v3472 = vadd.f32 %v3403, %v3471
  %v3473 = vpop.f32.mrf.mxu0
  %v3474 = vadd.f32 %v3405, %v3473
  %3475 = vmatmul.bf16.gmra.mxu0 %v3223
  %v3476 = vpop.f32.mrf.mxu0
  %v3477 = vadd.f32 %v3408, %v3476
  %v3478 = vpop.f32.mrf.mxu0
  %v3479 = vadd.f32 %v3410, %v3478
  %3480 = vmatmul.bf16.gmra.mxu0 %v3226
  %v3481 = vpop.f32.mrf.mxu0
  %v3482 = vadd.f32 %v3413, %v3481
  %v3483 = vpop.f32.mrf.mxu0
  %v3484 = vadd.f32 %v3415, %v3483
  %3485 = vmatmul.bf16.gmra.mxu0 %v3229
  %v3486 = vpop.f32.mrf.mxu0
  %v3487 = vadd.f32 %v3418, %v3486
  %v3488 = vpop.f32.mrf.mxu0
  %v3489 = vadd.f32 %v3420, %v3488
  %3490 = vmatmul.bf16.gmra.mxu0 %v3232
  %v3491 = vpop.f32.mrf.mxu0
  %v3492 = vadd.f32 %v3423, %v3491
  %v3493 = vpop.f32.mrf.mxu0
  %v3494 = vadd.f32 %v3425, %v3493
  %3495 = vmatmul.bf16.gmra.mxu0 %v3235
  %v3496 = vpop.f32.mrf.mxu0
  %v3497 = vadd.f32 %v3428, %v3496
  %v3498 = vpop.f32.mrf.mxu0
  %v3499 = vadd.f32 %v3430, %v3498
  %3500 = vmatmul.bf16.gmra.mxu0 %v3238
  %v3501 = vpop.f32.mrf.mxu0
  %v3502 = vadd.f32 %v3433, %v3501
  %v3503 = vpop.f32.mrf.mxu0
  %v3504 = vadd.f32 %v3435, %v3503
  %3505 = vmatmul.bf16.gmra.mxu0 %v3241
  %v3506 = vpop.f32.mrf.mxu0
  %v3507 = vadd.f32 %v3438, %v3506
  %v3508 = vpop.f32.mrf.mxu0
  %v3509 = vadd.f32 %v3440, %v3508
  %3510 = vmatmul.bf16.gmra.mxu0 %v3244
  %v3511 = vpop.f32.mrf.mxu0
  %v3512 = vadd.f32 %v3443, %v3511
  %v3513 = vpop.f32.mrf.mxu0
  %v3514 = vadd.f32 %v3445, %v3513
  %3515 = vmatmul.bf16.gmra.mxu0 %v3247
  %v3516 = vpop.f32.mrf.mxu0
  %v3517 = vadd.f32 %v3448, %v3516
  %v3518 = vpop.f32.mrf.mxu0
  %v3519 = vadd.f32 %v3450, %v3518
  %3520 = vmatmul.bf16.gmra.mxu0 %v3250
  %v3521 = vpop.f32.mrf.mxu0
  %v3522 = vadd.f32 %v3453, %v3521
  %v3523 = vpop.f32.mrf.mxu0
  %v3524 = vadd.f32 %v3455, %v3523
  %3525 = vmatmul.bf16.gmra.mxu0 %v3253
  %v3526 = vpop.f32.mrf.mxu0
  %v3527 = vadd.f32 %v3458, %v3526
  %v3528 = vpop.f32.mrf.mxu0
  %v3529 = vadd.f32 %v3460, %v3528
  %3530 = vdwg.mxu0
  %v3531 = vadd.f32 %v2895, %v3334
  %v3532 = vadd.f32 %v2896, %v3472
  %v3533 = vadd.f32 %v2897, %v3336
  %v3534 = vadd.f32 %v2898, %v3474
  %v3535 = vadd.f32 %v2899, %v3339
  %v3536 = vadd.f32 %v2900, %v3477
  %v3537 = vadd.f32 %v2901, %v3341
  %v3538 = vadd.f32 %v2902, %v3479
  %v3539 = vadd.f32 %v2903, %v3344
  %v3540 = vadd.f32 %v2904, %v3482
  %v3541 = vadd.f32 %v2905, %v3346
  %v3542 = vadd.f32 %v2906, %v3484
  %v3543 = vadd.f32 %v2907, %v3349
  %v3544 = vadd.f32 %v2908, %v3487
  %v3545 = vadd.f32 %v2909, %v3351
  %v3546 = vadd.f32 %v2910, %v3489
  %v3547 = vadd.f32 %v2911, %v3354
  %v3548 = vadd.f32 %v2912, %v3492
  %v3549 = vadd.f32 %v2913, %v3356
  %v3550 = vadd.f32 %v2914, %v3494
  %v3551 = vadd.f32 %v2915, %v3359
  %v3552 = vadd.f32 %v2916, %v3497
  %v3553 = vadd.f32 %v2917, %v3361
  %v3554 = vadd.f32 %v2918, %v3499
  %v3555 = vadd.f32 %v2919, %v3364
  %v3556 = vadd.f32 %v2920, %v3502
  %v3557 = vadd.f32 %v2921, %v3366
  %v3558 = vadd.f32 %v2922, %v3504
  %v3559 = vadd.f32 %v2923, %v3369
  %v3560 = vadd.f32 %v2924, %v3507
  %v3561 = vadd.f32 %v2925, %v3371
  %v3562 = vadd.f32 %v2926, %v3509
  %v3563 = vadd.f32 %v2927, %v3374
  %v3564 = vadd.f32 %v2928, %v3512
  %v3565 = vadd.f32 %v2929, %v3376
  %v3566 = vadd.f32 %v2930, %v3514
  %v3567 = vadd.f32 %v2931, %v3379
  %v3568 = vadd.f32 %v2932, %v3517
  %v3569 = vadd.f32 %v2933, %v3381
  %v3570 = vadd.f32 %v2934, %v3519
  %v3571 = vadd.f32 %v2935, %v3384
  %v3572 = vadd.f32 %v2936, %v3522
  %v3573 = vadd.f32 %v2937, %v3386
  %v3574 = vadd.f32 %v2938, %v3524
  %v3575 = vadd.f32 %v2939, %v3389
  %v3576 = vadd.f32 %v2940, %v3527
  %v3577 = vadd.f32 %v2941, %v3391
  %v3578 = vadd.f32 %v2942, %v3529
  %v3579 = vld [vmem:[%s0 + $0x60] sm:$0xff]
  %v3580 = vld [vmem:[%s0 + $0x68] sm:$0xff]
  %v3581 = vld [vmem:[%s0 + $0x70] sm:$0xff]
  %v3582 = vld [vmem:[%s0 + $0x78] sm:$0xff]
  %v3583 = vld [vmem:[%s0 + $0x80] sm:$0xff]
  %v3584 = vld [vmem:[%s0 + $0x88] sm:$0xff]
  %v3585 = vld [vmem:[%s0 + $0x90] sm:$0xff]
  %v3586 = vld [vmem:[%s0 + $0x98] sm:$0xff]
  %v3587 = vld [vmem:[%s0 + $0xa0] sm:$0xff]
  %v3588 = vld [vmem:[%s0 + $0xa8] sm:$0xff]
  %v3589 = vld [vmem:[%s0 + $0xb0] sm:$0xff]
  %v3590 = vld [vmem:[%s0 + $0xb8] sm:$0xff]
  %v3591 = vld [vmem:[%s0 + $0xc0] sm:$0xff]
  %v3592 = vld [vmem:[%s0 + $0xc8] sm:$0xff]
  %v3593 = vld [vmem:[%s0 + $0xd0] sm:$0xff]
  %v3594 = vld [vmem:[%s0 + $0xd8] sm:$0xff]
  %v3595 = vld [vmem:[%s0 + $0xe0] sm:$0xff]
  %v3596 = vld [vmem:[%s0 + $0xe8] sm:$0xff]
  %v3597 = vld [vmem:[%s0 + $0xf0] sm:$0xff]
  %v3598 = vld [vmem:[%s0 + $0xf8] sm:$0xff]
  %v3599 = vld [vmem:[%s0 + $0x100] sm:$0xff]
  %v3600 = vld [vmem:[%s0 + $0x108] sm:$0xff]
  %v3601 = vld [vmem:[%s0 + $0x110] sm:$0xff]
  %v3602 = vld [vmem:[%s0 + $0x118] sm:$0xff]
  %v3603 = vld [vmem:[%s1 + $0x480] sm:$0xff]
  %v3604 = vld [vmem:[%s1 + $0x488] sm:$0xff]
  %v3605 = vld [vmem:[%s1 + $0x490] sm:$0xff]
  %v3606 = vld [vmem:[%s1 + $0x498] sm:$0xff]
  %v3607 = vld [vmem:[%s1 + $0x4a0] sm:$0xff]
  %v3608 = vld [vmem:[%s1 + $0x4a8] sm:$0xff]
  %v3609 = vld [vmem:[%s1 + $0x4b0] sm:$0xff]
  %v3610 = vld [vmem:[%s1 + $0x4b8] sm:$0xff]
  %v3611 = vld [vmem:[%s1 + $0x4c0] sm:$0xff]
  %v3612 = vld [vmem:[%s1 + $0x4c8] sm:$0xff]
  %v3613 = vld [vmem:[%s1 + $0x4d0] sm:$0xff]
  %v3614 = vld [vmem:[%s1 + $0x4d8] sm:$0xff]
  %v3615 = vld [vmem:[%s1 + $0x4e0] sm:$0xff]
  %v3616 = vld [vmem:[%s1 + $0x4e8] sm:$0xff]
  %v3617 = vld [vmem:[%s1 + $0x4f0] sm:$0xff]
  %v3618 = vld [vmem:[%s1 + $0x4f8] sm:$0xff]
  %v3619 = vld [vmem:[%s1 + $0x500] sm:$0xff]
  %v3620 = vld [vmem:[%s1 + $0x508] sm:$0xff]
  %v3621 = vld [vmem:[%s1 + $0x510] sm:$0xff]
  %v3622 = vld [vmem:[%s1 + $0x518] sm:$0xff]
  %v3623 = vld [vmem:[%s1 + $0x520] sm:$0xff]
  %v3624 = vld [vmem:[%s1 + $0x528] sm:$0xff]
  %v3625 = vld [vmem:[%s1 + $0x530] sm:$0xff]
  %v3626 = vld [vmem:[%s1 + $0x538] sm:$0xff]
  %v3651 = vunpack.c.l.b16 %v3579
  %v3652 = vunpack.c.h.b16 %v3579
  %v3653 = vunpack.c.l.b16 %v3580
  %v3654 = vunpack.c.h.b16 %v3580
  %v3655 = vunpack.c.l.b16 %v3581
  %v3656 = vunpack.c.h.b16 %v3581
  %v3657 = vunpack.c.l.b16 %v3582
  %v3658 = vunpack.c.h.b16 %v3582
  %v3659 = vunpack.c.l.b16 %v3583
  %v3660 = vunpack.c.h.b16 %v3583
  %v3661 = vunpack.c.l.b16 %v3584
  %v3662 = vunpack.c.h.b16 %v3584
  %v3663 = vunpack.c.l.b16 %v3585
  %v3664 = vunpack.c.h.b16 %v3585
  %v3665 = vunpack.c.l.b16 %v3586
  %v3666 = vunpack.c.h.b16 %v3586
  %v3667 = vunpack.c.l.b16 %v3587
  %v3668 = vunpack.c.h.b16 %v3587
  %v3669 = vunpack.c.l.b16 %v3588
  %v3670 = vunpack.c.h.b16 %v3588
  %v3671 = vunpack.c.l.b16 %v3589
  %v3672 = vunpack.c.h.b16 %v3589
  %v3673 = vunpack.c.l.b16 %v3590
  %v3674 = vunpack.c.h.b16 %v3590
  %v3675 = vunpack.c.l.b16 %v3591
  %v3676 = vunpack.c.h.b16 %v3591
  %v3677 = vunpack.c.l.b16 %v3592
  %v3678 = vunpack.c.h.b16 %v3592
  %v3679 = vunpack.c.l.b16 %v3593
  %v3680 = vunpack.c.h.b16 %v3593
  %v3681 = vunpack.c.l.b16 %v3594
  %v3682 = vunpack.c.h.b16 %v3594
  %v3683 = vunpack.c.l.b16 %v3595
  %v3684 = vunpack.c.h.b16 %v3595
  %v3685 = vunpack.c.l.b16 %v3596
  %v3686 = vunpack.c.h.b16 %v3596
  %v3687 = vunpack.c.l.b16 %v3597
  %v3688 = vunpack.c.h.b16 %v3597
  %v3689 = vunpack.c.l.b16 %v3598
  %v3690 = vunpack.c.h.b16 %v3598
  %v3691 = vunpack.c.l.b16 %v3599
  %v3692 = vunpack.c.h.b16 %v3599
  %v3693 = vunpack.c.l.b16 %v3600
  %v3694 = vunpack.c.h.b16 %v3600
  %v3695 = vunpack.c.l.b16 %v3601
  %v3696 = vunpack.c.h.b16 %v3601
  %v3697 = vunpack.c.l.b16 %v3602
  %v3698 = vunpack.c.h.b16 %v3602
  %v3699 = vpack.c.b16 %v3653, %v3651
  %v3700 = vpack.c.b16 %v3654, %v3652
  %v3701 = vpack.c.b16 %v3657, %v3655
  %v3702 = vpack.c.b16 %v3658, %v3656
  %v3703 = vpack.c.b16 %v3661, %v3659
  %v3704 = vpack.c.b16 %v3662, %v3660
  %v3705 = vpack.c.b16 %v3665, %v3663
  %v3706 = vpack.c.b16 %v3666, %v3664
  %v3707 = vpack.c.b16 %v3669, %v3667
  %v3708 = vpack.c.b16 %v3670, %v3668
  %v3709 = vpack.c.b16 %v3673, %v3671
  %v3710 = vpack.c.b16 %v3674, %v3672
  %v3711 = vpack.c.b16 %v3677, %v3675
  %v3712 = vpack.c.b16 %v3678, %v3676
  %v3713 = vpack.c.b16 %v3681, %v3679
  %v3714 = vpack.c.b16 %v3682, %v3680
  %v3715 = vpack.c.b16 %v3685, %v3683
  %v3716 = vpack.c.b16 %v3686, %v3684
  %v3717 = vpack.c.b16 %v3689, %v3687
  %v3718 = vpack.c.b16 %v3690, %v3688
  %v3719 = vpack.c.b16 %v3693, %v3691
  %v3720 = vpack.c.b16 %v3694, %v3692
  %v3721 = vpack.c.b16 %v3697, %v3695
  %v3722 = vpack.c.b16 %v3698, %v3696
  %v3759 = vunpack.c.l.b16 %v3603
  %v3760 = vunpack.c.h.b16 %v3603
  %v3761 = vunpack.c.l.b16 %v3604
  %v3762 = vunpack.c.h.b16 %v3604
  %v3763 = vunpack.c.l.b16 %v3605
  %v3764 = vunpack.c.h.b16 %v3605
  %v3765 = vunpack.c.l.b16 %v3606
  %v3766 = vunpack.c.h.b16 %v3606
  %v3767 = vunpack.c.l.b16 %v3607
  %v3768 = vunpack.c.h.b16 %v3607
  %v3769 = vunpack.c.l.b16 %v3608
  %v3770 = vunpack.c.h.b16 %v3608
  %v3771 = vunpack.c.l.b16 %v3609
  %v3772 = vunpack.c.h.b16 %v3609
  %v3773 = vunpack.c.l.b16 %v3610
  %v3774 = vunpack.c.h.b16 %v3610
  %v3775 = vunpack.c.l.b16 %v3611
  %v3776 = vunpack.c.h.b16 %v3611
  %v3777 = vunpack.c.l.b16 %v3612
  %v3778 = vunpack.c.h.b16 %v3612
  %v3779 = vunpack.c.l.b16 %v3613
  %v3780 = vunpack.c.h.b16 %v3613
  %v3781 = vunpack.c.l.b16 %v3614
  %v3782 = vunpack.c.h.b16 %v3614
  %v3783 = vunpack.c.l.b16 %v3615
  %v3784 = vunpack.c.h.b16 %v3615
  %v3785 = vunpack.c.l.b16 %v3616
  %v3786 = vunpack.c.h.b16 %v3616
  %v3787 = vunpack.c.l.b16 %v3617
  %v3788 = vunpack.c.h.b16 %v3617
  %v3789 = vunpack.c.l.b16 %v3618
  %v3790 = vunpack.c.h.b16 %v3618
  %v3791 = vunpack.c.l.b16 %v3619
  %v3792 = vunpack.c.h.b16 %v3619
  %v3793 = vunpack.c.l.b16 %v3620
  %v3794 = vunpack.c.h.b16 %v3620
  %v3795 = vunpack.c.l.b16 %v3621
  %v3796 = vunpack.c.h.b16 %v3621
  %v3797 = vunpack.c.l.b16 %v3622
  %v3798 = vunpack.c.h.b16 %v3622
  %v3799 = vunpack.c.l.b16 %v3623
  %v3800 = vunpack.c.h.b16 %v3623
  %v3801 = vunpack.c.l.b16 %v3624
  %v3802 = vunpack.c.h.b16 %v3624
  %v3803 = vunpack.c.l.b16 %v3625
  %v3804 = vunpack.c.h.b16 %v3625
  %v3805 = vunpack.c.l.b16 %v3626
  %v3806 = vunpack.c.h.b16 %v3626
  %v3807 = vpack.c.b16 %v3761, %v3759
  %v3808 = vpack.c.b16 %v3762, %v3760
  %v3809 = vpack.c.b16 %v3765, %v3763
  %v3810 = vpack.c.b16 %v3766, %v3764
  %v3811 = vpack.c.b16 %v3769, %v3767
  %v3812 = vpack.c.b16 %v3770, %v3768
  %v3813 = vpack.c.b16 %v3773, %v3771
  %v3814 = vpack.c.b16 %v3774, %v3772
  %v3815 = vpack.c.b16 %v3777, %v3775
  %v3816 = vpack.c.b16 %v3778, %v3776
  %v3817 = vpack.c.b16 %v3781, %v3779
  %v3818 = vpack.c.b16 %v3782, %v3780
  %v3819 = vpack.c.b16 %v3785, %v3783
  %v3820 = vpack.c.b16 %v3786, %v3784
  %v3821 = vpack.c.b16 %v3789, %v3787
  %v3822 = vpack.c.b16 %v3790, %v3788
  %v3823 = vpack.c.b16 %v3793, %v3791
  %v3824 = vpack.c.b16 %v3794, %v3792
  %v3825 = vpack.c.b16 %v3797, %v3795
  %v3826 = vpack.c.b16 %v3798, %v3796
  %v3827 = vpack.c.b16 %v3801, %v3799
  %v3828 = vpack.c.b16 %v3802, %v3800
  %v3829 = vpack.c.b16 %v3805, %v3803
  %v3830 = vpack.c.b16 %v3806, %v3804
  %v3856 = vsel %vm314, %v3700, 0
  %v3859 = vsel %vm314, %v3702, 0
  %v3862 = vsel %vm314, %v3704, 0
  %v3865 = vsel %vm314, %v3706, 0
  %v3868 = vsel %vm314, %v3708, 0
  %v3871 = vsel %vm314, %v3710, 0
  %v3874 = vsel %vm314, %v3712, 0
  %v3877 = vsel %vm314, %v3714, 0
  %v3880 = vsel %vm314, %v3716, 0
  %v3883 = vsel %vm314, %v3718, 0
  %v3886 = vsel %vm314, %v3720, 0
  %v3889 = vsel %vm314, %v3722, 0
  %3891 = vmatpush.bf16.msra.mxu0 %v3821
  %3892 = vmatpush.bf16.msra.mxu0 %v3819
  %3893 = vmatpush.bf16.msra.mxu0 %v3817
  %3894 = vmatpush.bf16.msra.mxu0 %v3815
  %3895 = vmatpush.bf16.msra.mxu0 %v3813
  %3896 = vmatpush.bf16.msra.mxu0 %v3811
  %3897 = vmatpush.bf16.msra.mxu0 %v3809
  %3898 = vmatpush.bf16.msra.mxu0 %v3807
  %3899 = vmatmul.bf16.gmra.mxu0 %v3699
  %v3900 = vpop.f32.mrf.mxu0
  %v3901 = vadd.f32 0.0, %v3900
  %v3902 = vpop.f32.mrf.mxu0
  %v3903 = vadd.f32 0.0, %v3902
  %3904 = vmatmul.bf16.gmra.mxu0 %v3701
  %v3905 = vpop.f32.mrf.mxu0
  %v3906 = vadd.f32 0.0, %v3905
  %v3907 = vpop.f32.mrf.mxu0
  %v3908 = vadd.f32 0.0, %v3907
  %3909 = vmatmul.bf16.gmra.mxu0 %v3703
  %v3910 = vpop.f32.mrf.mxu0
  %v3911 = vadd.f32 0.0, %v3910
  %v3912 = vpop.f32.mrf.mxu0
  %v3913 = vadd.f32 0.0, %v3912
  %3914 = vmatmul.bf16.gmra.mxu0 %v3705
  %v3915 = vpop.f32.mrf.mxu0
  %v3916 = vadd.f32 0.0, %v3915
  %v3917 = vpop.f32.mrf.mxu0
  %v3918 = vadd.f32 0.0, %v3917
  %3919 = vmatmul.bf16.gmra.mxu0 %v3707
  %v3920 = vpop.f32.mrf.mxu0
  %v3921 = vadd.f32 0.0, %v3920
  %v3922 = vpop.f32.mrf.mxu0
  %v3923 = vadd.f32 0.0, %v3922
  %3924 = vmatmul.bf16.gmra.mxu0 %v3709
  %v3925 = vpop.f32.mrf.mxu0
  %v3926 = vadd.f32 0.0, %v3925
  %v3927 = vpop.f32.mrf.mxu0
  %v3928 = vadd.f32 0.0, %v3927
  %3929 = vmatmul.bf16.gmra.mxu0 %v3711
  %v3930 = vpop.f32.mrf.mxu0
  %v3931 = vadd.f32 0.0, %v3930
  %v3932 = vpop.f32.mrf.mxu0
  %v3933 = vadd.f32 0.0, %v3932
  %3934 = vmatmul.bf16.gmra.mxu0 %v3713
  %v3935 = vpop.f32.mrf.mxu0
  %v3936 = vadd.f32 0.0, %v3935
  %v3937 = vpop.f32.mrf.mxu0
  %v3938 = vadd.f32 0.0, %v3937
  %3939 = vmatmul.bf16.gmra.mxu0 %v3715
  %v3940 = vpop.f32.mrf.mxu0
  %v3941 = vadd.f32 0.0, %v3940
  %v3942 = vpop.f32.mrf.mxu0
  %v3943 = vadd.f32 0.0, %v3942
  %3944 = vmatmul.bf16.gmra.mxu0 %v3717
  %v3945 = vpop.f32.mrf.mxu0
  %v3946 = vadd.f32 0.0, %v3945
  %v3947 = vpop.f32.mrf.mxu0
  %v3948 = vadd.f32 0.0, %v3947
  %3949 = vmatmul.bf16.gmra.mxu0 %v3719
  %v3950 = vpop.f32.mrf.mxu0
  %v3951 = vadd.f32 0.0, %v3950
  %v3952 = vpop.f32.mrf.mxu0
  %v3953 = vadd.f32 0.0, %v3952
  %3954 = vmatmul.bf16.gmra.mxu0 %v3721
  %v3955 = vpop.f32.mrf.mxu0
  %v3956 = vadd.f32 0.0, %v3955
  %v3957 = vpop.f32.mrf.mxu0
  %v3958 = vadd.f32 0.0, %v3957
  %3959 = vdwg.mxu0
  %3960 = vmatpush.bf16.msra.mxu0 0
  %3961 = vmatpush.bf16.msra.mxu0 0
  %3962 = vmatpush.bf16.msra.mxu0 0
  %3963 = vmatpush.bf16.msra.mxu0 0
  %3964 = vmatpush.bf16.msra.mxu0 %v3829
  %3965 = vmatpush.bf16.msra.mxu0 %v3827
  %3966 = vmatpush.bf16.msra.mxu0 %v3825
  %3967 = vmatpush.bf16.msra.mxu0 %v3823
  %3968 = vmatmul.bf16.gmra.mxu0 %v3856
  %v3969 = vpop.f32.mrf.mxu0
  %v3970 = vadd.f32 %v3901, %v3969
  %v3971 = vpop.f32.mrf.mxu0
  %v3972 = vadd.f32 %v3903, %v3971
  %3973 = vmatmul.bf16.gmra.mxu0 %v3859
  %v3974 = vpop.f32.mrf.mxu0
  %v3975 = vadd.f32 %v3906, %v3974
  %v3976 = vpop.f32.mrf.mxu0
  %v3977 = vadd.f32 %v3908, %v3976
  %3978 = vmatmul.bf16.gmra.mxu0 %v3862
  %v3979 = vpop.f32.mrf.mxu0
  %v3980 = vadd.f32 %v3911, %v3979
  %v3981 = vpop.f32.mrf.mxu0
  %v3982 = vadd.f32 %v3913, %v3981
  %3983 = vmatmul.bf16.gmra.mxu0 %v3865
  %v3984 = vpop.f32.mrf.mxu0
  %v3985 = vadd.f32 %v3916, %v3984
  %v3986 = vpop.f32.mrf.mxu0
  %v3987 = vadd.f32 %v3918, %v3986
  %3988 = vmatmul.bf16.gmra.mxu0 %v3868
  %v3989 = vpop.f32.mrf.mxu0
  %v3990 = vadd.f32 %v3921, %v3989
  %v3991 = vpop.f32.mrf.mxu0
  %v3992 = vadd.f32 %v3923, %v3991
  %3993 = vmatmul.bf16.gmra.mxu0 %v3871
  %v3994 = vpop.f32.mrf.mxu0
  %v3995 = vadd.f32 %v3926, %v3994
  %v3996 = vpop.f32.mrf.mxu0
  %v3997 = vadd.f32 %v3928, %v3996
  %3998 = vmatmul.bf16.gmra.mxu0 %v3874
  %v3999 = vpop.f32.mrf.mxu0
  %v4000 = vadd.f32 %v3931, %v3999
  %v4001 = vpop.f32.mrf.mxu0
  %v4002 = vadd.f32 %v3933, %v4001
  %4003 = vmatmul.bf16.gmra.mxu0 %v3877
  %v4004 = vpop.f32.mrf.mxu0
  %v4005 = vadd.f32 %v3936, %v4004
  %v4006 = vpop.f32.mrf.mxu0
  %v4007 = vadd.f32 %v3938, %v4006
  %4008 = vmatmul.bf16.gmra.mxu0 %v3880
  %v4009 = vpop.f32.mrf.mxu0
  %v4010 = vadd.f32 %v3941, %v4009
  %v4011 = vpop.f32.mrf.mxu0
  %v4012 = vadd.f32 %v3943, %v4011
  %4013 = vmatmul.bf16.gmra.mxu0 %v3883
  %v4014 = vpop.f32.mrf.mxu0
  %v4015 = vadd.f32 %v3946, %v4014
  %v4016 = vpop.f32.mrf.mxu0
  %v4017 = vadd.f32 %v3948, %v4016
  %4018 = vmatmul.bf16.gmra.mxu0 %v3886
  %v4019 = vpop.f32.mrf.mxu0
  %v4020 = vadd.f32 %v3951, %v4019
  %v4021 = vpop.f32.mrf.mxu0
  %v4022 = vadd.f32 %v3953, %v4021
  %4023 = vmatmul.bf16.gmra.mxu0 %v3889
  %v4024 = vpop.f32.mrf.mxu0
  %v4025 = vadd.f32 %v3956, %v4024
  %v4026 = vpop.f32.mrf.mxu0
  %v4027 = vadd.f32 %v3958, %v4026
  %4028 = vdwg.mxu0
  %4029 = vmatpush.bf16.msra.mxu0 %v3822
  %4030 = vmatpush.bf16.msra.mxu0 %v3820
  %4031 = vmatpush.bf16.msra.mxu0 %v3818
  %4032 = vmatpush.bf16.msra.mxu0 %v3816
  %4033 = vmatpush.bf16.msra.mxu0 %v3814
  %4034 = vmatpush.bf16.msra.mxu0 %v3812
  %4035 = vmatpush.bf16.msra.mxu0 %v3810
  %4036 = vmatpush.bf16.msra.mxu0 %v3808
  %4037 = vmatmul.bf16.gmra.mxu0 %v3699
  %v4038 = vpop.f32.mrf.mxu0
  %v4039 = vadd.f32 0.0, %v4038
  %v4040 = vpop.f32.mrf.mxu0
  %v4041 = vadd.f32 0.0, %v4040
  %4042 = vmatmul.bf16.gmra.mxu0 %v3701
  %v4043 = vpop.f32.mrf.mxu0
  %v4044 = vadd.f32 0.0, %v4043
  %v4045 = vpop.f32.mrf.mxu0
  %v4046 = vadd.f32 0.0, %v4045
  %4047 = vmatmul.bf16.gmra.mxu0 %v3703
  %v4048 = vpop.f32.mrf.mxu0
  %v4049 = vadd.f32 0.0, %v4048
  %v4050 = vpop.f32.mrf.mxu0
  %v4051 = vadd.f32 0.0, %v4050
  %4052 = vmatmul.bf16.gmra.mxu0 %v3705
  %v4053 = vpop.f32.mrf.mxu0
  %v4054 = vadd.f32 0.0, %v4053
  %v4055 = vpop.f32.mrf.mxu0
  %v4056 = vadd.f32 0.0, %v4055
  %4057 = vmatmul.bf16.gmra.mxu0 %v3707
  %v4058 = vpop.f32.mrf.mxu0
  %v4059 = vadd.f32 0.0, %v4058
  %v4060 = vpop.f32.mrf.mxu0
  %v4061 = vadd.f32 0.0, %v4060
  %4062 = vmatmul.bf16.gmra.mxu0 %v3709
  %v4063 = vpop.f32.mrf.mxu0
  %v4064 = vadd.f32 0.0, %v4063
  %v4065 = vpop.f32.mrf.mxu0
  %v4066 = vadd.f32 0.0, %v4065
  %4067 = vmatmul.bf16.gmra.mxu0 %v3711
  %v4068 = vpop.f32.mrf.mxu0
  %v4069 = vadd.f32 0.0, %v4068
  %v4070 = vpop.f32.mrf.mxu0
  %v4071 = vadd.f32 0.0, %v4070
  %4072 = vmatmul.bf16.gmra.mxu0 %v3713
  %v4073 = vpop.f32.mrf.mxu0
  %v4074 = vadd.f32 0.0, %v4073
  %v4075 = vpop.f32.mrf.mxu0
  %v4076 = vadd.f32 0.0, %v4075
  %4077 = vmatmul.bf16.gmra.mxu0 %v3715
  %v4078 = vpop.f32.mrf.mxu0
  %v4079 = vadd.f32 0.0, %v4078
  %v4080 = vpop.f32.mrf.mxu0
  %v4081 = vadd.f32 0.0, %v4080
  %4082 = vmatmul.bf16.gmra.mxu0 %v3717
  %v4083 = vpop.f32.mrf.mxu0
  %v4084 = vadd.f32 0.0, %v4083
  %v4085 = vpop.f32.mrf.mxu0
  %v4086 = vadd.f32 0.0, %v4085
  %4087 = vmatmul.bf16.gmra.mxu0 %v3719
  %v4088 = vpop.f32.mrf.mxu0
  %v4089 = vadd.f32 0.0, %v4088
  %v4090 = vpop.f32.mrf.mxu0
  %v4091 = vadd.f32 0.0, %v4090
  %4092 = vmatmul.bf16.gmra.mxu0 %v3721
  %v4093 = vpop.f32.mrf.mxu0
  %v4094 = vadd.f32 0.0, %v4093
  %v4095 = vpop.f32.mrf.mxu0
  %v4096 = vadd.f32 0.0, %v4095
  %4097 = vdwg.mxu0
  %4098 = vmatpush.bf16.msra.mxu0 0
  %4099 = vmatpush.bf16.msra.mxu0 0
  %4100 = vmatpush.bf16.msra.mxu0 0
  %4101 = vmatpush.bf16.msra.mxu0 0
  %4102 = vmatpush.bf16.msra.mxu0 %v3830
  %4103 = vmatpush.bf16.msra.mxu0 %v3828
  %4104 = vmatpush.bf16.msra.mxu0 %v3826
  %4105 = vmatpush.bf16.msra.mxu0 %v3824
  %4106 = vmatmul.bf16.gmra.mxu0 %v3856
  %v4107 = vpop.f32.mrf.mxu0
  %v4108 = vadd.f32 %v4039, %v4107
  %v4109 = vpop.f32.mrf.mxu0
  %v4110 = vadd.f32 %v4041, %v4109
  %4111 = vmatmul.bf16.gmra.mxu0 %v3859
  %v4112 = vpop.f32.mrf.mxu0
  %v4113 = vadd.f32 %v4044, %v4112
  %v4114 = vpop.f32.mrf.mxu0
  %v4115 = vadd.f32 %v4046, %v4114
  %4116 = vmatmul.bf16.gmra.mxu0 %v3862
  %v4117 = vpop.f32.mrf.mxu0
  %v4118 = vadd.f32 %v4049, %v4117
  %v4119 = vpop.f32.mrf.mxu0
  %v4120 = vadd.f32 %v4051, %v4119
  %4121 = vmatmul.bf16.gmra.mxu0 %v3865
  %v4122 = vpop.f32.mrf.mxu0
  %v4123 = vadd.f32 %v4054, %v4122
  %v4124 = vpop.f32.mrf.mxu0
  %v4125 = vadd.f32 %v4056, %v4124
  %4126 = vmatmul.bf16.gmra.mxu0 %v3868
  %v4127 = vpop.f32.mrf.mxu0
  %v4128 = vadd.f32 %v4059, %v4127
  %v4129 = vpop.f32.mrf.mxu0
  %v4130 = vadd.f32 %v4061, %v4129
  %4131 = vmatmul.bf16.gmra.mxu0 %v3871
  %v4132 = vpop.f32.mrf.mxu0
  %v4133 = vadd.f32 %v4064, %v4132
  %v4134 = vpop.f32.mrf.mxu0
  %v4135 = vadd.f32 %v4066, %v4134
  %4136 = vmatmul.bf16.gmra.mxu0 %v3874
  %v4137 = vpop.f32.mrf.mxu0
  %v4138 = vadd.f32 %v4069, %v4137
  %v4139 = vpop.f32.mrf.mxu0
  %v4140 = vadd.f32 %v4071, %v4139
  %4141 = vmatmul.bf16.gmra.mxu0 %v3877
  %v4142 = vpop.f32.mrf.mxu0
  %v4143 = vadd.f32 %v4074, %v4142
  %v4144 = vpop.f32.mrf.mxu0
  %v4145 = vadd.f32 %v4076, %v4144
  %4146 = vmatmul.bf16.gmra.mxu0 %v3880
  %v4147 = vpop.f32.mrf.mxu0
  %v4148 = vadd.f32 %v4079, %v4147
  %v4149 = vpop.f32.mrf.mxu0
  %v4150 = vadd.f32 %v4081, %v4149
  %4151 = vmatmul.bf16.gmra.mxu0 %v3883
  %v4152 = vpop.f32.mrf.mxu0
  %v4153 = vadd.f32 %v4084, %v4152
  %v4154 = vpop.f32.mrf.mxu0
  %v4155 = vadd.f32 %v4086, %v4154
  %4156 = vmatmul.bf16.gmra.mxu0 %v3886
  %v4157 = vpop.f32.mrf.mxu0
  %v4158 = vadd.f32 %v4089, %v4157
  %v4159 = vpop.f32.mrf.mxu0
  %v4160 = vadd.f32 %v4091, %v4159
  %4161 = vmatmul.bf16.gmra.mxu0 %v3889
  %v4162 = vpop.f32.mrf.mxu0
  %v4163 = vadd.f32 %v4094, %v4162
  %v4164 = vpop.f32.mrf.mxu0
  %v4165 = vadd.f32 %v4096, %v4164
  %4166 = vdwg.mxu0
  %v4167 = vadd.f32 %v3531, %v3970
  %v4168 = vadd.f32 %v3532, %v4108
  %v4169 = vadd.f32 %v3533, %v3972
  %v4170 = vadd.f32 %v3534, %v4110
  %v4171 = vadd.f32 %v3535, %v3975
  %v4172 = vadd.f32 %v3536, %v4113
  %v4173 = vadd.f32 %v3537, %v3977
  %v4174 = vadd.f32 %v3538, %v4115
  %v4175 = vadd.f32 %v3539, %v3980
  %v4176 = vadd.f32 %v3540, %v4118
  %v4177 = vadd.f32 %v3541, %v3982
  %v4178 = vadd.f32 %v3542, %v4120
  %v4179 = vadd.f32 %v3543, %v3985
  %v4180 = vadd.f32 %v3544, %v4123
  %v4181 = vadd.f32 %v3545, %v3987
  %v4182 = vadd.f32 %v3546, %v4125
  %v4183 = vadd.f32 %v3547, %v3990
  %v4184 = vadd.f32 %v3548, %v4128
  %v4185 = vadd.f32 %v3549, %v3992
  %v4186 = vadd.f32 %v3550, %v4130
  %v4187 = vadd.f32 %v3551, %v3995
  %v4188 = vadd.f32 %v3552, %v4133
  %v4189 = vadd.f32 %v3553, %v3997
  %v4190 = vadd.f32 %v3554, %v4135
  %v4191 = vadd.f32 %v3555, %v4000
  %v4192 = vadd.f32 %v3556, %v4138
  %v4193 = vadd.f32 %v3557, %v4002
  %v4194 = vadd.f32 %v3558, %v4140
  %v4195 = vadd.f32 %v3559, %v4005
  %v4196 = vadd.f32 %v3560, %v4143
  %v4197 = vadd.f32 %v3561, %v4007
  %v4198 = vadd.f32 %v3562, %v4145
  %v4199 = vadd.f32 %v3563, %v4010
  %v4200 = vadd.f32 %v3564, %v4148
  %v4201 = vadd.f32 %v3565, %v4012
  %v4202 = vadd.f32 %v3566, %v4150
  %v4203 = vadd.f32 %v3567, %v4015
  %v4204 = vadd.f32 %v3568, %v4153
  %v4205 = vadd.f32 %v3569, %v4017
  %v4206 = vadd.f32 %v3570, %v4155
  %v4207 = vadd.f32 %v3571, %v4020
  %v4208 = vadd.f32 %v3572, %v4158
  %v4209 = vadd.f32 %v3573, %v4022
  %v4210 = vadd.f32 %v3574, %v4160
  %v4211 = vadd.f32 %v3575, %v4025
  %v4212 = vadd.f32 %v3576, %v4163
  %v4213 = vadd.f32 %v3577, %v4027
  %v4214 = vadd.f32 %v3578, %v4165
  %4215 = vst [vmem:[%s2] sm:$0xff] %v4167
  %4216 = vst.msk [vmem:[%s2 + $0x8] sm:$0xff] %vm314, %v4168
  %4217 = vst [vmem:[%s2 + $0x10] sm:$0xff] %v4169
  %4218 = vst.msk [vmem:[%s2 + $0x18] sm:$0xff] %vm314, %v4170
  %4219 = vst [vmem:[%s2 + $0x20] sm:$0xff] %v4171
  %4220 = vst.msk [vmem:[%s2 + $0x28] sm:$0xff] %vm314, %v4172
  %4221 = vst [vmem:[%s2 + $0x30] sm:$0xff] %v4173
  %4222 = vst.msk [vmem:[%s2 + $0x38] sm:$0xff] %vm314, %v4174
  %4223 = vst [vmem:[%s2 + $0x40] sm:$0xff] %v4175
  %4224 = vst.msk [vmem:[%s2 + $0x48] sm:$0xff] %vm314, %v4176
  %4225 = vst [vmem:[%s2 + $0x50] sm:$0xff] %v4177
  %4226 = vst.msk [vmem:[%s2 + $0x58] sm:$0xff] %vm314, %v4178
  %4227 = vst [vmem:[%s2 + $0x60] sm:$0xff] %v4179
  %4228 = vst.msk [vmem:[%s2 + $0x68] sm:$0xff] %vm314, %v4180
  %4229 = vst [vmem:[%s2 + $0x70] sm:$0xff] %v4181
  %4230 = vst.msk [vmem:[%s2 + $0x78] sm:$0xff] %vm314, %v4182
  %4231 = vst [vmem:[%s2 + $0x80] sm:$0xff] %v4183
  %4232 = vst.msk [vmem:[%s2 + $0x88] sm:$0xff] %vm314, %v4184
  %4233 = vst [vmem:[%s2 + $0x90] sm:$0xff] %v4185
  %4234 = vst.msk [vmem:[%s2 + $0x98] sm:$0xff] %vm314, %v4186
  %4235 = vst [vmem:[%s2 + $0xa0] sm:$0xff] %v4187
  %4236 = vst.msk [vmem:[%s2 + $0xa8] sm:$0xff] %vm314, %v4188
  %4237 = vst [vmem:[%s2 + $0xb0] sm:$0xff] %v4189
  %4238 = vst.msk [vmem:[%s2 + $0xb8] sm:$0xff] %vm314, %v4190
  %4239 = vst [vmem:[%s2 + $0xc0] sm:$0xff] %v4191
  %4240 = vst.msk [vmem:[%s2 + $0xc8] sm:$0xff] %vm314, %v4192
  %4241 = vst [vmem:[%s2 + $0xd0] sm:$0xff] %v4193
  %4242 = vst.msk [vmem:[%s2 + $0xd8] sm:$0xff] %vm314, %v4194
  %4243 = vst [vmem:[%s2 + $0xe0] sm:$0xff] %v4195
  %4244 = vst.msk [vmem:[%s2 + $0xe8] sm:$0xff] %vm314, %v4196
  %4245 = vst [vmem:[%s2 + $0xf0] sm:$0xff] %v4197
  %4246 = vst.msk [vmem:[%s2 + $0xf8] sm:$0xff] %vm314, %v4198
  %4247 = vst [vmem:[%s2 + $0x100] sm:$0xff] %v4199
  %4248 = vst.msk [vmem:[%s2 + $0x108] sm:$0xff] %vm314, %v4200
  %4249 = vst [vmem:[%s2 + $0x110] sm:$0xff] %v4201
  %4250 = vst.msk [vmem:[%s2 + $0x118] sm:$0xff] %vm314, %v4202
  %4251 = vst [vmem:[%s2 + $0x120] sm:$0xff] %v4203
  %4252 = vst.msk [vmem:[%s2 + $0x128] sm:$0xff] %vm314, %v4204
  %4253 = vst [vmem:[%s2 + $0x130] sm:$0xff] %v4205
  %4254 = vst.msk [vmem:[%s2 + $0x138] sm:$0xff] %vm314, %v4206
  %4255 = vst [vmem:[%s2 + $0x140] sm:$0xff] %v4207
  %4256 = vst.msk [vmem:[%s2 + $0x148] sm:$0xff] %vm314, %v4208
  %4257 = vst [vmem:[%s2 + $0x150] sm:$0xff] %v4209
  %4258 = vst.msk [vmem:[%s2 + $0x158] sm:$0xff] %vm314, %v4210
  %4259 = vst [vmem:[%s2 + $0x160] sm:$0xff] %v4211
  %4260 = vst.msk [vmem:[%s2 + $0x168] sm:$0xff] %vm314, %v4212
  %4261 = vst [vmem:[%s2 + $0x170] sm:$0xff] %v4213
  %4262 = vst.msk [vmem:[%s2 + $0x178] sm:$0xff] %vm314, %v4214
  // Predicated region
  $region10: #{conv2d_7x1.1} parent=0 // pred_check
    _
  $region11: #{conv2d_7x1.1} parent=0 // pred_check_branch
    %4264 = sbr.rel (0) target = $region13
  $region12: #{conv2d_7x1.1} parent=0 // pred_region
    _
  $region13: #{conv2d_7x1.1} parent=0 // pred_fallthru
    _
  // Predicated region
  $region14: #{conv2d_7x1.1} parent=0 // pred_check
    _
  $region15: #{conv2d_7x1.1} parent=0 // pred_check_branch
    %4266 = sbr.rel (0) target = $region17
  $region16: #{conv2d_7x1.1} parent=0 // pred_region
    _
  $region17: #{conv2d_7x1.1} parent=0 // pred_fallthru
    _

</llo_original>
